<compile_context>
chip_gen: v7x
topology: tpu7x:2x2x1
jax: 0.10.0
libtpu: 0.0.40
codegen_flags: <defaults>
</compile_context>

<pallas_src>
import functools

import jax
import jax.numpy as jnp
import numpy as np
from jax.experimental import pallas as pl
from jax.experimental.pallas import tpu as pltpu


def _round_up(x, m):
    return ((x + m - 1) // m) * m


# ----------------------------------------------------------------------------
# Pallas kernels
# ----------------------------------------------------------------------------
def _mm_bias_act_kernel(a_ref, b_ref, bias_ref, o_ref, *, relu):
    """bf16 x bf16 -> f32 matmul; accumulate into o_ref; bias(+ReLU) at last K."""
    k = pl.program_id(2)

    @pl.when(k == 0)
    def _():
        o_ref[...] = jnp.zeros_like(o_ref)

    o_ref[...] += jnp.dot(a_ref[...], b_ref[...],
                          preferred_element_type=jnp.float32)

    @pl.when(k == pl.num_programs(2) - 1)
    def _():
        r = o_ref[...] + bias_ref[...]          # (tm,tn) + (1,tn)
        if relu:
            r = jnp.maximum(r, 0.0)
        o_ref[...] = r


def matmul_bias_act(a, b_bf16, bias, relu):
    """a: (M,K) any float, b_bf16: (K,N) bf16, bias: (N,) f32 -> (M,N) f32."""
    M, K = a.shape
    K2, N = b_bf16.shape
    assert K == K2

    # Tile choice: lane dims padded to multiples of 128, M padded only as far as
    # needed (16-aligned) so tiny-M layers don't waste 128x MXU rows.
    tm = min(256, _round_up(M, 16))
    tn = min(256, _round_up(N, 128))
    tk = min(1024, _round_up(K, 128))
    Mp, Np, Kp = _round_up(M, tm), _round_up(N, tn), _round_up(K, tk)

    a_p = jnp.pad(a.astype(jnp.bfloat16), ((0, Mp - M), (0, Kp - K)))
    b_p = jnp.pad(b_bf16, ((0, Kp - K), (0, Np - N)))
    bias_p = jnp.pad(bias.astype(jnp.float32).reshape(1, -1),
                     ((0, 0), (0, Np - N)))

    out = pl.pallas_call(
        functools.partial(_mm_bias_act_kernel, relu=relu),
        out_shape=jax.ShapeDtypeStruct((Mp, Np), jnp.float32),
        grid_spec=pltpu.PrefetchScalarGridSpec(
            num_scalar_prefetch=0,
            grid=(Mp // tm, Np // tn, Kp // tk),
            in_specs=[
                pl.BlockSpec((tm, tk), lambda i, j, k: (i, k)),
                pl.BlockSpec((tk, tn), lambda i, j, k: (k, j)),
                pl.BlockSpec((1, tn), lambda i, j, k: (0, j)),
            ],
            out_specs=pl.BlockSpec((tm, tn), lambda i, j, k: (i, j)),
        ),
        compiler_params=pltpu.CompilerParams(
            dimension_semantics=("parallel", "parallel", "arbitrary")),
    )(a_p, b_p, bias_p)
    return out[:M, :N]


def _maxpool_kernel(x_ref, o_ref):
    """Max-reduce over the 9 stacked taps of a (9, tm, C) block."""
    acc = x_ref[0]
    for i in range(1, 9):
        acc = jnp.maximum(acc, x_ref[i])
    o_ref[...] = acc


def maxpool3x3_s2(x):
    """nn.MaxPool2d(3, 2, 0) on an NHWC tensor via a gridded Pallas reduction."""
    N, H, W, C = x.shape
    Ho = (H - 3) // 2 + 1
    Wo = (W - 3) // 2 + 1
    # pad = 0, so no -inf padding concerns: every tap is a real input element.
    pats = jnp.stack(
        [x[:, dh:dh + 2 * Ho:2, dw:dw + 2 * Wo:2, :]
         for dh in range(3) for dw in range(3)], axis=0)      # (9,N,Ho,Wo,C)
    M = N * Ho * Wo
    pats = pats.reshape(9, M, C)

    tm = min(256, _round_up(M, 8))
    Mp = _round_up(M, tm)
    Cp = _round_up(C, 128)
    pats_p = jnp.pad(pats, ((0, 0), (0, Mp - M), (0, Cp - C)))

    out = pl.pallas_call(
        _maxpool_kernel,
        out_shape=jax.ShapeDtypeStruct((Mp, Cp), x.dtype),
        grid_spec=pltpu.PrefetchScalarGridSpec(
            num_scalar_prefetch=0,
            grid=(Mp // tm,),
            in_specs=[pl.BlockSpec((9, tm, Cp), lambda i: (0, i, 0))],
            out_specs=pl.BlockSpec((tm, Cp), lambda i: (i, 0)),
        ),
        compiler_params=pltpu.CompilerParams(
            dimension_semantics=("parallel",)),
    )(pats_p)
    return out[:M, :C].reshape(N, Ho, Wo, C)


# ----------------------------------------------------------------------------
# Conv glue (im2col patch extraction; the matmul itself runs in Pallas)
# ----------------------------------------------------------------------------
def _im2col(x, kh, kw, sh, sw, ph, pw):
    """x: (N,H,W,C) -> patches (N*Ho*Wo, kh*kw*C), tap-major / channel-minor."""
    N, H, W, C = x.shape
    xp = jnp.pad(x, ((0, 0), (ph, ph), (pw, pw), (0, 0)))
    Ho = (H + 2 * ph - kh) // sh + 1
    Wo = (W + 2 * pw - kw) // sw + 1
    cols = [xp[:, dh:dh + sh * Ho:sh, dw:dw + sw * Wo:sw, :]
            for dh in range(kh) for dw in range(kw)]
    patches = jnp.concatenate(cols, axis=-1).reshape(N * Ho * Wo, kh * kw * C)
    return patches, (N, Ho, Wo)


def bn_conv(x, prm, kh, kw, sh=1, sw=1, ph=0, pw=0):
    """BN_Conv2d: conv(no bias) + folded eval-mode BatchNorm + ReLU."""
    cout = prm["w_mat"].shape[1]
    patches, (n, ho, wo) = _im2col(x.astype(jnp.bfloat16), kh, kw, sh, sw, ph, pw)
    y = matmul_bias_act(patches, prm["w_mat"], prm["bias"], relu=True)
    return y.reshape(n, ho, wo, cout)


# ----------------------------------------------------------------------------
# Parameter construction: BN folded and weights pre-reshaped at build time
# ----------------------------------------------------------------------------
def _init_bn_conv(key, cin, cout, kh, kw):
    k1, k2, k3, k4, k5 = jax.random.split(key, 5)
    fan = cin * kh * kw
    w = jax.random.normal(k1, (cout, cin, kh, kw), jnp.float32) / np.sqrt(fan)
    gamma = 1.0 + 0.1 * jax.random.normal(k2, (cout,), jnp.float32)
    beta = 0.1 * jax.random.normal(k3, (cout,), jnp.float32)
    mean = 0.1 * jax.random.normal(k4, (cout,), jnp.float32)
    var = jax.random.uniform(k5, (cout,), jnp.float32, minval=0.5, maxval=1.5)

    scale = gamma / jnp.sqrt(var + 1e-5)          # eval-mode BN folding
    w_f = w * scale[:, None, None, None]
    bias = beta - mean * scale
    # OIHW -> (kh, kw, Cin, Cout) -> (kh*kw*Cin, Cout), matching im2col layout.
    w_mat = jnp.transpose(w_f, (2, 3, 1, 0)).reshape(kh * kw * cin, cout)
    return dict(w_mat=w_mat.astype(jnp.bfloat16), bias=bias)


def build_params(key, in_channels):
    keys = jax.random.split(key, 6)
    return dict(
        c1=_init_bn_conv(keys[0], in_channels, 32, 3, 3),   # 3x3 /2, pad 0
        c2=_init_bn_conv(keys[1], 32, 32, 3, 3),            # 3x3 /1, pad 0
        c3=_init_bn_conv(keys[2], 32, 64, 3, 3),            # 3x3 /1, pad 1
        c4=_init_bn_conv(keys[3], 64, 80, 1, 1),            # 1x1
        c5=_init_bn_conv(keys[4], 80, 192, 3, 3),           # 3x3 /1, pad 0
        c6=_init_bn_conv(keys[5], 192, 256, 3, 3),          # 3x3 /2, pad 0
    )


# ----------------------------------------------------------------------------
# Forward pass (Stem_Res1, inference)
# ----------------------------------------------------------------------------
def stem_res1_forward(params, x_nchw):
    x = jnp.transpose(x_nchw, (0, 2, 3, 1)).astype(jnp.float32)   # NCHW -> NHWC
    x = bn_conv(x, params["c1"], 3, 3, sh=2, sw=2)                # -> 32 ch
    x = bn_conv(x, params["c2"], 3, 3)                            # -> 32 ch
    x = bn_conv(x, params["c3"], 3, 3, ph=1, pw=1)                # -> 64 ch
    x = maxpool3x3_s2(x)                                          # 3x3 /2 maxpool
    x = bn_conv(x, params["c4"], 1, 1)                            # -> 80 ch
    x = bn_conv(x, params["c5"], 3, 3)                            # -> 192 ch
    x = bn_conv(x, params["c6"], 3, 3, sh=2, sw=2)                # -> 256 ch
    return jnp.transpose(x, (0, 3, 1, 2))                         # NHWC -> NCHW


# ----------------------------------------------------------------------------
if __name__ == "__main__":
    key = jax.random.PRNGKey(0)
    k_param, k_x = jax.random.split(key)

    # Stem_Res1's chain of valid (pad-0) strided 3x3 convs needs spatial >= 27;
    # 32 is the smallest "nice" size that runs the whole stem (output 1x1).
    batch, in_channels, spatial = 2, 4, 32
    params = build_params(k_param, in_channels)
    x = jax.random.normal(k_x, (batch, in_channels, spatial, spatial),
                          jnp.float32)

    fwd = jax.jit(stem_res1_forward)
    out = fwd(params, x)
    jax.block_until_ready(out)
    assert out.shape == (batch, 256, 1, 1), out.shape
    assert bool(jnp.all(jnp.isfinite(out)))
    print("KERNEL_OK")
</pallas_src>

<mosaic_0001>
module attributes {stable_mosaic.version = 11 : i64} {
  func.func @_mm_bias_act_kernel(%arg0: i32, %arg1: i32, %arg2: i32, %arg3: memref<256x128xbf16, #tpu.memory_space<vmem>>, %arg4: memref<128x128xbf16, #tpu.memory_space<vmem>>, %arg5: memref<1x128xf32, #tpu.memory_space<vmem>>, %arg6: memref<256x128xf32, #tpu.memory_space<vmem>>) attributes {dimension_semantics = [#tpu.dimension_semantics<parallel>, #tpu.dimension_semantics<parallel>, #tpu.dimension_semantics<arbitrary>], iteration_bounds = array<i64: 2, 1, 1>, scalar_prefetch = 0 : i64, scratch_operands = 0 : i64, tpu.core_type = #tpu.core_type<tc>, window_params = [{transform_indices = @transform_0, window_bounds = array<i64: 256, 128>}, {transform_indices = @transform_1, window_bounds = array<i64: 128, 128>}, {transform_indices = @transform_2, window_bounds = array<i64: 1, 128>}, {transform_indices = @transform_3, window_bounds = array<i64: 256, 128>}]} {
    %c0_i32 = arith.constant 0 : i32
    %0 = arith.cmpi eq, %arg2, %c0_i32 : i32
    %1 = arith.extui %0 : i1 to i32
    %c0_i32_0 = arith.constant 0 : i32
    %2 = arith.cmpi ne, %1, %c0_i32_0 : i32
    scf.if %2 {
      %cst_10 = arith.constant 0.000000e+00 : f32
      %12 = vector.broadcast %cst_10 : f32 to vector<256x128xf32>
      %c0_11 = arith.constant 0 : index
      %c0_12 = arith.constant 0 : index
      %13 = vector.load %arg6[%c0_11, %c0_12] : memref<256x128xf32, #tpu.memory_space<vmem>>, vector<256x128xf32>
      tpu.vector_store %arg6[%c0_11, %c0_12], %12 {strides = array<i32>} : memref<256x128xf32, #tpu.memory_space<vmem>>, vector<256x128xf32>,
    } else {
    }
    %c0 = arith.constant 0 : index
    %c0_1 = arith.constant 0 : index
    %3 = vector.load %arg6[%c0, %c0_1] : memref<256x128xf32, #tpu.memory_space<vmem>>, vector<256x128xf32>
    %c0_2 = arith.constant 0 : index
    %c0_3 = arith.constant 0 : index
    %4 = vector.load %arg3[%c0_2, %c0_3] : memref<256x128xbf16, #tpu.memory_space<vmem>>, vector<256x128xbf16>
    %c0_4 = arith.constant 0 : index
    %c0_5 = arith.constant 0 : index
    %5 = vector.load %arg4[%c0_4, %c0_5] : memref<128x128xbf16, #tpu.memory_space<vmem>>, vector<128x128xbf16>
    %cst = arith.constant dense<0.000000e+00> : vector<256x128xf32>
    %6 = tpu.matmul %4, %5, %cst {dimension_numbers = #tpu.dot_dimension_numbers<[1], [0], [0], [1], [0, 0, 1, 1], [], []>} : vector<256x128xbf16>, vector<128x128xbf16>, vector<256x128xf32> -> vector<256x128xf32>
    %7 = arith.addf %3, %6 : vector<256x128xf32>
    %c0_6 = arith.constant 0 : index
    %c0_7 = arith.constant 0 : index
    %8 = vector.load %arg6[%c0_6, %c0_7] : memref<256x128xf32, #tpu.memory_space<vmem>>, vector<256x128xf32>
    tpu.vector_store %arg6[%c0_6, %c0_7], %7 {strides = array<i32>} : memref<256x128xf32, #tpu.memory_space<vmem>>, vector<256x128xf32>,
    %c0_i32_8 = arith.constant 0 : i32
    %9 = arith.cmpi eq, %arg2, %c0_i32_8 : i32
    %10 = arith.extui %9 : i1 to i32
    %c0_i32_9 = arith.constant 0 : i32
    %11 = arith.cmpi ne, %10, %c0_i32_9 : i32
    scf.if %11 {
      %c0_10 = arith.constant 0 : index
      %c0_11 = arith.constant 0 : index
      %12 = vector.load %arg6[%c0_10, %c0_11] : memref<256x128xf32, #tpu.memory_space<vmem>>, vector<256x128xf32>
      %c0_12 = arith.constant 0 : index
      %c0_13 = arith.constant 0 : index
      %13 = vector.load %arg5[%c0_12, %c0_13] : memref<1x128xf32, #tpu.memory_space<vmem>>, vector<1x128xf32>
      %14 = vector.broadcast %13 : vector<1x128xf32> to vector<256x128xf32>
      %15 = arith.addf %12, %14 : vector<256x128xf32>
      %cst_14 = arith.constant 0.000000e+00 : f32
      %16 = vector.broadcast %cst_14 : f32 to vector<256x128xf32>
      %17 = arith.maximumf %15, %16 : vector<256x128xf32>
      %c0_15 = arith.constant 0 : index
      %c0_16 = arith.constant 0 : index
      %18 = vector.load %arg6[%c0_15, %c0_16] : memref<256x128xf32, #tpu.memory_space<vmem>>, vector<256x128xf32>
      tpu.vector_store %arg6[%c0_15, %c0_16], %17 {strides = array<i32>} : memref<256x128xf32, #tpu.memory_space<vmem>>, vector<256x128xf32>,
    } else {
    }
    return
  }
  func.func @transform_0(%arg0: i32, %arg1: i32, %arg2: i32) -> (i32, i32) {
    %c0_i32 = arith.constant 0 : i32
    return %arg0, %arg2 : i32, i32
  }
  func.func @transform_1(%arg0: i32, %arg1: i32, %arg2: i32) -> (i32, i32) {
    %c0_i32 = arith.constant 0 : i32
    return %arg2, %arg1 : i32, i32
  }
  func.func @transform_2(%arg0: i32, %arg1: i32, %arg2: i32) -> (i32, i32) {
    %c0_i32 = arith.constant 0 : i32
    %c0_i32_0 = arith.constant 0 : i32
    return %c0_i32, %arg1 : i32, i32
  }
  func.func @transform_3(%arg0: i32, %arg1: i32, %arg2: i32) -> (i32, i32) {
    %c0_i32 = arith.constant 0 : i32
    return %arg0, %arg1 : i32, i32
  }
}

module attributes {stable_mosaic.version = 11 : i64} {
  func.func @_mm_bias_act_kernel(%arg0: i32, %arg1: i32, %arg2: i32, %arg3: memref<256x384xbf16, #tpu.memory_space<vmem>>, %arg4: memref<384x128xbf16, #tpu.memory_space<vmem>>, %arg5: memref<1x128xf32, #tpu.memory_space<vmem>>, %arg6: memref<256x128xf32, #tpu.memory_space<vmem>>) attributes {dimension_semantics = [#tpu.dimension_semantics<parallel>, #tpu.dimension_semantics<parallel>, #tpu.dimension_semantics<arbitrary>], iteration_bounds = array<i64: 2, 1, 1>, scalar_prefetch = 0 : i64, scratch_operands = 0 : i64, tpu.core_type = #tpu.core_type<tc>, window_params = [{transform_indices = @transform_0, window_bounds = array<i64: 256, 384>}, {transform_indices = @transform_1, window_bounds = array<i64: 384, 128>}, {transform_indices = @transform_2, window_bounds = array<i64: 1, 128>}, {transform_indices = @transform_3, window_bounds = array<i64: 256, 128>}]} {
    %c0_i32 = arith.constant 0 : i32
    %0 = arith.cmpi eq, %arg2, %c0_i32 : i32
    %1 = arith.extui %0 : i1 to i32
    %c0_i32_0 = arith.constant 0 : i32
    %2 = arith.cmpi ne, %1, %c0_i32_0 : i32
    scf.if %2 {
      %cst_10 = arith.constant 0.000000e+00 : f32
      %12 = vector.broadcast %cst_10 : f32 to vector<256x128xf32>
      %c0_11 = arith.constant 0 : index
      %c0_12 = arith.constant 0 : index
      %13 = vector.load %arg6[%c0_11, %c0_12] : memref<256x128xf32, #tpu.memory_space<vmem>>, vector<256x128xf32>
      tpu.vector_store %arg6[%c0_11, %c0_12], %12 {strides = array<i32>} : memref<256x128xf32, #tpu.memory_space<vmem>>, vector<256x128xf32>,
    } else {
    }
    %c0 = arith.constant 0 : index
    %c0_1 = arith.constant 0 : index
    %3 = vector.load %arg6[%c0, %c0_1] : memref<256x128xf32, #tpu.memory_space<vmem>>, vector<256x128xf32>
    %c0_2 = arith.constant 0 : index
    %c0_3 = arith.constant 0 : index
    %4 = vector.load %arg3[%c0_2, %c0_3] : memref<256x384xbf16, #tpu.memory_space<vmem>>, vector<256x384xbf16>
    %c0_4 = arith.constant 0 : index
    %c0_5 = arith.constant 0 : index
    %5 = vector.load %arg4[%c0_4, %c0_5] : memref<384x128xbf16, #tpu.memory_space<vmem>>, vector<384x128xbf16>
    %cst = arith.constant dense<0.000000e+00> : vector<256x128xf32>
    %6 = tpu.matmul %4, %5, %cst {dimension_numbers = #tpu.dot_dimension_numbers<[1], [0], [0], [1], [0, 0, 1, 1], [], []>} : vector<256x384xbf16>, vector<384x128xbf16>, vector<256x128xf32> -> vector<256x128xf32>
    %7 = arith.addf %3, %6 : vector<256x128xf32>
    %c0_6 = arith.constant 0 : index
    %c0_7 = arith.constant 0 : index
    %8 = vector.load %arg6[%c0_6, %c0_7] : memref<256x128xf32, #tpu.memory_space<vmem>>, vector<256x128xf32>
    tpu.vector_store %arg6[%c0_6, %c0_7], %7 {strides = array<i32>} : memref<256x128xf32, #tpu.memory_space<vmem>>, vector<256x128xf32>,
    %c0_i32_8 = arith.constant 0 : i32
    %9 = arith.cmpi eq, %arg2, %c0_i32_8 : i32
    %10 = arith.extui %9 : i1 to i32
    %c0_i32_9 = arith.constant 0 : i32
    %11 = arith.cmpi ne, %10, %c0_i32_9 : i32
    scf.if %11 {
      %c0_10 = arith.constant 0 : index
      %c0_11 = arith.constant 0 : index
      %12 = vector.load %arg6[%c0_10, %c0_11] : memref<256x128xf32, #tpu.memory_space<vmem>>, vector<256x128xf32>
      %c0_12 = arith.constant 0 : index
      %c0_13 = arith.constant 0 : index
      %13 = vector.load %arg5[%c0_12, %c0_13] : memref<1x128xf32, #tpu.memory_space<vmem>>, vector<1x128xf32>
      %14 = vector.broadcast %13 : vector<1x128xf32> to vector<256x128xf32>
      %15 = arith.addf %12, %14 : vector<256x128xf32>
      %cst_14 = arith.constant 0.000000e+00 : f32
      %16 = vector.broadcast %cst_14 : f32 to vector<256x128xf32>
      %17 = arith.maximumf %15, %16 : vector<256x128xf32>
      %c0_15 = arith.constant 0 : index
      %c0_16 = arith.constant 0 : index
      %18 = vector.load %arg6[%c0_15, %c0_16] : memref<256x128xf32, #tpu.memory_space<vmem>>, vector<256x128xf32>
      tpu.vector_store %arg6[%c0_15, %c0_16], %17 {strides = array<i32>} : memref<256x128xf32, #tpu.memory_space<vmem>>, vector<256x128xf32>,
    } else {
    }
    return
  }
  func.func @transform_0(%arg0: i32, %arg1: i32, %arg2: i32) -> (i32, i32) {
    %c0_i32 = arith.constant 0 : i32
    return %arg0, %arg2 : i32, i32
  }
  func.func @transform_1(%arg0: i32, %arg1: i32, %arg2: i32) -> (i32, i32) {
    %c0_i32 = arith.constant 0 : i32
    return %arg2, %arg1 : i32, i32
  }
  func.func @transform_2(%arg0: i32, %arg1: i32, %arg2: i32) -> (i32, i32) {
    %c0_i32 = arith.constant 0 : i32
    %c0_i32_0 = arith.constant 0 : i32
    return %c0_i32, %arg1 : i32, i32
  }
  func.func @transform_3(%arg0: i32, %arg1: i32, %arg2: i32) -> (i32, i32) {
    %c0_i32 = arith.constant 0 : i32
    return %arg0, %arg1 : i32, i32
  }
}

module attributes {stable_mosaic.version = 11 : i64} {
  func.func @_maxpool_kernel(%arg0: i32, %arg1: memref<9x72x128xf32, #tpu.memory_space<vmem>>, %arg2: memref<72x128xf32, #tpu.memory_space<vmem>>) attributes {dimension_semantics = [#tpu.dimension_semantics<parallel>], iteration_bounds = array<i64: 1>, scalar_prefetch = 0 : i64, scratch_operands = 0 : i64, tpu.core_type = #tpu.core_type<tc>, window_params = [{transform_indices = @transform_0, window_bounds = array<i64: 9, 72, 128>}, {transform_indices = @transform_1, window_bounds = array<i64: 72, 128>}]} {
    %c0 = arith.constant 0 : index
    %c0_0 = arith.constant 0 : index
    %c0_1 = arith.constant 0 : index
    %0 = vector.load %arg1[%c0, %c0_0, %c0_1] : memref<9x72x128xf32, #tpu.memory_space<vmem>>, vector<1x72x128xf32>
    %1 = vector.shape_cast %0 : vector<1x72x128xf32> to vector<72x128xf32>
    %c1 = arith.constant 1 : index
    %c0_2 = arith.constant 0 : index
    %c0_3 = arith.constant 0 : index
    %2 = vector.load %arg1[%c1, %c0_2, %c0_3] : memref<9x72x128xf32, #tpu.memory_space<vmem>>, vector<1x72x128xf32>
    %3 = vector.shape_cast %2 : vector<1x72x128xf32> to vector<72x128xf32>
    %4 = arith.maximumf %1, %3 : vector<72x128xf32>
    %c2 = arith.constant 2 : index
    %c0_4 = arith.constant 0 : index
    %c0_5 = arith.constant 0 : index
    %5 = vector.load %arg1[%c2, %c0_4, %c0_5] : memref<9x72x128xf32, #tpu.memory_space<vmem>>, vector<1x72x128xf32>
    %6 = vector.shape_cast %5 : vector<1x72x128xf32> to vector<72x128xf32>
    %7 = arith.maximumf %4, %6 : vector<72x128xf32>
    %c3 = arith.constant 3 : index
    %c0_6 = arith.constant 0 : index
    %c0_7 = arith.constant 0 : index
    %8 = vector.load %arg1[%c3, %c0_6, %c0_7] : memref<9x72x128xf32, #tpu.memory_space<vmem>>, vector<1x72x128xf32>
    %9 = vector.shape_cast %8 : vector<1x72x128xf32> to vector<72x128xf32>
    %10 = arith.maximumf %7, %9 : vector<72x128xf32>
    %c4 = arith.constant 4 : index
    %c0_8 = arith.constant 0 : index
    %c0_9 = arith.constant 0 : index
    %11 = vector.load %arg1[%c4, %c0_8, %c0_9] : memref<9x72x128xf32, #tpu.memory_space<vmem>>, vector<1x72x128xf32>
    %12 = vector.shape_cast %11 : vector<1x72x128xf32> to vector<72x128xf32>
    %13 = arith.maximumf %10, %12 : vector<72x128xf32>
    %c5 = arith.constant 5 : index
    %c0_10 = arith.constant 0 : index
    %c0_11 = arith.constant 0 : index
    %14 = vector.load %arg1[%c5, %c0_10, %c0_11] : memref<9x72x128xf32, #tpu.memory_space<vmem>>, vector<1x72x128xf32>
    %15 = vector.shape_cast %14 : vector<1x72x128xf32> to vector<72x128xf32>
    %16 = arith.maximumf %13, %15 : vector<72x128xf32>
    %c6 = arith.constant 6 : index
    %c0_12 = arith.constant 0 : index
    %c0_13 = arith.constant 0 : index
    %17 = vector.load %arg1[%c6, %c0_12, %c0_13] : memref<9x72x128xf32, #tpu.memory_space<vmem>>, vector<1x72x128xf32>
    %18 = vector.shape_cast %17 : vector<1x72x128xf32> to vector<72x128xf32>
    %19 = arith.maximumf %16, %18 : vector<72x128xf32>
    %c7 = arith.constant 7 : index
    %c0_14 = arith.constant 0 : index
    %c0_15 = arith.constant 0 : index
    %20 = vector.load %arg1[%c7, %c0_14, %c0_15] : memref<9x72x128xf32, #tpu.memory_space<vmem>>, vector<1x72x128xf32>
    %21 = vector.shape_cast %20 : vector<1x72x128xf32> to vector<72x128xf32>
    %22 = arith.maximumf %19, %21 : vector<72x128xf32>
    %c8 = arith.constant 8 : index
    %c0_16 = arith.constant 0 : index
    %c0_17 = arith.constant 0 : index
    %23 = vector.load %arg1[%c8, %c0_16, %c0_17] : memref<9x72x128xf32, #tpu.memory_space<vmem>>, vector<1x72x128xf32>
    %24 = vector.shape_cast %23 : vector<1x72x128xf32> to vector<72x128xf32>
    %25 = arith.maximumf %22, %24 : vector<72x128xf32>
    %c0_18 = arith.constant 0 : index
    %c0_19 = arith.constant 0 : index
    %26 = vector.load %arg2[%c0_18, %c0_19] : memref<72x128xf32, #tpu.memory_space<vmem>>, vector<72x128xf32>
    tpu.vector_store %arg2[%c0_18, %c0_19], %25 {strides = array<i32>} : memref<72x128xf32, #tpu.memory_space<vmem>>, vector<72x128xf32>,
    return
  }
  func.func @transform_0(%arg0: i32) -> (i32, i32, i32) {
    %c0_i32 = arith.constant 0 : i32
    %c0_i32_0 = arith.constant 0 : i32
    %c0_i32_1 = arith.constant 0 : i32
    return %c0_i32, %arg0, %c0_i32_0 : i32, i32, i32
  }
  func.func @transform_1(%arg0: i32) -> (i32, i32) {
    %c0_i32 = arith.constant 0 : i32
    %c0_i32_0 = arith.constant 0 : i32
    return %arg0, %c0_i32 : i32, i32
  }
}

module attributes {stable_mosaic.version = 11 : i64} {
  func.func @_mm_bias_act_kernel(%arg0: i32, %arg1: i32, %arg2: i32, %arg3: memref<80x128xbf16, #tpu.memory_space<vmem>>, %arg4: memref<128x128xbf16, #tpu.memory_space<vmem>>, %arg5: memref<1x128xf32, #tpu.memory_space<vmem>>, %arg6: memref<80x128xf32, #tpu.memory_space<vmem>>) attributes {dimension_semantics = [#tpu.dimension_semantics<parallel>, #tpu.dimension_semantics<parallel>, #tpu.dimension_semantics<arbitrary>], iteration_bounds = array<i64: 1, 1, 1>, scalar_prefetch = 0 : i64, scratch_operands = 0 : i64, tpu.core_type = #tpu.core_type<tc>, window_params = [{transform_indices = @transform_0, window_bounds = array<i64: 80, 128>}, {transform_indices = @transform_1, window_bounds = array<i64: 128, 128>}, {transform_indices = @transform_2, window_bounds = array<i64: 1, 128>}, {transform_indices = @transform_3, window_bounds = array<i64: 80, 128>}]} {
    %c0_i32 = arith.constant 0 : i32
    %0 = arith.cmpi eq, %arg2, %c0_i32 : i32
    %1 = arith.extui %0 : i1 to i32
    %c0_i32_0 = arith.constant 0 : i32
    %2 = arith.cmpi ne, %1, %c0_i32_0 : i32
    scf.if %2 {
      %cst_10 = arith.constant 0.000000e+00 : f32
      %12 = vector.broadcast %cst_10 : f32 to vector<80x128xf32>
      %c0_11 = arith.constant 0 : index
      %c0_12 = arith.constant 0 : index
      %13 = vector.load %arg6[%c0_11, %c0_12] : memref<80x128xf32, #tpu.memory_space<vmem>>, vector<80x128xf32>
      tpu.vector_store %arg6[%c0_11, %c0_12], %12 {strides = array<i32>} : memref<80x128xf32, #tpu.memory_space<vmem>>, vector<80x128xf32>,
    } else {
    }
    %c0 = arith.constant 0 : index
    %c0_1 = arith.constant 0 : index
    %3 = vector.load %arg6[%c0, %c0_1] : memref<80x128xf32, #tpu.memory_space<vmem>>, vector<80x128xf32>
    %c0_2 = arith.constant 0 : index
    %c0_3 = arith.constant 0 : index
    %4 = vector.load %arg3[%c0_2, %c0_3] : memref<80x128xbf16, #tpu.memory_space<vmem>>, vector<80x128xbf16>
    %c0_4 = arith.constant 0 : index
    %c0_5 = arith.constant 0 : index
    %5 = vector.load %arg4[%c0_4, %c0_5] : memref<128x128xbf16, #tpu.memory_space<vmem>>, vector<128x128xbf16>
    %cst = arith.constant dense<0.000000e+00> : vector<80x128xf32>
    %6 = tpu.matmul %4, %5, %cst {dimension_numbers = #tpu.dot_dimension_numbers<[1], [0], [0], [1], [0, 0, 1, 1], [], []>} : vector<80x128xbf16>, vector<128x128xbf16>, vector<80x128xf32> -> vector<80x128xf32>
    %7 = arith.addf %3, %6 : vector<80x128xf32>
    %c0_6 = arith.constant 0 : index
    %c0_7 = arith.constant 0 : index
    %8 = vector.load %arg6[%c0_6, %c0_7] : memref<80x128xf32, #tpu.memory_space<vmem>>, vector<80x128xf32>
    tpu.vector_store %arg6[%c0_6, %c0_7], %7 {strides = array<i32>} : memref<80x128xf32, #tpu.memory_space<vmem>>, vector<80x128xf32>,
    %c0_i32_8 = arith.constant 0 : i32
    %9 = arith.cmpi eq, %arg2, %c0_i32_8 : i32
    %10 = arith.extui %9 : i1 to i32
    %c0_i32_9 = arith.constant 0 : i32
    %11 = arith.cmpi ne, %10, %c0_i32_9 : i32
    scf.if %11 {
      %c0_10 = arith.constant 0 : index
      %c0_11 = arith.constant 0 : index
      %12 = vector.load %arg6[%c0_10, %c0_11] : memref<80x128xf32, #tpu.memory_space<vmem>>, vector<80x128xf32>
      %c0_12 = arith.constant 0 : index
      %c0_13 = arith.constant 0 : index
      %13 = vector.load %arg5[%c0_12, %c0_13] : memref<1x128xf32, #tpu.memory_space<vmem>>, vector<1x128xf32>
      %14 = vector.broadcast %13 : vector<1x128xf32> to vector<80x128xf32>
      %15 = arith.addf %12, %14 : vector<80x128xf32>
      %cst_14 = arith.constant 0.000000e+00 : f32
      %16 = vector.broadcast %cst_14 : f32 to vector<80x128xf32>
      %17 = arith.maximumf %15, %16 : vector<80x128xf32>
      %c0_15 = arith.constant 0 : index
      %c0_16 = arith.constant 0 : index
      %18 = vector.load %arg6[%c0_15, %c0_16] : memref<80x128xf32, #tpu.memory_space<vmem>>, vector<80x128xf32>
      tpu.vector_store %arg6[%c0_15, %c0_16], %17 {strides = array<i32>} : memref<80x128xf32, #tpu.memory_space<vmem>>, vector<80x128xf32>,
    } else {
    }
    return
  }
  func.func @transform_0(%arg0: i32, %arg1: i32, %arg2: i32) -> (i32, i32) {
    %c0_i32 = arith.constant 0 : i32
    return %arg0, %arg2 : i32, i32
  }
  func.func @transform_1(%arg0: i32, %arg1: i32, %arg2: i32) -> (i32, i32) {
    %c0_i32 = arith.constant 0 : i32
    return %arg2, %arg1 : i32, i32
  }
  func.func @transform_2(%arg0: i32, %arg1: i32, %arg2: i32) -> (i32, i32) {
    %c0_i32 = arith.constant 0 : i32
    %c0_i32_0 = arith.constant 0 : i32
    return %c0_i32, %arg1 : i32, i32
  }
  func.func @transform_3(%arg0: i32, %arg1: i32, %arg2: i32) -> (i32, i32) {
    %c0_i32 = arith.constant 0 : i32
    return %arg0, %arg1 : i32, i32
  }
}

module attributes {stable_mosaic.version = 11 : i64} {
  func.func @_mm_bias_act_kernel(%arg0: i32, %arg1: i32, %arg2: i32, %arg3: memref<32x768xbf16, #tpu.memory_space<vmem>>, %arg4: memref<768x256xbf16, #tpu.memory_space<vmem>>, %arg5: memref<1x256xf32, #tpu.memory_space<vmem>>, %arg6: memref<32x256xf32, #tpu.memory_space<vmem>>) attributes {dimension_semantics = [#tpu.dimension_semantics<parallel>, #tpu.dimension_semantics<parallel>, #tpu.dimension_semantics<arbitrary>], iteration_bounds = array<i64: 1, 1, 1>, scalar_prefetch = 0 : i64, scratch_operands = 0 : i64, tpu.core_type = #tpu.core_type<tc>, window_params = [{transform_indices = @transform_0, window_bounds = array<i64: 32, 768>}, {transform_indices = @transform_1, window_bounds = array<i64: 768, 256>}, {transform_indices = @transform_2, window_bounds = array<i64: 1, 256>}, {transform_indices = @transform_3, window_bounds = array<i64: 32, 256>}]} {
    %c0_i32 = arith.constant 0 : i32
    %0 = arith.cmpi eq, %arg2, %c0_i32 : i32
    %1 = arith.extui %0 : i1 to i32
    %c0_i32_0 = arith.constant 0 : i32
    %2 = arith.cmpi ne, %1, %c0_i32_0 : i32
    scf.if %2 {
      %cst_10 = arith.constant 0.000000e+00 : f32
      %12 = vector.broadcast %cst_10 : f32 to vector<32x256xf32>
      %c0_11 = arith.constant 0 : index
      %c0_12 = arith.constant 0 : index
      %13 = vector.load %arg6[%c0_11, %c0_12] : memref<32x256xf32, #tpu.memory_space<vmem>>, vector<32x256xf32>
      tpu.vector_store %arg6[%c0_11, %c0_12], %12 {strides = array<i32>} : memref<32x256xf32, #tpu.memory_space<vmem>>, vector<32x256xf32>,
    } else {
    }
    %c0 = arith.constant 0 : index
    %c0_1 = arith.constant 0 : index
    %3 = vector.load %arg6[%c0, %c0_1] : memref<32x256xf32, #tpu.memory_space<vmem>>, vector<32x256xf32>
    %c0_2 = arith.constant 0 : index
    %c0_3 = arith.constant 0 : index
    %4 = vector.load %arg3[%c0_2, %c0_3] : memref<32x768xbf16, #tpu.memory_space<vmem>>, vector<32x768xbf16>
    %c0_4 = arith.constant 0 : index
    %c0_5 = arith.constant 0 : index
    %5 = vector.load %arg4[%c0_4, %c0_5] : memref<768x256xbf16, #tpu.memory_space<vmem>>, vector<768x256xbf16>
    %cst = arith.constant dense<0.000000e+00> : vector<32x256xf32>
    %6 = tpu.matmul %4, %5, %cst {dimension_numbers = #tpu.dot_dimension_numbers<[1], [0], [0], [1], [0, 0, 1, 1], [], []>} : vector<32x768xbf16>, vector<768x256xbf16>, vector<32x256xf32> -> vector<32x256xf32>
    %7 = arith.addf %3, %6 : vector<32x256xf32>
    %c0_6 = arith.constant 0 : index
    %c0_7 = arith.constant 0 : index
    %8 = vector.load %arg6[%c0_6, %c0_7] : memref<32x256xf32, #tpu.memory_space<vmem>>, vector<32x256xf32>
    tpu.vector_store %arg6[%c0_6, %c0_7], %7 {strides = array<i32>} : memref<32x256xf32, #tpu.memory_space<vmem>>, vector<32x256xf32>,
    %c0_i32_8 = arith.constant 0 : i32
    %9 = arith.cmpi eq, %arg2, %c0_i32_8 : i32
    %10 = arith.extui %9 : i1 to i32
    %c0_i32_9 = arith.constant 0 : i32
    %11 = arith.cmpi ne, %10, %c0_i32_9 : i32
    scf.if %11 {
      %c0_10 = arith.constant 0 : index
      %c0_11 = arith.constant 0 : index
      %12 = vector.load %arg6[%c0_10, %c0_11] : memref<32x256xf32, #tpu.memory_space<vmem>>, vector<32x256xf32>
      %c0_12 = arith.constant 0 : index
      %c0_13 = arith.constant 0 : index
      %13 = vector.load %arg5[%c0_12, %c0_13] : memref<1x256xf32, #tpu.memory_space<vmem>>, vector<1x256xf32>
      %14 = vector.broadcast %13 : vector<1x256xf32> to vector<32x256xf32>
      %15 = arith.addf %12, %14 : vector<32x256xf32>
      %cst_14 = arith.constant 0.000000e+00 : f32
      %16 = vector.broadcast %cst_14 : f32 to vector<32x256xf32>
      %17 = arith.maximumf %15, %16 : vector<32x256xf32>
      %c0_15 = arith.constant 0 : index
      %c0_16 = arith.constant 0 : index
      %18 = vector.load %arg6[%c0_15, %c0_16] : memref<32x256xf32, #tpu.memory_space<vmem>>, vector<32x256xf32>
      tpu.vector_store %arg6[%c0_15, %c0_16], %17 {strides = array<i32>} : memref<32x256xf32, #tpu.memory_space<vmem>>, vector<32x256xf32>,
    } else {
    }
    return
  }
  func.func @transform_0(%arg0: i32, %arg1: i32, %arg2: i32) -> (i32, i32) {
    %c0_i32 = arith.constant 0 : i32
    return %arg0, %arg2 : i32, i32
  }
  func.func @transform_1(%arg0: i32, %arg1: i32, %arg2: i32) -> (i32, i32) {
    %c0_i32 = arith.constant 0 : i32
    return %arg2, %arg1 : i32, i32
  }
  func.func @transform_2(%arg0: i32, %arg1: i32, %arg2: i32) -> (i32, i32) {
    %c0_i32 = arith.constant 0 : i32
    %c0_i32_0 = arith.constant 0 : i32
    return %c0_i32, %arg1 : i32, i32
  }
  func.func @transform_3(%arg0: i32, %arg1: i32, %arg2: i32) -> (i32, i32) {
    %c0_i32 = arith.constant 0 : i32
    return %arg0, %arg1 : i32, i32
  }
}

module attributes {stable_mosaic.version = 11 : i64} {
  func.func @_mm_bias_act_kernel(%arg0: i32, %arg1: i32, %arg2: i32, %arg3: memref<16x1024xbf16, #tpu.memory_space<vmem>>, %arg4: memref<1024x256xbf16, #tpu.memory_space<vmem>>, %arg5: memref<1x256xf32, #tpu.memory_space<vmem>>, %arg6: memref<16x256xf32, #tpu.memory_space<vmem>>) attributes {dimension_semantics = [#tpu.dimension_semantics<parallel>, #tpu.dimension_semantics<parallel>, #tpu.dimension_semantics<arbitrary>], iteration_bounds = array<i64: 1, 1, 2>, scalar_prefetch = 0 : i64, scratch_operands = 0 : i64, tpu.core_type = #tpu.core_type<tc>, window_params = [{transform_indices = @transform_0, window_bounds = array<i64: 16, 1024>}, {transform_indices = @transform_1, window_bounds = array<i64: 1024, 256>}, {transform_indices = @transform_2, window_bounds = array<i64: 1, 256>}, {transform_indices = @transform_3, window_bounds = array<i64: 16, 256>}]} {
    %c0_i32 = arith.constant 0 : i32
    %0 = arith.cmpi eq, %arg2, %c0_i32 : i32
    %1 = arith.extui %0 : i1 to i32
    %c0_i32_0 = arith.constant 0 : i32
    %2 = arith.cmpi ne, %1, %c0_i32_0 : i32
    scf.if %2 {
      %cst_9 = arith.constant 0.000000e+00 : f32
      %12 = vector.broadcast %cst_9 : f32 to vector<16x256xf32>
      %c0_10 = arith.constant 0 : index
      %c0_11 = arith.constant 0 : index
      %13 = vector.load %arg6[%c0_10, %c0_11] : memref<16x256xf32, #tpu.memory_space<vmem>>, vector<16x256xf32>
      tpu.vector_store %arg6[%c0_10, %c0_11], %12 {strides = array<i32>} : memref<16x256xf32, #tpu.memory_space<vmem>>, vector<16x256xf32>,
    } else {
    }
    %c0 = arith.constant 0 : index
    %c0_1 = arith.constant 0 : index
    %3 = vector.load %arg6[%c0, %c0_1] : memref<16x256xf32, #tpu.memory_space<vmem>>, vector<16x256xf32>
    %c0_2 = arith.constant 0 : index
    %c0_3 = arith.constant 0 : index
    %4 = vector.load %arg3[%c0_2, %c0_3] : memref<16x1024xbf16, #tpu.memory_space<vmem>>, vector<16x1024xbf16>
    %c0_4 = arith.constant 0 : index
    %c0_5 = arith.constant 0 : index
    %5 = vector.load %arg4[%c0_4, %c0_5] : memref<1024x256xbf16, #tpu.memory_space<vmem>>, vector<1024x256xbf16>
    %cst = arith.constant dense<0.000000e+00> : vector<16x256xf32>
    %6 = tpu.matmul %4, %5, %cst {dimension_numbers = #tpu.dot_dimension_numbers<[1], [0], [0], [1], [0, 0, 1, 1], [], []>} : vector<16x1024xbf16>, vector<1024x256xbf16>, vector<16x256xf32> -> vector<16x256xf32>
    %7 = arith.addf %3, %6 : vector<16x256xf32>
    %c0_6 = arith.constant 0 : index
    %c0_7 = arith.constant 0 : index
    %8 = vector.load %arg6[%c0_6, %c0_7] : memref<16x256xf32, #tpu.memory_space<vmem>>, vector<16x256xf32>
    tpu.vector_store %arg6[%c0_6, %c0_7], %7 {strides = array<i32>} : memref<16x256xf32, #tpu.memory_space<vmem>>, vector<16x256xf32>,
    %c1_i32 = arith.constant 1 : i32
    %9 = arith.cmpi eq, %arg2, %c1_i32 : i32
    %10 = arith.extui %9 : i1 to i32
    %c0_i32_8 = arith.constant 0 : i32
    %11 = arith.cmpi ne, %10, %c0_i32_8 : i32
    scf.if %11 {
      %c0_9 = arith.constant 0 : index
      %c0_10 = arith.constant 0 : index
      %12 = vector.load %arg6[%c0_9, %c0_10] : memref<16x256xf32, #tpu.memory_space<vmem>>, vector<16x256xf32>
      %c0_11 = arith.constant 0 : index
      %c0_12 = arith.constant 0 : index
      %13 = vector.load %arg5[%c0_11, %c0_12] : memref<1x256xf32, #tpu.memory_space<vmem>>, vector<1x256xf32>
      %14 = vector.broadcast %13 : vector<1x256xf32> to vector<16x256xf32>
      %15 = arith.addf %12, %14 : vector<16x256xf32>
      %cst_13 = arith.constant 0.000000e+00 : f32
      %16 = vector.broadcast %cst_13 : f32 to vector<16x256xf32>
      %17 = arith.maximumf %15, %16 : vector<16x256xf32>
      %c0_14 = arith.constant 0 : index
      %c0_15 = arith.constant 0 : index
      %18 = vector.load %arg6[%c0_14, %c0_15] : memref<16x256xf32, #tpu.memory_space<vmem>>, vector<16x256xf32>
      tpu.vector_store %arg6[%c0_14, %c0_15], %17 {strides = array<i32>} : memref<16x256xf32, #tpu.memory_space<vmem>>, vector<16x256xf32>,
    } else {
    }
    return
  }
  func.func @transform_0(%arg0: i32, %arg1: i32, %arg2: i32) -> (i32, i32) {
    %c0_i32 = arith.constant 0 : i32
    return %arg0, %arg2 : i32, i32
  }
  func.func @transform_1(%arg0: i32, %arg1: i32, %arg2: i32) -> (i32, i32) {
    %c0_i32 = arith.constant 0 : i32
    return %arg2, %arg1 : i32, i32
  }
  func.func @transform_2(%arg0: i32, %arg1: i32, %arg2: i32) -> (i32, i32) {
    %c0_i32 = arith.constant 0 : i32
    %c0_i32_0 = arith.constant 0 : i32
    return %c0_i32, %arg1 : i32, i32
  }
  func.func @transform_3(%arg0: i32, %arg1: i32, %arg2: i32) -> (i32, i32) {
    %c0_i32 = arith.constant 0 : i32
    return %arg0, %arg1 : i32, i32
  }
}

</mosaic_0001>

<llo_original>
// kernel: stem_res1_forward.7
$region0: #{stem_res1_forward.7}
  #allocation0 [shape = 'u32[]', space=smem, size = 0x4, offset = 0x4, fixed_abs, tag = 'smem constant byte address 0x4 - core index']
  #allocation1 [shape = 'u32[144,128]{1,0:T(1,128)}', space=vmem, size = 0x12000, scoped, tag = 'internal scratch']
  %s0 = inlined_call_operand.vmem [shape: bf16[512,128], index: 0, kind: input, shape index: {}]
  %s1 = inlined_call_operand.vmem [shape: bf16[128,128], index: 1, kind: input, shape index: {}]
  %s2 = inlined_call_operand.vmem [shape: f32[1,128], index: 2, kind: input, shape index: {}]
  %s3 = inlined_call_operand.vmem [shape: f32[512,128], index: 3, kind: output, shape index: {}]
  %s4 = sld [smem:[#allocation0]]
  $region53: #{stem_res1_forward.7} parent=0
    _
  %s6 = ssub.s32 1, %s4
  %s7 = scalar_select 0, %s6, %s4
  loop: start=0, step=1, limit=4
  $region2: #{stem_res1_forward.7} parent=0 // loop_pre_header
    _
  $region3: #{stem_res1_forward.7} parent=0 // loop_header
    %s9 = sphi 0, %s13
    %p10 = scmp.ge.s32.totalorder %s9, 4
    %s16 = sphi 0, %s35
    %s17 = sphi 0, %s31
    %s18 = sphi 0, %s27
    %s19 = sphi 0, %s16
    %s20 = sphi 0, %s17
    %s21 = sphi 0, %s18
    %s22 = sphi 0, %s19
    %s23 = sphi 0, %s20
    %s24 = sphi 0, %s21
    %s40 = sphi 0, %s42
    %s43 = sphi 0, %s40
    %s44 = sphi 0, %s43
    %s60 = sphi 0, %s44
    %s68 = sphi 0, %s70
    %s71 = sphi 0, %s68
    %s72 = sphi 0, %s71
    %s88 = sphi 0, %s72
    %s94 = sphi 0, %s96
    %s97 = sphi 0, %s94
    %s98 = sphi 0, %s97
    %s114 = sphi 0, %s98
    %s122 = sphi 0, %s124
    %s125 = sphi 0, %s122
    %s126 = sphi 0, %s125
    %s142 = sphi 0, %s126
  $region4: #{stem_res1_forward.7} parent=0 // loop_header_branch
    %12 = sbr.rel (%p10) target = $region8
  $region5: #{stem_res1_forward.7} parent=0 // loop_body
    %s14 = ssub.s32 %s9, 1
    %s15 = ssub.s32 %s9, 2
    %s25 = sadd.s32 1, %s18
    %p26 = scmp.ge.s32.totalorder %s25, 1
    %s27 = scalar_select %p26, 0, %s25
    %s28 = sadd.s32 1, %s17
    %s29 = scalar_select %p26, %s28, %s17
    %p30 = scmp.ge.s32.totalorder %s29, 1
    %s31 = scalar_select %p30, 0, %s29
    %s32 = sadd.s32 1, %s16
    %s33 = scalar_select %p30, %s32, %s16
    %p34 = scmp.ge.s32.totalorder %s33, 2
    %s35 = scalar_select %p34, 0, %s33
    %s36 = ssub.s32 %s16, %s35
    %s37 = ssub.s32 %s18, %s27
    %s38 = sor.u32 %s36, %s37
    %p39 = scmp.eq.s32.totalorder %s38, 0
    %s41 = sadd.s32 %s40, 1
    %s42 = scalar_select %p39, %s40, %s41
    %p45 = pneg %p39
    %p46 = scmp.eq.s32.totalorder %s9, 1
    %p47 = por %p45, %p46
    %p48 = scmp.ne.s32.totalorder %s40, %s43
    %p49 = scmp.eq.s32.totalorder %s9, 0
    %p50 = por %p48, %p49
    %p51 = scmp.ne.s32.totalorder %s40, %s43
    %p52 = scmp.eq.s32.totalorder %s14, 1
    %p53 = por %p51, %p52
    %p54 = scmp.ne.s32.totalorder %s43, %s44
    %p55 = scmp.eq.s32.totalorder %s14, 0
    %p56 = por %p54, %p55
    %p57 = scmp.ne.s32.totalorder %s43, %s44
    %p58 = scmp.eq.s32.totalorder %s15, 1
    %p59 = por %p57, %p58
    %p61 = scmp.ne.s32.totalorder %s44, %s60
    %p62 = scmp.eq.s32.totalorder %s15, 0
    %p63 = por %p61, %p62
    %s64 = ssub.s32 %s18, %s27
    %s65 = ssub.s32 %s17, %s31
    %s66 = sor.u32 %s64, %s65
    %p67 = scmp.eq.s32.totalorder %s66, 0
    %s69 = sadd.s32 %s68, 1
    %s70 = scalar_select %p67, %s68, %s69
    %p73 = pneg %p67
    %p74 = scmp.eq.s32.totalorder %s9, 1
    %p75 = por %p73, %p74
    %p76 = scmp.ne.s32.totalorder %s68, %s71
    %p77 = scmp.eq.s32.totalorder %s9, 0
    %p78 = por %p76, %p77
    %p79 = scmp.ne.s32.totalorder %s68, %s71
    %p80 = scmp.eq.s32.totalorder %s14, 1
    %p81 = por %p79, %p80
    %p82 = scmp.ne.s32.totalorder %s71, %s72
    %p83 = scmp.eq.s32.totalorder %s14, 0
    %p84 = por %p82, %p83
    %p85 = scmp.ne.s32.totalorder %s71, %s72
    %p86 = scmp.eq.s32.totalorder %s15, 1
    %p87 = por %p85, %p86
    %p89 = scmp.ne.s32.totalorder %s72, %s88
    %p90 = scmp.eq.s32.totalorder %s15, 0
    %p91 = por %p89, %p90
    %s92 = ssub.s32 %s17, %s31
    %p93 = scmp.eq.s32.totalorder %s92, 0
    %s95 = sadd.s32 %s94, 1
    %s96 = scalar_select %p93, %s94, %s95
    %p99 = pneg %p93
    %p100 = scmp.eq.s32.totalorder %s9, 1
    %p101 = por %p99, %p100
    %p102 = scmp.ne.s32.totalorder %s94, %s97
    %p103 = scmp.eq.s32.totalorder %s9, 0
    %p104 = por %p102, %p103
    %p105 = scmp.ne.s32.totalorder %s94, %s97
    %p106 = scmp.eq.s32.totalorder %s14, 1
    %p107 = por %p105, %p106
    %p108 = scmp.ne.s32.totalorder %s97, %s98
    %p109 = scmp.eq.s32.totalorder %s14, 0
    %p110 = por %p108, %p109
    %p111 = scmp.ne.s32.totalorder %s97, %s98
    %p112 = scmp.eq.s32.totalorder %s15, 1
    %p113 = por %p111, %p112
    %p115 = scmp.ne.s32.totalorder %s98, %s114
    %p116 = scmp.eq.s32.totalorder %s15, 0
    %p117 = por %p115, %p116
    %s118 = ssub.s32 %s16, %s35
    %s119 = ssub.s32 %s17, %s31
    %s120 = sor.u32 %s118, %s119
    %p121 = scmp.eq.s32.totalorder %s120, 0
    %s123 = sadd.s32 %s122, 1
    %s124 = scalar_select %p121, %s122, %s123
    %p127 = pneg %p121
    %p128 = scmp.eq.s32.totalorder %s9, 1
    %p129 = por %p127, %p128
    %p130 = scmp.ne.s32.totalorder %s122, %s125
    %p131 = scmp.eq.s32.totalorder %s9, 0
    %p132 = por %p130, %p131
    %p133 = scmp.ne.s32.totalorder %s122, %s125
    %p134 = scmp.eq.s32.totalorder %s14, 1
    %p135 = por %p133, %p134
    %p136 = scmp.ne.s32.totalorder %s125, %s126
    %p137 = scmp.eq.s32.totalorder %s14, 0
    %p138 = por %p136, %p137
    %p139 = scmp.ne.s32.totalorder %s125, %s126
    %p140 = scmp.eq.s32.totalorder %s15, 1
    %p141 = por %p139, %p140
    %p143 = scmp.ne.s32.totalorder %s126, %s142
    %p144 = scmp.eq.s32.totalorder %s15, 0
    %p145 = por %p143, %p144
    %p146 = scmp.le.s32.totalorder 1, %s9
    %p147 = scmp.lt.s32.totalorder %s9, 3
    %p148 = pnand %p146, %p147
    %p149 = pneg %p148
    // Predicated region
    $region9: #{stem_res1_forward.7} parent=5 // pred_check
      _
    $region10: #{stem_res1_forward.7} parent=5 // pred_check_branch
      %151 = sbr.rel (%p148) target = $region12
    $region11: #{stem_res1_forward.7} parent=5 // pred_region
      %s152 = ssub.s32 %s9, 1
      // Predicated region
      $region13: #{stem_res1_forward.7} parent=11 // pred_check
        %p153 = pneg %p84
      $region14: #{stem_res1_forward.7} parent=11 // pred_check_branch
        %155 = sbr.rel (%p153) target = $region16
      $region15: #{stem_res1_forward.7} parent=11 // pred_region
        %s156 = smul.u32 16, %s21
        %p157 = scmp.lt.s32.totalorder %s156, 15
        %s158 = scalar_select %p157, %s156, 15
        %p159 = scmp.lt.s32.totalorder %s20, 0
        %s160 = scalar_select %p159, %s20, 0
        %s161 = sadd.s32 %s160, %s158
        %s162 = smul.addr %s161, 4
        %s163 = scalar_lea.vmem %s1, %s162
        %s164 = smul.u32 16, %s21
      $region16: #{stem_res1_forward.7} parent=11 // pred_fallthru
        _
      // Predicated region
      $region17: #{stem_res1_forward.7} parent=11 // pred_check
        %p165 = pneg %p110
      $region18: #{stem_res1_forward.7} parent=11 // pred_check_branch
        %167 = sbr.rel (%p165) target = $region20
      $region19: #{stem_res1_forward.7} parent=11 // pred_region
        %p168 = scmp.lt.s32.totalorder %s20, 0
        %s169 = scalar_select %p168, %s20, 0
        %s170 = scalar_lea.vmem %s2, %s169
      $region20: #{stem_res1_forward.7} parent=11 // pred_fallthru
        _
    $region12: #{stem_res1_forward.7} parent=5 // pred_fallthru
      _
    %p171 = scmp.lt.s32.totalorder %s9, 2
    // Predicated region
    $region21: #{stem_res1_forward.7} parent=5 // pred_check
      %p172 = pneg %p171
    $region22: #{stem_res1_forward.7} parent=5 // pred_check_branch
      %174 = sbr.rel (%p172) target = $region24
    $region23: #{stem_res1_forward.7} parent=5 // pred_region
      // Predicated region
      $region25: #{stem_res1_forward.7} parent=23 // pred_check
        %p175 = pneg %p50
      $region26: #{stem_res1_forward.7} parent=23 // pred_check_branch
        %177 = sbr.rel (%p175) target = $region28
      $region27: #{stem_res1_forward.7} parent=23 // pred_region
        %s178 = smul.u32 32, %s16
        %p179 = scmp.lt.s32.totalorder %s178, 63
        %s180 = scalar_select %p179, %s178, 63
        %p181 = scmp.lt.s32.totalorder %s18, 0
        %s182 = scalar_select %p181, %s18, 0
        %s183 = sadd.s32 %s182, %s180
        %s184 = smul.addr %s183, 4
        %s185 = scalar_lea.vmem %s0, %s184
        %s186 = smul.u32 32, %s16
      $region28: #{stem_res1_forward.7} parent=23 // pred_fallthru
        _
    $region24: #{stem_res1_forward.7} parent=5 // pred_fallthru
      _
    %p187 = scmp.le.s32.totalorder 1, %s9
    %p188 = scmp.lt.s32.totalorder %s9, 3
    %p189 = pnand %p187, %p188
    %p190 = pneg %p189
    // Predicated region
    $region29: #{stem_res1_forward.7} parent=5 // pred_check
      _
    $region30: #{stem_res1_forward.7} parent=5 // pred_check_branch
      %192 = sbr.rel (%p189) target = $region32
    $region31: #{stem_res1_forward.7} parent=5 // pred_region
      %s193 = ssub.s32 %s9, 1
      %s194 = smul.u32 32, %s19
      %p195 = scmp.lt.s32.totalorder %s194, 63
      %s196 = scalar_select %p195, %s194, 63
      %p197 = scmp.lt.s32.totalorder %s21, 0
      %s198 = scalar_select %p197, %s21, 0
      %s199 = sadd.s32 %s198, %s196
      %s200 = smul.addr %s199, 4
      %s201 = scalar_lea.vmem %s0, %s200
      %p202 = pneg %p56
      %p203 = pneg %p53
      %s204 = smul.u32 16, %s21
      %p205 = scmp.lt.s32.totalorder %s204, 15
      %s206 = scalar_select %p205, %s204, 15
      %p207 = scmp.lt.s32.totalorder %s20, 0
      %s208 = scalar_select %p207, %s20, 0
      %s209 = sadd.s32 %s208, %s206
      %s210 = smul.addr %s209, 4
      %s211 = scalar_lea.vmem %s1, %s210
      %p212 = pneg %p84
      %p213 = pneg %p81
      %p214 = scmp.lt.s32.totalorder %s20, 0
      %s215 = scalar_select %p214, %s20, 0
      %s216 = scalar_lea.vmem %s2, %s215
      %p217 = pneg %p110
      %p218 = pneg %p107
      %p219 = pneg %p138
      %p220 = pneg %p135
      %s221 = smul.u32 32, %s19
      %p222 = scmp.lt.s32.totalorder %s221, 63
      %s223 = scalar_select %p222, %s221, 63
      %p224 = scmp.lt.s32.totalorder %s20, 0
      %s225 = scalar_select %p224, %s20, 0
      %s226 = sadd.s32 %s225, %s223
      %s227 = smul.addr %s226, 8
      %s228 = scalar_lea.vmem %s3, %s227
      %s229 = smul.u32 32, %s19
      %p230 = scmp.lt.s32.totalorder %s229, 63
      %s231 = scalar_select %p230, %s229, 63
      %p232 = scmp.lt.s32.totalorder %s21, 0
      %s233 = scalar_select %p232, %s21, 0
      %s234 = sadd.s32 %s233, %s231
      %s235 = smul.addr %s234, 4
      %s236 = scalar_lea.vmem %s0, %s235
      %s237 = smul.u32 32, %s19
      %s238 = smul.u32 16, %s21
      %p239 = scmp.lt.s32.totalorder %s238, 15
      %s240 = scalar_select %p239, %s238, 15
      %p241 = scmp.lt.s32.totalorder %s20, 0
      %s242 = scalar_select %p241, %s20, 0
      %s243 = sadd.s32 %s242, %s240
      %s244 = smul.addr %s243, 4
      %s245 = scalar_lea.vmem %s1, %s244
      %s246 = smul.u32 16, %s21
      %p247 = scmp.lt.s32.totalorder %s20, 0
      %s248 = scalar_select %p247, %s20, 0
      %s249 = scalar_lea.vmem %s2, %s248
      %s250 = smul.u32 32, %s19
      %p251 = scmp.lt.s32.totalorder %s250, 63
      %s252 = scalar_select %p251, %s250, 63
      %p253 = scmp.lt.s32.totalorder %s20, 0
      %s254 = scalar_select %p253, %s20, 0
      %s255 = sadd.s32 %s254, %s252
      %s256 = smul.addr %s255, 8
      %s257 = scalar_lea.vmem %s3, %s256
      %s258 = smul.u32 32, %s19
      %p260 = scmp.eq.s32.totalorder %s21, 0
      // Predicated region
      $region33: #{stem_res1_forward.7} parent=31 // pred_check
        %p261 = pneg %p260
      $region34: #{stem_res1_forward.7} parent=31 // pred_check_branch
        %263 = sbr.rel (%p261) target = $region36
      $region35: #{stem_res1_forward.7} parent=31 // pred_region
        %264 = vst [vmem:[%s257] sm:$0xff] 0.0
        %265 = vst [vmem:[%s257 + $0x8] sm:$0xff] 0.0
        %266 = vst [vmem:[%s257 + $0x10] sm:$0xff] 0.0
        %267 = vst [vmem:[%s257 + $0x18] sm:$0xff] 0.0
        %268 = vst [vmem:[%s257 + $0x20] sm:$0xff] 0.0
        %269 = vst [vmem:[%s257 + $0x28] sm:$0xff] 0.0
        %270 = vst [vmem:[%s257 + $0x30] sm:$0xff] 0.0
        %271 = vst [vmem:[%s257 + $0x38] sm:$0xff] 0.0
        %272 = vst [vmem:[%s257 + $0x40] sm:$0xff] 0.0
        %273 = vst [vmem:[%s257 + $0x48] sm:$0xff] 0.0
        %274 = vst [vmem:[%s257 + $0x50] sm:$0xff] 0.0
        %275 = vst [vmem:[%s257 + $0x58] sm:$0xff] 0.0
        %276 = vst [vmem:[%s257 + $0x60] sm:$0xff] 0.0
        %277 = vst [vmem:[%s257 + $0x68] sm:$0xff] 0.0
        %278 = vst [vmem:[%s257 + $0x70] sm:$0xff] 0.0
        %279 = vst [vmem:[%s257 + $0x78] sm:$0xff] 0.0
        %280 = vst [vmem:[%s257 + $0x80] sm:$0xff] 0.0
        %281 = vst [vmem:[%s257 + $0x88] sm:$0xff] 0.0
        %282 = vst [vmem:[%s257 + $0x90] sm:$0xff] 0.0
        %283 = vst [vmem:[%s257 + $0x98] sm:$0xff] 0.0
        %284 = vst [vmem:[%s257 + $0xa0] sm:$0xff] 0.0
        %285 = vst [vmem:[%s257 + $0xa8] sm:$0xff] 0.0
        %286 = vst [vmem:[%s257 + $0xb0] sm:$0xff] 0.0
        %287 = vst [vmem:[%s257 + $0xb8] sm:$0xff] 0.0
        %288 = vst [vmem:[%s257 + $0xc0] sm:$0xff] 0.0
        %289 = vst [vmem:[%s257 + $0xc8] sm:$0xff] 0.0
        %290 = vst [vmem:[%s257 + $0xd0] sm:$0xff] 0.0
        %291 = vst [vmem:[%s257 + $0xd8] sm:$0xff] 0.0
        %292 = vst [vmem:[%s257 + $0xe0] sm:$0xff] 0.0
        %293 = vst [vmem:[%s257 + $0xe8] sm:$0xff] 0.0
        %294 = vst [vmem:[%s257 + $0xf0] sm:$0xff] 0.0
        %295 = vst [vmem:[%s257 + $0xf8] sm:$0xff] 0.0
      $region36: #{stem_res1_forward.7} parent=31 // pred_fallthru
        _
      %v296 = vld [vmem:[%s257] sm:$0xff]
      %v297 = vld [vmem:[%s257 + $0x8] sm:$0xff]
      %v298 = vld [vmem:[%s257 + $0x10] sm:$0xff]
      %v299 = vld [vmem:[%s257 + $0x18] sm:$0xff]
      %v300 = vld [vmem:[%s257 + $0x20] sm:$0xff]
      %v301 = vld [vmem:[%s257 + $0x28] sm:$0xff]
      %v302 = vld [vmem:[%s257 + $0x30] sm:$0xff]
      %v303 = vld [vmem:[%s257 + $0x38] sm:$0xff]
      %v304 = vld [vmem:[%s257 + $0x40] sm:$0xff]
      %v305 = vld [vmem:[%s257 + $0x48] sm:$0xff]
      %v306 = vld [vmem:[%s257 + $0x50] sm:$0xff]
      %v307 = vld [vmem:[%s257 + $0x58] sm:$0xff]
      %v308 = vld [vmem:[%s257 + $0x60] sm:$0xff]
      %v309 = vld [vmem:[%s257 + $0x68] sm:$0xff]
      %v310 = vld [vmem:[%s257 + $0x70] sm:$0xff]
      %v311 = vld [vmem:[%s257 + $0x78] sm:$0xff]
      %v312 = vld [vmem:[%s257 + $0x80] sm:$0xff]
      %v313 = vld [vmem:[%s257 + $0x88] sm:$0xff]
      %v314 = vld [vmem:[%s257 + $0x90] sm:$0xff]
      %v315 = vld [vmem:[%s257 + $0x98] sm:$0xff]
      %v316 = vld [vmem:[%s257 + $0xa0] sm:$0xff]
      %v317 = vld [vmem:[%s257 + $0xa8] sm:$0xff]
      %v318 = vld [vmem:[%s257 + $0xb0] sm:$0xff]
      %v319 = vld [vmem:[%s257 + $0xb8] sm:$0xff]
      %v320 = vld [vmem:[%s257 + $0xc0] sm:$0xff]
      %v321 = vld [vmem:[%s257 + $0xc8] sm:$0xff]
      %v322 = vld [vmem:[%s257 + $0xd0] sm:$0xff]
      %v323 = vld [vmem:[%s257 + $0xd8] sm:$0xff]
      %v324 = vld [vmem:[%s257 + $0xe0] sm:$0xff]
      %v325 = vld [vmem:[%s257 + $0xe8] sm:$0xff]
      %v326 = vld [vmem:[%s257 + $0xf0] sm:$0xff]
      %v327 = vld [vmem:[%s257 + $0xf8] sm:$0xff]
      %v328 = vld [vmem:[%s236] sm:$0xf]
      %v329 = vld [vmem:[%s236 + $0x4] sm:$0xf]
      %v330 = vld [vmem:[%s236 + $0x8] sm:$0xf]
      %v331 = vld [vmem:[%s236 + $0xc] sm:$0xf]
      %v332 = vld [vmem:[%s236 + $0x10] sm:$0xf]
      %v333 = vld [vmem:[%s236 + $0x14] sm:$0xf]
      %v334 = vld [vmem:[%s236 + $0x18] sm:$0xf]
      %v335 = vld [vmem:[%s236 + $0x1c] sm:$0xf]
      %v336 = vld [vmem:[%s236 + $0x20] sm:$0xf]
      %v337 = vld [vmem:[%s236 + $0x24] sm:$0xf]
      %v338 = vld [vmem:[%s236 + $0x28] sm:$0xf]
      %v339 = vld [vmem:[%s236 + $0x2c] sm:$0xf]
      %v340 = vld [vmem:[%s236 + $0x30] sm:$0xf]
      %v341 = vld [vmem:[%s236 + $0x34] sm:$0xf]
      %v342 = vld [vmem:[%s236 + $0x38] sm:$0xf]
      %v343 = vld [vmem:[%s236 + $0x3c] sm:$0xf]
      %v344 = vld [vmem:[%s236 + $0x40] sm:$0xf]
      %v345 = vld [vmem:[%s236 + $0x44] sm:$0xf]
      %v346 = vld [vmem:[%s236 + $0x48] sm:$0xf]
      %v347 = vld [vmem:[%s236 + $0x4c] sm:$0xf]
      %v348 = vld [vmem:[%s236 + $0x50] sm:$0xf]
      %v349 = vld [vmem:[%s236 + $0x54] sm:$0xf]
      %v350 = vld [vmem:[%s236 + $0x58] sm:$0xf]
      %v351 = vld [vmem:[%s236 + $0x5c] sm:$0xf]
      %v352 = vld [vmem:[%s236 + $0x60] sm:$0xf]
      %v353 = vld [vmem:[%s236 + $0x64] sm:$0xf]
      %v354 = vld [vmem:[%s236 + $0x68] sm:$0xf]
      %v355 = vld [vmem:[%s236 + $0x6c] sm:$0xf]
      %v356 = vld [vmem:[%s236 + $0x70] sm:$0xf]
      %v357 = vld [vmem:[%s236 + $0x74] sm:$0xf]
      %v358 = vld [vmem:[%s236 + $0x78] sm:$0xf]
      %v359 = vld [vmem:[%s236 + $0x7c] sm:$0xf]
      %v360 = vld [vmem:[%s245] sm:$0xf]
      %v361 = vld [vmem:[%s245 + $0x4] sm:$0xf]
      %v362 = vld [vmem:[%s245 + $0x8] sm:$0xf]
      %v363 = vld [vmem:[%s245 + $0xc] sm:$0xf]
      %v364 = vld [vmem:[%s245 + $0x10] sm:$0xf]
      %v365 = vld [vmem:[%s245 + $0x14] sm:$0xf]
      %v366 = vld [vmem:[%s245 + $0x18] sm:$0xf]
      %v367 = vld [vmem:[%s245 + $0x1c] sm:$0xf]
      %v368 = vld [vmem:[%s245 + $0x20] sm:$0xf]
      %v369 = vld [vmem:[%s245 + $0x24] sm:$0xf]
      %v370 = vld [vmem:[%s245 + $0x28] sm:$0xf]
      %v371 = vld [vmem:[%s245 + $0x2c] sm:$0xf]
      %v372 = vld [vmem:[%s245 + $0x30] sm:$0xf]
      %v373 = vld [vmem:[%s245 + $0x34] sm:$0xf]
      %v374 = vld [vmem:[%s245 + $0x38] sm:$0xf]
      %v375 = vld [vmem:[%s245 + $0x3c] sm:$0xf]
      %v408 = vunpack.c.l.b16 %v328
      %v409 = vunpack.c.l.b16 %v329
      %v410 = vunpack.c.l.b16 %v330
      %v411 = vunpack.c.l.b16 %v331
      %v412 = vunpack.c.l.b16 %v332
      %v413 = vunpack.c.l.b16 %v333
      %v414 = vunpack.c.l.b16 %v334
      %v415 = vunpack.c.l.b16 %v335
      %v416 = vunpack.c.l.b16 %v336
      %v417 = vunpack.c.l.b16 %v337
      %v418 = vunpack.c.l.b16 %v338
      %v419 = vunpack.c.l.b16 %v339
      %v420 = vunpack.c.l.b16 %v340
      %v421 = vunpack.c.l.b16 %v341
      %v422 = vunpack.c.l.b16 %v342
      %v423 = vunpack.c.l.b16 %v343
      %v424 = vunpack.c.l.b16 %v344
      %v425 = vunpack.c.l.b16 %v345
      %v426 = vunpack.c.l.b16 %v346
      %v427 = vunpack.c.l.b16 %v347
      %v428 = vunpack.c.l.b16 %v348
      %v429 = vunpack.c.l.b16 %v349
      %v430 = vunpack.c.l.b16 %v350
      %v431 = vunpack.c.l.b16 %v351
      %v432 = vunpack.c.l.b16 %v352
      %v433 = vunpack.c.l.b16 %v353
      %v434 = vunpack.c.l.b16 %v354
      %v435 = vunpack.c.l.b16 %v355
      %v436 = vunpack.c.l.b16 %v356
      %v437 = vunpack.c.l.b16 %v357
      %v438 = vunpack.c.l.b16 %v358
      %v439 = vunpack.c.l.b16 %v359
      %v440 = vpack.c.b16 %v409, %v408
      %v441 = vpack.c.b16 %v411, %v410
      %v442 = vpack.c.b16 %v413, %v412
      %v443 = vpack.c.b16 %v415, %v414
      %v444 = vpack.c.b16 %v417, %v416
      %v445 = vpack.c.b16 %v419, %v418
      %v446 = vpack.c.b16 %v421, %v420
      %v447 = vpack.c.b16 %v423, %v422
      %v448 = vpack.c.b16 %v425, %v424
      %v449 = vpack.c.b16 %v427, %v426
      %v450 = vpack.c.b16 %v429, %v428
      %v451 = vpack.c.b16 %v431, %v430
      %v452 = vpack.c.b16 %v433, %v432
      %v453 = vpack.c.b16 %v435, %v434
      %v454 = vpack.c.b16 %v437, %v436
      %v455 = vpack.c.b16 %v439, %v438
      %v488 = vunpack.c.l.b16 %v360
      %v489 = vunpack.c.l.b16 %v361
      %v490 = vunpack.c.l.b16 %v362
      %v491 = vunpack.c.l.b16 %v363
      %v492 = vunpack.c.l.b16 %v364
      %v493 = vunpack.c.l.b16 %v365
      %v494 = vunpack.c.l.b16 %v366
      %v495 = vunpack.c.l.b16 %v367
      %v496 = vunpack.c.l.b16 %v368
      %v497 = vunpack.c.l.b16 %v369
      %v498 = vunpack.c.l.b16 %v370
      %v499 = vunpack.c.l.b16 %v371
      %v500 = vunpack.c.l.b16 %v372
      %v501 = vunpack.c.l.b16 %v373
      %v502 = vunpack.c.l.b16 %v374
      %v503 = vunpack.c.l.b16 %v375
      %v504 = vpack.c.b16 %v489, %v488
      %v505 = vpack.c.b16 %v491, %v490
      %v506 = vpack.c.b16 %v493, %v492
      %v507 = vpack.c.b16 %v495, %v494
      %v508 = vpack.c.b16 %v497, %v496
      %v509 = vpack.c.b16 %v499, %v498
      %v510 = vpack.c.b16 %v501, %v500
      %v511 = vpack.c.b16 %v503, %v502
      %520 = vmatprep.subr.bf16.mxu0 0
      %521 = vmatpush1.bf16.msra.mxu0 %v504
      %522 = vmatprep.subr.bf16.mxu0 0
      %523 = vmatpush1.bf16.msra.mxu0 %v505
      %524 = vmatprep.subr.bf16.mxu0 0
      %525 = vmatpush1.bf16.msra.mxu0 %v506
      %526 = vmatprep.subr.bf16.mxu0 0
      %527 = vmatpush1.bf16.msra.mxu0 %v507
      %528 = vmatprep.subr.bf16.mxu0 0
      %529 = vmatpush1.bf16.msra.mxu0 %v508
      %530 = vmatprep.subr.bf16.mxu0 0
      %531 = vmatpush1.bf16.msra.mxu0 %v509
      %532 = vmatprep.subr.bf16.mxu0 0
      %533 = vmatpush1.bf16.msra.mxu0 %v510
      %534 = vmatprep.subr.bf16.mxu0 0
      %535 = vmatpush1.bf16.msra.mxu0 %v511
      %536 = vmatprep.subr.bf16.mxu0 0
      %537 = vmatpush1.bf16.msra.mxu0 0
      %538 = vmatprep.subr.bf16.mxu0 0
      %539 = vmatpush1.bf16.msra.mxu0 0
      %540 = vmatprep.subr.bf16.mxu0 0
      %541 = vmatpush1.bf16.msra.mxu0 0
      %542 = vmatprep.subr.bf16.mxu0 0
      %543 = vmatpush1.bf16.msra.mxu0 0
      %544 = vmatprep.subr.bf16.mxu0 0
      %545 = vmatpush1.bf16.msra.mxu0 0
      %546 = vmatprep.subr.bf16.mxu0 0
      %547 = vmatpush1.bf16.msra.mxu0 0
      %548 = vmatprep.subr.bf16.mxu0 0
      %549 = vmatpush1.bf16.msra.mxu0 0
      %550 = vmatprep.subr.bf16.mxu0 0
      %551 = vmatpush1.bf16.msra.mxu0 0
      %552 = vmatprep.mubr.bf16.mxu0 0
      %553 = vmatmul.mubr.bf16.gmra.mrb[0].mxu0 %v440
      %v554 = vpop.f32.mrb[0].mxu0
      %v555 = vadd.f32 0.0, %v554
      %v556 = vpop.f32.mrb[0].mxu0
      %v557 = vpop.f32.mrb[0].mxu0
      %v558 = vadd.f32 0.0, %v557
      %v559 = vpop.f32.mrb[0].mxu0
      %560 = vmatprep.mubr.bf16.mxu0 0
      %561 = vmatmul.mubr.bf16.gmra.mrb[0].mxu0 %v441
      %v562 = vpop.f32.mrb[0].mxu0
      %v563 = vadd.f32 0.0, %v562
      %v564 = vpop.f32.mrb[0].mxu0
      %v565 = vpop.f32.mrb[0].mxu0
      %v566 = vadd.f32 0.0, %v565
      %v567 = vpop.f32.mrb[0].mxu0
      %568 = vmatprep.mubr.bf16.mxu0 0
      %569 = vmatmul.mubr.bf16.gmra.mrb[0].mxu0 %v442
      %v570 = vpop.f32.mrb[0].mxu0
      %v571 = vadd.f32 0.0, %v570
      %v572 = vpop.f32.mrb[0].mxu0
      %v573 = vpop.f32.mrb[0].mxu0
      %v574 = vadd.f32 0.0, %v573
      %v575 = vpop.f32.mrb[0].mxu0
      %576 = vmatprep.mubr.bf16.mxu0 0
      %577 = vmatmul.mubr.bf16.gmra.mrb[0].mxu0 %v443
      %v578 = vpop.f32.mrb[0].mxu0
      %v579 = vadd.f32 0.0, %v578
      %v580 = vpop.f32.mrb[0].mxu0
      %v581 = vpop.f32.mrb[0].mxu0
      %v582 = vadd.f32 0.0, %v581
      %v583 = vpop.f32.mrb[0].mxu0
      %584 = vmatprep.mubr.bf16.mxu0 0
      %585 = vmatmul.mubr.bf16.gmra.mrb[0].mxu0 %v444
      %v586 = vpop.f32.mrb[0].mxu0
      %v587 = vadd.f32 0.0, %v586
      %v588 = vpop.f32.mrb[0].mxu0
      %v589 = vpop.f32.mrb[0].mxu0
      %v590 = vadd.f32 0.0, %v589
      %v591 = vpop.f32.mrb[0].mxu0
      %592 = vmatprep.mubr.bf16.mxu0 0
      %593 = vmatmul.mubr.bf16.gmra.mrb[0].mxu0 %v445
      %v594 = vpop.f32.mrb[0].mxu0
      %v595 = vadd.f32 0.0, %v594
      %v596 = vpop.f32.mrb[0].mxu0
      %v597 = vpop.f32.mrb[0].mxu0
      %v598 = vadd.f32 0.0, %v597
      %v599 = vpop.f32.mrb[0].mxu0
      %600 = vmatprep.mubr.bf16.mxu0 0
      %601 = vmatmul.mubr.bf16.gmra.mrb[0].mxu0 %v446
      %v602 = vpop.f32.mrb[0].mxu0
      %v603 = vadd.f32 0.0, %v602
      %v604 = vpop.f32.mrb[0].mxu0
      %v605 = vpop.f32.mrb[0].mxu0
      %v606 = vadd.f32 0.0, %v605
      %v607 = vpop.f32.mrb[0].mxu0
      %608 = vmatprep.mubr.bf16.mxu0 0
      %609 = vmatmul.mubr.bf16.gmra.mrb[0].mxu0 %v447
      %v610 = vpop.f32.mrb[0].mxu0
      %v611 = vadd.f32 0.0, %v610
      %v612 = vpop.f32.mrb[0].mxu0
      %v613 = vpop.f32.mrb[0].mxu0
      %v614 = vadd.f32 0.0, %v613
      %v615 = vpop.f32.mrb[0].mxu0
      %616 = vmatprep.mubr.bf16.mxu0 0
      %617 = vmatmul.mubr.bf16.gmra.mrb[0].mxu0 %v448
      %v618 = vpop.f32.mrb[0].mxu0
      %v619 = vadd.f32 0.0, %v618
      %v620 = vpop.f32.mrb[0].mxu0
      %v621 = vpop.f32.mrb[0].mxu0
      %v622 = vadd.f32 0.0, %v621
      %v623 = vpop.f32.mrb[0].mxu0
      %624 = vmatprep.mubr.bf16.mxu0 0
      %625 = vmatmul.mubr.bf16.gmra.mrb[0].mxu0 %v449
      %v626 = vpop.f32.mrb[0].mxu0
      %v627 = vadd.f32 0.0, %v626
      %v628 = vpop.f32.mrb[0].mxu0
      %v629 = vpop.f32.mrb[0].mxu0
      %v630 = vadd.f32 0.0, %v629
      %v631 = vpop.f32.mrb[0].mxu0
      %632 = vmatprep.mubr.bf16.mxu0 0
      %633 = vmatmul.mubr.bf16.gmra.mrb[0].mxu0 %v450
      %v634 = vpop.f32.mrb[0].mxu0
      %v635 = vadd.f32 0.0, %v634
      %v636 = vpop.f32.mrb[0].mxu0
      %v637 = vpop.f32.mrb[0].mxu0
      %v638 = vadd.f32 0.0, %v637
      %v639 = vpop.f32.mrb[0].mxu0
      %640 = vmatprep.mubr.bf16.mxu0 0
      %641 = vmatmul.mubr.bf16.gmra.mrb[0].mxu0 %v451
      %v642 = vpop.f32.mrb[0].mxu0
      %v643 = vadd.f32 0.0, %v642
      %v644 = vpop.f32.mrb[0].mxu0
      %v645 = vpop.f32.mrb[0].mxu0
      %v646 = vadd.f32 0.0, %v645
      %v647 = vpop.f32.mrb[0].mxu0
      %648 = vmatprep.mubr.bf16.mxu0 0
      %649 = vmatmul.mubr.bf16.gmra.mrb[0].mxu0 %v452
      %v650 = vpop.f32.mrb[0].mxu0
      %v651 = vadd.f32 0.0, %v650
      %v652 = vpop.f32.mrb[0].mxu0
      %v653 = vpop.f32.mrb[0].mxu0
      %v654 = vadd.f32 0.0, %v653
      %v655 = vpop.f32.mrb[0].mxu0
      %656 = vmatprep.mubr.bf16.mxu0 0
      %657 = vmatmul.mubr.bf16.gmra.mrb[0].mxu0 %v453
      %v658 = vpop.f32.mrb[0].mxu0
      %v659 = vadd.f32 0.0, %v658
      %v660 = vpop.f32.mrb[0].mxu0
      %v661 = vpop.f32.mrb[0].mxu0
      %v662 = vadd.f32 0.0, %v661
      %v663 = vpop.f32.mrb[0].mxu0
      %664 = vmatprep.mubr.bf16.mxu0 0
      %665 = vmatmul.mubr.bf16.gmra.mrb[0].mxu0 %v454
      %v666 = vpop.f32.mrb[0].mxu0
      %v667 = vadd.f32 0.0, %v666
      %v668 = vpop.f32.mrb[0].mxu0
      %v669 = vpop.f32.mrb[0].mxu0
      %v670 = vadd.f32 0.0, %v669
      %v671 = vpop.f32.mrb[0].mxu0
      %672 = vmatprep.mubr.bf16.mxu0 0
      %673 = vmatmul.mubr.bf16.gmra.mrb[0].mxu0 %v455
      %v674 = vpop.f32.mrb[0].mxu0
      %v675 = vadd.f32 0.0, %v674
      %v676 = vpop.f32.mrb[0].mxu0
      %v677 = vpop.f32.mrb[0].mxu0
      %v678 = vadd.f32 0.0, %v677
      %v679 = vpop.f32.mrb[0].mxu0
      %680 = vdwg.mxu0
      %v681 = vadd.f32 %v296, %v555
      %v682 = vadd.f32 %v297, %v558
      %v683 = vadd.f32 %v298, %v563
      %v684 = vadd.f32 %v299, %v566
      %v685 = vadd.f32 %v300, %v571
      %v686 = vadd.f32 %v301, %v574
      %v687 = vadd.f32 %v302, %v579
      %v688 = vadd.f32 %v303, %v582
      %v689 = vadd.f32 %v304, %v587
      %v690 = vadd.f32 %v305, %v590
      %v691 = vadd.f32 %v306, %v595
      %v692 = vadd.f32 %v307, %v598
      %v693 = vadd.f32 %v308, %v603
      %v694 = vadd.f32 %v309, %v606
      %v695 = vadd.f32 %v310, %v611
      %v696 = vadd.f32 %v311, %v614
      %v697 = vadd.f32 %v312, %v619
      %v698 = vadd.f32 %v313, %v622
      %v699 = vadd.f32 %v314, %v627
      %v700 = vadd.f32 %v315, %v630
      %v701 = vadd.f32 %v316, %v635
      %v702 = vadd.f32 %v317, %v638
      %v703 = vadd.f32 %v318, %v643
      %v704 = vadd.f32 %v319, %v646
      %v705 = vadd.f32 %v320, %v651
      %v706 = vadd.f32 %v321, %v654
      %v707 = vadd.f32 %v322, %v659
      %v708 = vadd.f32 %v323, %v662
      %v709 = vadd.f32 %v324, %v667
      %v710 = vadd.f32 %v325, %v670
      %v711 = vadd.f32 %v326, %v675
      %v712 = vadd.f32 %v327, %v678
      %713 = vst [vmem:[%s257] sm:$0xff] %v681
      %714 = vst [vmem:[%s257 + $0x8] sm:$0xff] %v682
      %715 = vst [vmem:[%s257 + $0x10] sm:$0xff] %v683
      %716 = vst [vmem:[%s257 + $0x18] sm:$0xff] %v684
      %717 = vst [vmem:[%s257 + $0x20] sm:$0xff] %v685
      %718 = vst [vmem:[%s257 + $0x28] sm:$0xff] %v686
      %719 = vst [vmem:[%s257 + $0x30] sm:$0xff] %v687
      %720 = vst [vmem:[%s257 + $0x38] sm:$0xff] %v688
      %721 = vst [vmem:[%s257 + $0x40] sm:$0xff] %v689
      %722 = vst [vmem:[%s257 + $0x48] sm:$0xff] %v690
      %723 = vst [vmem:[%s257 + $0x50] sm:$0xff] %v691
      %724 = vst [vmem:[%s257 + $0x58] sm:$0xff] %v692
      %725 = vst [vmem:[%s257 + $0x60] sm:$0xff] %v693
      %726 = vst [vmem:[%s257 + $0x68] sm:$0xff] %v694
      %727 = vst [vmem:[%s257 + $0x70] sm:$0xff] %v695
      %728 = vst [vmem:[%s257 + $0x78] sm:$0xff] %v696
      %729 = vst [vmem:[%s257 + $0x80] sm:$0xff] %v697
      %730 = vst [vmem:[%s257 + $0x88] sm:$0xff] %v698
      %731 = vst [vmem:[%s257 + $0x90] sm:$0xff] %v699
      %732 = vst [vmem:[%s257 + $0x98] sm:$0xff] %v700
      %733 = vst [vmem:[%s257 + $0xa0] sm:$0xff] %v701
      %734 = vst [vmem:[%s257 + $0xa8] sm:$0xff] %v702
      %735 = vst [vmem:[%s257 + $0xb0] sm:$0xff] %v703
      %736 = vst [vmem:[%s257 + $0xb8] sm:$0xff] %v704
      %737 = vst [vmem:[%s257 + $0xc0] sm:$0xff] %v705
      %738 = vst [vmem:[%s257 + $0xc8] sm:$0xff] %v706
      %739 = vst [vmem:[%s257 + $0xd0] sm:$0xff] %v707
      %740 = vst [vmem:[%s257 + $0xd8] sm:$0xff] %v708
      %741 = vst [vmem:[%s257 + $0xe0] sm:$0xff] %v709
      %742 = vst [vmem:[%s257 + $0xe8] sm:$0xff] %v710
      %743 = vst [vmem:[%s257 + $0xf0] sm:$0xff] %v711
      %744 = vst [vmem:[%s257 + $0xf8] sm:$0xff] %v712
      // Predicated region
      $region37: #{stem_res1_forward.7} parent=31 // pred_check
        %p745 = pneg %p260
      $region38: #{stem_res1_forward.7} parent=31 // pred_check_branch
        %747 = sbr.rel (%p745) target = $region40
      $region39: #{stem_res1_forward.7} parent=31 // pred_region
        %v748 = vld [vmem:[%s257] sm:$0xff]
        %v749 = vld [vmem:[%s257 + $0x8] sm:$0xff]
        %v750 = vld [vmem:[%s257 + $0x10] sm:$0xff]
        %v751 = vld [vmem:[%s257 + $0x18] sm:$0xff]
        %v752 = vld [vmem:[%s257 + $0x20] sm:$0xff]
        %v753 = vld [vmem:[%s257 + $0x28] sm:$0xff]
        %v754 = vld [vmem:[%s257 + $0x30] sm:$0xff]
        %v755 = vld [vmem:[%s257 + $0x38] sm:$0xff]
        %v756 = vld [vmem:[%s257 + $0x40] sm:$0xff]
        %v757 = vld [vmem:[%s257 + $0x48] sm:$0xff]
        %v758 = vld [vmem:[%s257 + $0x50] sm:$0xff]
        %v759 = vld [vmem:[%s257 + $0x58] sm:$0xff]
        %v760 = vld [vmem:[%s257 + $0x60] sm:$0xff]
        %v761 = vld [vmem:[%s257 + $0x68] sm:$0xff]
        %v762 = vld [vmem:[%s257 + $0x70] sm:$0xff]
        %v763 = vld [vmem:[%s257 + $0x78] sm:$0xff]
        %v764 = vld [vmem:[%s257 + $0x80] sm:$0xff]
        %v765 = vld [vmem:[%s257 + $0x88] sm:$0xff]
        %v766 = vld [vmem:[%s257 + $0x90] sm:$0xff]
        %v767 = vld [vmem:[%s257 + $0x98] sm:$0xff]
        %v768 = vld [vmem:[%s257 + $0xa0] sm:$0xff]
        %v769 = vld [vmem:[%s257 + $0xa8] sm:$0xff]
        %v770 = vld [vmem:[%s257 + $0xb0] sm:$0xff]
        %v771 = vld [vmem:[%s257 + $0xb8] sm:$0xff]
        %v772 = vld [vmem:[%s257 + $0xc0] sm:$0xff]
        %v773 = vld [vmem:[%s257 + $0xc8] sm:$0xff]
        %v774 = vld [vmem:[%s257 + $0xd0] sm:$0xff]
        %v775 = vld [vmem:[%s257 + $0xd8] sm:$0xff]
        %v776 = vld [vmem:[%s257 + $0xe0] sm:$0xff]
        %v777 = vld [vmem:[%s257 + $0xe8] sm:$0xff]
        %v778 = vld [vmem:[%s257 + $0xf0] sm:$0xff]
        %v779 = vld [vmem:[%s257 + $0xf8] sm:$0xff]
        %v780 = vld [vmem:[%s249] sm:$0x1]
        %v782 = vlaneseq
        %v783 = vshrl.u32 %v782, 7
        %v784 = vsub.s32 0, %v783
        %v785 = vrot.slane %v780, %v784
        %v787 = vadd.f32 %v748, %v785
        %v788 = vadd.f32 %v749, %v785
        %v789 = vadd.f32 %v750, %v785
        %v790 = vadd.f32 %v751, %v785
        %v791 = vadd.f32 %v752, %v785
        %v792 = vadd.f32 %v753, %v785
        %v793 = vadd.f32 %v754, %v785
        %v794 = vadd.f32 %v755, %v785
        %v795 = vadd.f32 %v756, %v785
        %v796 = vadd.f32 %v757, %v785
        %v797 = vadd.f32 %v758, %v785
        %v798 = vadd.f32 %v759, %v785
        %v799 = vadd.f32 %v760, %v785
        %v800 = vadd.f32 %v761, %v785
        %v801 = vadd.f32 %v762, %v785
        %v802 = vadd.f32 %v763, %v785
        %v803 = vadd.f32 %v764, %v785
        %v804 = vadd.f32 %v765, %v785
        %v805 = vadd.f32 %v766, %v785
        %v806 = vadd.f32 %v767, %v785
        %v807 = vadd.f32 %v768, %v785
        %v808 = vadd.f32 %v769, %v785
        %v809 = vadd.f32 %v770, %v785
        %v810 = vadd.f32 %v771, %v785
        %v811 = vadd.f32 %v772, %v785
        %v812 = vadd.f32 %v773, %v785
        %v813 = vadd.f32 %v774, %v785
        %v814 = vadd.f32 %v775, %v785
        %v815 = vadd.f32 %v776, %v785
        %v816 = vadd.f32 %v777, %v785
        %v817 = vadd.f32 %v778, %v785
        %v818 = vadd.f32 %v779, %v785
        %v819 = vmax.f32 %v787, 0.0
        %v820 = vmax.f32 %v788, 0.0
        %v821 = vmax.f32 %v789, 0.0
        %v822 = vmax.f32 %v790, 0.0
        %v823 = vmax.f32 %v791, 0.0
        %v824 = vmax.f32 %v792, 0.0
        %v825 = vmax.f32 %v793, 0.0
        %v826 = vmax.f32 %v794, 0.0
        %v827 = vmax.f32 %v795, 0.0
        %v828 = vmax.f32 %v796, 0.0
        %v829 = vmax.f32 %v797, 0.0
        %v830 = vmax.f32 %v798, 0.0
        %v831 = vmax.f32 %v799, 0.0
        %v832 = vmax.f32 %v800, 0.0
        %v833 = vmax.f32 %v801, 0.0
        %v834 = vmax.f32 %v802, 0.0
        %v835 = vmax.f32 %v803, 0.0
        %v836 = vmax.f32 %v804, 0.0
        %v837 = vmax.f32 %v805, 0.0
        %v838 = vmax.f32 %v806, 0.0
        %v839 = vmax.f32 %v807, 0.0
        %v840 = vmax.f32 %v808, 0.0
        %v841 = vmax.f32 %v809, 0.0
        %v842 = vmax.f32 %v810, 0.0
        %v843 = vmax.f32 %v811, 0.0
        %v844 = vmax.f32 %v812, 0.0
        %v845 = vmax.f32 %v813, 0.0
        %v846 = vmax.f32 %v814, 0.0
        %v847 = vmax.f32 %v815, 0.0
        %v848 = vmax.f32 %v816, 0.0
        %v849 = vmax.f32 %v817, 0.0
        %v850 = vmax.f32 %v818, 0.0
        %851 = vst [vmem:[%s257] sm:$0xff] %v819
        %852 = vst [vmem:[%s257 + $0x8] sm:$0xff] %v820
        %853 = vst [vmem:[%s257 + $0x10] sm:$0xff] %v821
        %854 = vst [vmem:[%s257 + $0x18] sm:$0xff] %v822
        %855 = vst [vmem:[%s257 + $0x20] sm:$0xff] %v823
        %856 = vst [vmem:[%s257 + $0x28] sm:$0xff] %v824
        %857 = vst [vmem:[%s257 + $0x30] sm:$0xff] %v825
        %858 = vst [vmem:[%s257 + $0x38] sm:$0xff] %v826
        %859 = vst [vmem:[%s257 + $0x40] sm:$0xff] %v827
        %860 = vst [vmem:[%s257 + $0x48] sm:$0xff] %v828
        %861 = vst [vmem:[%s257 + $0x50] sm:$0xff] %v829
        %862 = vst [vmem:[%s257 + $0x58] sm:$0xff] %v830
        %863 = vst [vmem:[%s257 + $0x60] sm:$0xff] %v831
        %864 = vst [vmem:[%s257 + $0x68] sm:$0xff] %v832
        %865 = vst [vmem:[%s257 + $0x70] sm:$0xff] %v833
        %866 = vst [vmem:[%s257 + $0x78] sm:$0xff] %v834
        %867 = vst [vmem:[%s257 + $0x80] sm:$0xff] %v835
        %868 = vst [vmem:[%s257 + $0x88] sm:$0xff] %v836
        %869 = vst [vmem:[%s257 + $0x90] sm:$0xff] %v837
        %870 = vst [vmem:[%s257 + $0x98] sm:$0xff] %v838
        %871 = vst [vmem:[%s257 + $0xa0] sm:$0xff] %v839
        %872 = vst [vmem:[%s257 + $0xa8] sm:$0xff] %v840
        %873 = vst [vmem:[%s257 + $0xb0] sm:$0xff] %v841
        %874 = vst [vmem:[%s257 + $0xb8] sm:$0xff] %v842
        %875 = vst [vmem:[%s257 + $0xc0] sm:$0xff] %v843
        %876 = vst [vmem:[%s257 + $0xc8] sm:$0xff] %v844
        %877 = vst [vmem:[%s257 + $0xd0] sm:$0xff] %v845
        %878 = vst [vmem:[%s257 + $0xd8] sm:$0xff] %v846
        %879 = vst [vmem:[%s257 + $0xe0] sm:$0xff] %v847
        %880 = vst [vmem:[%s257 + $0xe8] sm:$0xff] %v848
        %881 = vst [vmem:[%s257 + $0xf0] sm:$0xff] %v849
        %882 = vst [vmem:[%s257 + $0xf8] sm:$0xff] %v850
      $region40: #{stem_res1_forward.7} parent=31 // pred_fallthru
        _
      %s883 = smul.u32 32, %s19
      %p884 = scmp.lt.s32.totalorder %s883, 63
      %s885 = scalar_select %p884, %s883, 63
      %p886 = scmp.lt.s32.totalorder %s20, 0
      %s887 = scalar_select %p886, %s20, 0
      %s888 = sadd.s32 %s887, %s885
      %s889 = smul.addr %s888, 8
      %s890 = scalar_lea.vmem %s3, %s889
      // Predicated region
      $region41: #{stem_res1_forward.7} parent=31 // pred_check
        %p891 = pneg %p135
      $region42: #{stem_res1_forward.7} parent=31 // pred_check_branch
        %893 = sbr.rel (%p891) target = $region44
      $region43: #{stem_res1_forward.7} parent=31 // pred_region
        %s894 = smul.u32 32, %s19
      $region44: #{stem_res1_forward.7} parent=31 // pred_fallthru
        _
    $region32: #{stem_res1_forward.7} parent=5 // pred_fallthru
      _
    %p895 = scmp.le.s32.totalorder 2, %s9
    // Predicated region
    $region45: #{stem_res1_forward.7} parent=5 // pred_check
      %p896 = pneg %p895
    $region46: #{stem_res1_forward.7} parent=5 // pred_check_branch
      %898 = sbr.rel (%p896) target = $region48
    $region47: #{stem_res1_forward.7} parent=5 // pred_region
      %s899 = ssub.s32 %s9, 2
      // Predicated region
      $region49: #{stem_res1_forward.7} parent=47 // pred_check
        %p900 = pneg %p141
      $region50: #{stem_res1_forward.7} parent=47 // pred_check_branch
        %902 = sbr.rel (%p900) target = $region52
      $region51: #{stem_res1_forward.7} parent=47 // pred_region
        %s903 = smul.u32 32, %s22
        %p904 = scmp.lt.s32.totalorder %s903, 63
        %s905 = scalar_select %p904, %s903, 63
        %p906 = scmp.lt.s32.totalorder %s23, 0
        %s907 = scalar_select %p906, %s23, 0
        %s908 = sadd.s32 %s907, %s905
        %s909 = smul.addr %s908, 8
        %s910 = scalar_lea.vmem %s3, %s909
      $region52: #{stem_res1_forward.7} parent=47 // pred_fallthru
        _
    $region48: #{stem_res1_forward.7} parent=5 // pred_fallthru
      _
  $region6: #{stem_res1_forward.7} parent=0 // loop_footer
    %s13 = sadd.s32 1, %s9
  $region7: #{stem_res1_forward.7} parent=0 // loop_footer_branch
    %8 = sbr.rel target = $region3
  $region8: #{stem_res1_forward.7} parent=0 // loop_exit
    _

// kernel: stem_res1_forward.8
$region0: #{stem_res1_forward.8}
  #allocation0 [shape = 'u32[]', space=smem, size = 0x4, offset = 0x4, fixed_abs, tag = 'smem constant byte address 0x4 - core index']
  #allocation1 [shape = 'u32[144,128]{1,0:T(1,128)}', space=vmem, size = 0x12000, scoped, tag = 'internal scratch']
  %s0 = inlined_call_operand.vmem [shape: bf16[512,384], index: 0, kind: input, shape index: {}]
  %s1 = inlined_call_operand.vmem [shape: bf16[384,128], index: 1, kind: input, shape index: {}]
  %s2 = inlined_call_operand.vmem [shape: f32[1,128], index: 2, kind: input, shape index: {}]
  %s3 = inlined_call_operand.vmem [shape: f32[512,128], index: 3, kind: output, shape index: {}]
  %s4 = sld [smem:[#allocation0]]
  $region53: #{stem_res1_forward.8} parent=0
    _
  %s6 = ssub.s32 1, %s4
  %s7 = scalar_select 0, %s6, %s4
  loop: start=0, step=1, limit=4
  $region2: #{stem_res1_forward.8} parent=0 // loop_pre_header
    _
  $region3: #{stem_res1_forward.8} parent=0 // loop_header
    %s9 = sphi 0, %s13
    %p10 = scmp.ge.s32.totalorder %s9, 4
    %s16 = sphi 0, %s35
    %s17 = sphi 0, %s31
    %s18 = sphi 0, %s27
    %s19 = sphi 0, %s16
    %s20 = sphi 0, %s17
    %s21 = sphi 0, %s18
    %s22 = sphi 0, %s19
    %s23 = sphi 0, %s20
    %s24 = sphi 0, %s21
    %s40 = sphi 0, %s42
    %s43 = sphi 0, %s40
    %s44 = sphi 0, %s43
    %s60 = sphi 0, %s44
    %s68 = sphi 0, %s70
    %s71 = sphi 0, %s68
    %s72 = sphi 0, %s71
    %s88 = sphi 0, %s72
    %s94 = sphi 0, %s96
    %s97 = sphi 0, %s94
    %s98 = sphi 0, %s97
    %s114 = sphi 0, %s98
    %s122 = sphi 0, %s124
    %s125 = sphi 0, %s122
    %s126 = sphi 0, %s125
    %s142 = sphi 0, %s126
  $region4: #{stem_res1_forward.8} parent=0 // loop_header_branch
    %12 = sbr.rel (%p10) target = $region8
  $region5: #{stem_res1_forward.8} parent=0 // loop_body
    %s14 = ssub.s32 %s9, 1
    %s15 = ssub.s32 %s9, 2
    %s25 = sadd.s32 1, %s18
    %p26 = scmp.ge.s32.totalorder %s25, 1
    %s27 = scalar_select %p26, 0, %s25
    %s28 = sadd.s32 1, %s17
    %s29 = scalar_select %p26, %s28, %s17
    %p30 = scmp.ge.s32.totalorder %s29, 1
    %s31 = scalar_select %p30, 0, %s29
    %s32 = sadd.s32 1, %s16
    %s33 = scalar_select %p30, %s32, %s16
    %p34 = scmp.ge.s32.totalorder %s33, 2
    %s35 = scalar_select %p34, 0, %s33
    %s36 = ssub.s32 %s16, %s35
    %s37 = ssub.s32 %s18, %s27
    %s38 = sor.u32 %s36, %s37
    %p39 = scmp.eq.s32.totalorder %s38, 0
    %s41 = sadd.s32 %s40, 1
    %s42 = scalar_select %p39, %s40, %s41
    %p45 = pneg %p39
    %p46 = scmp.eq.s32.totalorder %s9, 1
    %p47 = por %p45, %p46
    %p48 = scmp.ne.s32.totalorder %s40, %s43
    %p49 = scmp.eq.s32.totalorder %s9, 0
    %p50 = por %p48, %p49
    %p51 = scmp.ne.s32.totalorder %s40, %s43
    %p52 = scmp.eq.s32.totalorder %s14, 1
    %p53 = por %p51, %p52
    %p54 = scmp.ne.s32.totalorder %s43, %s44
    %p55 = scmp.eq.s32.totalorder %s14, 0
    %p56 = por %p54, %p55
    %p57 = scmp.ne.s32.totalorder %s43, %s44
    %p58 = scmp.eq.s32.totalorder %s15, 1
    %p59 = por %p57, %p58
    %p61 = scmp.ne.s32.totalorder %s44, %s60
    %p62 = scmp.eq.s32.totalorder %s15, 0
    %p63 = por %p61, %p62
    %s64 = ssub.s32 %s18, %s27
    %s65 = ssub.s32 %s17, %s31
    %s66 = sor.u32 %s64, %s65
    %p67 = scmp.eq.s32.totalorder %s66, 0
    %s69 = sadd.s32 %s68, 1
    %s70 = scalar_select %p67, %s68, %s69
    %p73 = pneg %p67
    %p74 = scmp.eq.s32.totalorder %s9, 1
    %p75 = por %p73, %p74
    %p76 = scmp.ne.s32.totalorder %s68, %s71
    %p77 = scmp.eq.s32.totalorder %s9, 0
    %p78 = por %p76, %p77
    %p79 = scmp.ne.s32.totalorder %s68, %s71
    %p80 = scmp.eq.s32.totalorder %s14, 1
    %p81 = por %p79, %p80
    %p82 = scmp.ne.s32.totalorder %s71, %s72
    %p83 = scmp.eq.s32.totalorder %s14, 0
    %p84 = por %p82, %p83
    %p85 = scmp.ne.s32.totalorder %s71, %s72
    %p86 = scmp.eq.s32.totalorder %s15, 1
    %p87 = por %p85, %p86
    %p89 = scmp.ne.s32.totalorder %s72, %s88
    %p90 = scmp.eq.s32.totalorder %s15, 0
    %p91 = por %p89, %p90
    %s92 = ssub.s32 %s17, %s31
    %p93 = scmp.eq.s32.totalorder %s92, 0
    %s95 = sadd.s32 %s94, 1
    %s96 = scalar_select %p93, %s94, %s95
    %p99 = pneg %p93
    %p100 = scmp.eq.s32.totalorder %s9, 1
    %p101 = por %p99, %p100
    %p102 = scmp.ne.s32.totalorder %s94, %s97
    %p103 = scmp.eq.s32.totalorder %s9, 0
    %p104 = por %p102, %p103
    %p105 = scmp.ne.s32.totalorder %s94, %s97
    %p106 = scmp.eq.s32.totalorder %s14, 1
    %p107 = por %p105, %p106
    %p108 = scmp.ne.s32.totalorder %s97, %s98
    %p109 = scmp.eq.s32.totalorder %s14, 0
    %p110 = por %p108, %p109
    %p111 = scmp.ne.s32.totalorder %s97, %s98
    %p112 = scmp.eq.s32.totalorder %s15, 1
    %p113 = por %p111, %p112
    %p115 = scmp.ne.s32.totalorder %s98, %s114
    %p116 = scmp.eq.s32.totalorder %s15, 0
    %p117 = por %p115, %p116
    %s118 = ssub.s32 %s16, %s35
    %s119 = ssub.s32 %s17, %s31
    %s120 = sor.u32 %s118, %s119
    %p121 = scmp.eq.s32.totalorder %s120, 0
    %s123 = sadd.s32 %s122, 1
    %s124 = scalar_select %p121, %s122, %s123
    %p127 = pneg %p121
    %p128 = scmp.eq.s32.totalorder %s9, 1
    %p129 = por %p127, %p128
    %p130 = scmp.ne.s32.totalorder %s122, %s125
    %p131 = scmp.eq.s32.totalorder %s9, 0
    %p132 = por %p130, %p131
    %p133 = scmp.ne.s32.totalorder %s122, %s125
    %p134 = scmp.eq.s32.totalorder %s14, 1
    %p135 = por %p133, %p134
    %p136 = scmp.ne.s32.totalorder %s125, %s126
    %p137 = scmp.eq.s32.totalorder %s14, 0
    %p138 = por %p136, %p137
    %p139 = scmp.ne.s32.totalorder %s125, %s126
    %p140 = scmp.eq.s32.totalorder %s15, 1
    %p141 = por %p139, %p140
    %p143 = scmp.ne.s32.totalorder %s126, %s142
    %p144 = scmp.eq.s32.totalorder %s15, 0
    %p145 = por %p143, %p144
    %p146 = scmp.le.s32.totalorder 1, %s9
    %p147 = scmp.lt.s32.totalorder %s9, 3
    %p148 = pnand %p146, %p147
    %p149 = pneg %p148
    // Predicated region
    $region9: #{stem_res1_forward.8} parent=5 // pred_check
      _
    $region10: #{stem_res1_forward.8} parent=5 // pred_check_branch
      %151 = sbr.rel (%p148) target = $region12
    $region11: #{stem_res1_forward.8} parent=5 // pred_region
      %s152 = ssub.s32 %s9, 1
      // Predicated region
      $region13: #{stem_res1_forward.8} parent=11 // pred_check
        %p153 = pneg %p84
      $region14: #{stem_res1_forward.8} parent=11 // pred_check_branch
        %155 = sbr.rel (%p153) target = $region16
      $region15: #{stem_res1_forward.8} parent=11 // pred_region
        %s156 = smul.u32 48, %s21
        %p157 = scmp.lt.s32.totalorder %s156, 47
        %s158 = scalar_select %p157, %s156, 47
        %p159 = scmp.lt.s32.totalorder %s20, 0
        %s160 = scalar_select %p159, %s20, 0
        %s161 = sadd.s32 %s160, %s158
        %s162 = smul.addr %s161, 4
        %s163 = scalar_lea.vmem %s1, %s162
        %s164 = smul.u32 48, %s21
      $region16: #{stem_res1_forward.8} parent=11 // pred_fallthru
        _
      // Predicated region
      $region17: #{stem_res1_forward.8} parent=11 // pred_check
        %p165 = pneg %p110
      $region18: #{stem_res1_forward.8} parent=11 // pred_check_branch
        %167 = sbr.rel (%p165) target = $region20
      $region19: #{stem_res1_forward.8} parent=11 // pred_region
        %p168 = scmp.lt.s32.totalorder %s20, 0
        %s169 = scalar_select %p168, %s20, 0
        %s170 = scalar_lea.vmem %s2, %s169
      $region20: #{stem_res1_forward.8} parent=11 // pred_fallthru
        _
    $region12: #{stem_res1_forward.8} parent=5 // pred_fallthru
      _
    %p171 = scmp.lt.s32.totalorder %s9, 2
    // Predicated region
    $region21: #{stem_res1_forward.8} parent=5 // pred_check
      %p172 = pneg %p171
    $region22: #{stem_res1_forward.8} parent=5 // pred_check_branch
      %174 = sbr.rel (%p172) target = $region24
    $region23: #{stem_res1_forward.8} parent=5 // pred_region
      // Predicated region
      $region25: #{stem_res1_forward.8} parent=23 // pred_check
        %p175 = pneg %p50
      $region26: #{stem_res1_forward.8} parent=23 // pred_check_branch
        %177 = sbr.rel (%p175) target = $region28
      $region27: #{stem_res1_forward.8} parent=23 // pred_region
        %s178 = smul.u32 32, %s16
        %s179 = smul.u32 3, %s18
        %p180 = scmp.lt.s32.totalorder %s178, 63
        %s181 = scalar_select %p180, %s178, 63
        %p182 = scmp.lt.s32.totalorder %s179, 2
        %s183 = scalar_select %p182, %s179, 2
        %s184 = smul.addr %s181, 3
        %s185 = sadd.s32 %s183, %s184
        %s186 = smul.addr %s185, 4
        %s187 = scalar_lea.vmem %s0, %s186
        %s188 = smul.u32 32, %s16
        %s189 = smul.u32 3, %s18
      $region28: #{stem_res1_forward.8} parent=23 // pred_fallthru
        _
    $region24: #{stem_res1_forward.8} parent=5 // pred_fallthru
      _
    %p190 = scmp.le.s32.totalorder 1, %s9
    %p191 = scmp.lt.s32.totalorder %s9, 3
    %p192 = pnand %p190, %p191
    %p193 = pneg %p192
    // Predicated region
    $region29: #{stem_res1_forward.8} parent=5 // pred_check
      _
    $region30: #{stem_res1_forward.8} parent=5 // pred_check_branch
      %195 = sbr.rel (%p192) target = $region32
    $region31: #{stem_res1_forward.8} parent=5 // pred_region
      %s196 = ssub.s32 %s9, 1
      %s197 = smul.u32 32, %s19
      %s198 = smul.u32 3, %s21
      %p199 = scmp.lt.s32.totalorder %s197, 63
      %s200 = scalar_select %p199, %s197, 63
      %p201 = scmp.lt.s32.totalorder %s198, 2
      %s202 = scalar_select %p201, %s198, 2
      %s203 = smul.addr %s200, 3
      %s204 = sadd.s32 %s202, %s203
      %s205 = smul.addr %s204, 4
      %s206 = scalar_lea.vmem %s0, %s205
      %p207 = pneg %p56
      %p208 = pneg %p53
      %s209 = smul.u32 48, %s21
      %p210 = scmp.lt.s32.totalorder %s209, 47
      %s211 = scalar_select %p210, %s209, 47
      %p212 = scmp.lt.s32.totalorder %s20, 0
      %s213 = scalar_select %p212, %s20, 0
      %s214 = sadd.s32 %s213, %s211
      %s215 = smul.addr %s214, 4
      %s216 = scalar_lea.vmem %s1, %s215
      %p217 = pneg %p84
      %p218 = pneg %p81
      %p219 = scmp.lt.s32.totalorder %s20, 0
      %s220 = scalar_select %p219, %s20, 0
      %s221 = scalar_lea.vmem %s2, %s220
      %p222 = pneg %p110
      %p223 = pneg %p107
      %p224 = pneg %p138
      %p225 = pneg %p135
      %s226 = smul.u32 32, %s19
      %p227 = scmp.lt.s32.totalorder %s226, 63
      %s228 = scalar_select %p227, %s226, 63
      %p229 = scmp.lt.s32.totalorder %s20, 0
      %s230 = scalar_select %p229, %s20, 0
      %s231 = sadd.s32 %s230, %s228
      %s232 = smul.addr %s231, 8
      %s233 = scalar_lea.vmem %s3, %s232
      %s234 = smul.u32 32, %s19
      %s235 = smul.u32 3, %s21
      %p236 = scmp.lt.s32.totalorder %s234, 63
      %s237 = scalar_select %p236, %s234, 63
      %p238 = scmp.lt.s32.totalorder %s235, 2
      %s239 = scalar_select %p238, %s235, 2
      %s240 = smul.addr %s237, 3
      %s241 = sadd.s32 %s239, %s240
      %s242 = smul.addr %s241, 4
      %s243 = scalar_lea.vmem %s0, %s242
      %s244 = smul.u32 32, %s19
      %s245 = smul.u32 3, %s21
      %s246 = smul.u32 48, %s21
      %p247 = scmp.lt.s32.totalorder %s246, 47
      %s248 = scalar_select %p247, %s246, 47
      %p249 = scmp.lt.s32.totalorder %s20, 0
      %s250 = scalar_select %p249, %s20, 0
      %s251 = sadd.s32 %s250, %s248
      %s252 = smul.addr %s251, 4
      %s253 = scalar_lea.vmem %s1, %s252
      %s254 = smul.u32 48, %s21
      %p255 = scmp.lt.s32.totalorder %s20, 0
      %s256 = scalar_select %p255, %s20, 0
      %s257 = scalar_lea.vmem %s2, %s256
      %s258 = smul.u32 32, %s19
      %p259 = scmp.lt.s32.totalorder %s258, 63
      %s260 = scalar_select %p259, %s258, 63
      %p261 = scmp.lt.s32.totalorder %s20, 0
      %s262 = scalar_select %p261, %s20, 0
      %s263 = sadd.s32 %s262, %s260
      %s264 = smul.addr %s263, 8
      %s265 = scalar_lea.vmem %s3, %s264
      %s266 = smul.u32 32, %s19
      %p268 = scmp.eq.s32.totalorder %s21, 0
      // Predicated region
      $region33: #{stem_res1_forward.8} parent=31 // pred_check
        %p269 = pneg %p268
      $region34: #{stem_res1_forward.8} parent=31 // pred_check_branch
        %271 = sbr.rel (%p269) target = $region36
      $region35: #{stem_res1_forward.8} parent=31 // pred_region
        %272 = vst [vmem:[%s265] sm:$0xff] 0.0
        %273 = vst [vmem:[%s265 + $0x8] sm:$0xff] 0.0
        %274 = vst [vmem:[%s265 + $0x10] sm:$0xff] 0.0
        %275 = vst [vmem:[%s265 + $0x18] sm:$0xff] 0.0
        %276 = vst [vmem:[%s265 + $0x20] sm:$0xff] 0.0
        %277 = vst [vmem:[%s265 + $0x28] sm:$0xff] 0.0
        %278 = vst [vmem:[%s265 + $0x30] sm:$0xff] 0.0
        %279 = vst [vmem:[%s265 + $0x38] sm:$0xff] 0.0
        %280 = vst [vmem:[%s265 + $0x40] sm:$0xff] 0.0
        %281 = vst [vmem:[%s265 + $0x48] sm:$0xff] 0.0
        %282 = vst [vmem:[%s265 + $0x50] sm:$0xff] 0.0
        %283 = vst [vmem:[%s265 + $0x58] sm:$0xff] 0.0
        %284 = vst [vmem:[%s265 + $0x60] sm:$0xff] 0.0
        %285 = vst [vmem:[%s265 + $0x68] sm:$0xff] 0.0
        %286 = vst [vmem:[%s265 + $0x70] sm:$0xff] 0.0
        %287 = vst [vmem:[%s265 + $0x78] sm:$0xff] 0.0
        %288 = vst [vmem:[%s265 + $0x80] sm:$0xff] 0.0
        %289 = vst [vmem:[%s265 + $0x88] sm:$0xff] 0.0
        %290 = vst [vmem:[%s265 + $0x90] sm:$0xff] 0.0
        %291 = vst [vmem:[%s265 + $0x98] sm:$0xff] 0.0
        %292 = vst [vmem:[%s265 + $0xa0] sm:$0xff] 0.0
        %293 = vst [vmem:[%s265 + $0xa8] sm:$0xff] 0.0
        %294 = vst [vmem:[%s265 + $0xb0] sm:$0xff] 0.0
        %295 = vst [vmem:[%s265 + $0xb8] sm:$0xff] 0.0
        %296 = vst [vmem:[%s265 + $0xc0] sm:$0xff] 0.0
        %297 = vst [vmem:[%s265 + $0xc8] sm:$0xff] 0.0
        %298 = vst [vmem:[%s265 + $0xd0] sm:$0xff] 0.0
        %299 = vst [vmem:[%s265 + $0xd8] sm:$0xff] 0.0
        %300 = vst [vmem:[%s265 + $0xe0] sm:$0xff] 0.0
        %301 = vst [vmem:[%s265 + $0xe8] sm:$0xff] 0.0
        %302 = vst [vmem:[%s265 + $0xf0] sm:$0xff] 0.0
        %303 = vst [vmem:[%s265 + $0xf8] sm:$0xff] 0.0
      $region36: #{stem_res1_forward.8} parent=31 // pred_fallthru
        _
      %v304 = vld [vmem:[%s265] sm:$0xff]
      %v305 = vld [vmem:[%s265 + $0x8] sm:$0xff]
      %v306 = vld [vmem:[%s265 + $0x10] sm:$0xff]
      %v307 = vld [vmem:[%s265 + $0x18] sm:$0xff]
      %v308 = vld [vmem:[%s265 + $0x20] sm:$0xff]
      %v309 = vld [vmem:[%s265 + $0x28] sm:$0xff]
      %v310 = vld [vmem:[%s265 + $0x30] sm:$0xff]
      %v311 = vld [vmem:[%s265 + $0x38] sm:$0xff]
      %v312 = vld [vmem:[%s265 + $0x40] sm:$0xff]
      %v313 = vld [vmem:[%s265 + $0x48] sm:$0xff]
      %v314 = vld [vmem:[%s265 + $0x50] sm:$0xff]
      %v315 = vld [vmem:[%s265 + $0x58] sm:$0xff]
      %v316 = vld [vmem:[%s265 + $0x60] sm:$0xff]
      %v317 = vld [vmem:[%s265 + $0x68] sm:$0xff]
      %v318 = vld [vmem:[%s265 + $0x70] sm:$0xff]
      %v319 = vld [vmem:[%s265 + $0x78] sm:$0xff]
      %v320 = vld [vmem:[%s265 + $0x80] sm:$0xff]
      %v321 = vld [vmem:[%s265 + $0x88] sm:$0xff]
      %v322 = vld [vmem:[%s265 + $0x90] sm:$0xff]
      %v323 = vld [vmem:[%s265 + $0x98] sm:$0xff]
      %v324 = vld [vmem:[%s265 + $0xa0] sm:$0xff]
      %v325 = vld [vmem:[%s265 + $0xa8] sm:$0xff]
      %v326 = vld [vmem:[%s265 + $0xb0] sm:$0xff]
      %v327 = vld [vmem:[%s265 + $0xb8] sm:$0xff]
      %v328 = vld [vmem:[%s265 + $0xc0] sm:$0xff]
      %v329 = vld [vmem:[%s265 + $0xc8] sm:$0xff]
      %v330 = vld [vmem:[%s265 + $0xd0] sm:$0xff]
      %v331 = vld [vmem:[%s265 + $0xd8] sm:$0xff]
      %v332 = vld [vmem:[%s265 + $0xe0] sm:$0xff]
      %v333 = vld [vmem:[%s265 + $0xe8] sm:$0xff]
      %v334 = vld [vmem:[%s265 + $0xf0] sm:$0xff]
      %v335 = vld [vmem:[%s265 + $0xf8] sm:$0xff]
      %v336 = vld [vmem:[%s243] sm:$0xff]
      %v337 = vld [vmem:[%s243 + $0x8] sm:$0xf]
      %v338 = vld [vmem:[%s243 + $0xc] sm:$0xff]
      %v339 = vld [vmem:[%s243 + $0x14] sm:$0xf]
      %v340 = vld [vmem:[%s243 + $0x18] sm:$0xff]
      %v341 = vld [vmem:[%s243 + $0x20] sm:$0xf]
      %v342 = vld [vmem:[%s243 + $0x24] sm:$0xff]
      %v343 = vld [vmem:[%s243 + $0x2c] sm:$0xf]
      %v344 = vld [vmem:[%s243 + $0x30] sm:$0xff]
      %v345 = vld [vmem:[%s243 + $0x38] sm:$0xf]
      %v346 = vld [vmem:[%s243 + $0x3c] sm:$0xff]
      %v347 = vld [vmem:[%s243 + $0x44] sm:$0xf]
      %v348 = vld [vmem:[%s243 + $0x48] sm:$0xff]
      %v349 = vld [vmem:[%s243 + $0x50] sm:$0xf]
      %v350 = vld [vmem:[%s243 + $0x54] sm:$0xff]
      %v351 = vld [vmem:[%s243 + $0x5c] sm:$0xf]
      %v352 = vld [vmem:[%s243 + $0x60] sm:$0xff]
      %v353 = vld [vmem:[%s243 + $0x68] sm:$0xf]
      %v354 = vld [vmem:[%s243 + $0x6c] sm:$0xff]
      %v355 = vld [vmem:[%s243 + $0x74] sm:$0xf]
      %v356 = vld [vmem:[%s243 + $0x78] sm:$0xff]
      %v357 = vld [vmem:[%s243 + $0x80] sm:$0xf]
      %v358 = vld [vmem:[%s243 + $0x84] sm:$0xff]
      %v359 = vld [vmem:[%s243 + $0x8c] sm:$0xf]
      %v360 = vld [vmem:[%s243 + $0x90] sm:$0xff]
      %v361 = vld [vmem:[%s243 + $0x98] sm:$0xf]
      %v362 = vld [vmem:[%s243 + $0x9c] sm:$0xff]
      %v363 = vld [vmem:[%s243 + $0xa4] sm:$0xf]
      %v364 = vld [vmem:[%s243 + $0xa8] sm:$0xff]
      %v365 = vld [vmem:[%s243 + $0xb0] sm:$0xf]
      %v366 = vld [vmem:[%s243 + $0xb4] sm:$0xff]
      %v367 = vld [vmem:[%s243 + $0xbc] sm:$0xf]
      %v368 = vld [vmem:[%s243 + $0xc0] sm:$0xff]
      %v369 = vld [vmem:[%s243 + $0xc8] sm:$0xf]
      %v370 = vld [vmem:[%s243 + $0xcc] sm:$0xff]
      %v371 = vld [vmem:[%s243 + $0xd4] sm:$0xf]
      %v372 = vld [vmem:[%s243 + $0xd8] sm:$0xff]
      %v373 = vld [vmem:[%s243 + $0xe0] sm:$0xf]
      %v374 = vld [vmem:[%s243 + $0xe4] sm:$0xff]
      %v375 = vld [vmem:[%s243 + $0xec] sm:$0xf]
      %v376 = vld [vmem:[%s243 + $0xf0] sm:$0xff]
      %v377 = vld [vmem:[%s243 + $0xf8] sm:$0xf]
      %v378 = vld [vmem:[%s243 + $0xfc] sm:$0xff]
      %v379 = vld [vmem:[%s243 + $0x104] sm:$0xf]
      %v380 = vld [vmem:[%s243 + $0x108] sm:$0xff]
      %v381 = vld [vmem:[%s243 + $0x110] sm:$0xf]
      %v382 = vld [vmem:[%s243 + $0x114] sm:$0xff]
      %v383 = vld [vmem:[%s243 + $0x11c] sm:$0xf]
      %v384 = vld [vmem:[%s243 + $0x120] sm:$0xff]
      %v385 = vld [vmem:[%s243 + $0x128] sm:$0xf]
      %v386 = vld [vmem:[%s243 + $0x12c] sm:$0xff]
      %v387 = vld [vmem:[%s243 + $0x134] sm:$0xf]
      %v388 = vld [vmem:[%s243 + $0x138] sm:$0xff]
      %v389 = vld [vmem:[%s243 + $0x140] sm:$0xf]
      %v390 = vld [vmem:[%s243 + $0x144] sm:$0xff]
      %v391 = vld [vmem:[%s243 + $0x14c] sm:$0xf]
      %v392 = vld [vmem:[%s243 + $0x150] sm:$0xff]
      %v393 = vld [vmem:[%s243 + $0x158] sm:$0xf]
      %v394 = vld [vmem:[%s243 + $0x15c] sm:$0xff]
      %v395 = vld [vmem:[%s243 + $0x164] sm:$0xf]
      %v396 = vld [vmem:[%s243 + $0x168] sm:$0xff]
      %v397 = vld [vmem:[%s243 + $0x170] sm:$0xf]
      %v398 = vld [vmem:[%s243 + $0x174] sm:$0xff]
      %v399 = vld [vmem:[%s243 + $0x17c] sm:$0xf]
      %v400 = vld [vmem:[%s253] sm:$0xf]
      %v401 = vld [vmem:[%s253 + $0x4] sm:$0xf]
      %v402 = vld [vmem:[%s253 + $0x8] sm:$0xf]
      %v403 = vld [vmem:[%s253 + $0xc] sm:$0xf]
      %v404 = vld [vmem:[%s253 + $0x10] sm:$0xf]
      %v405 = vld [vmem:[%s253 + $0x14] sm:$0xf]
      %v406 = vld [vmem:[%s253 + $0x18] sm:$0xf]
      %v407 = vld [vmem:[%s253 + $0x1c] sm:$0xf]
      %v408 = vld [vmem:[%s253 + $0x20] sm:$0xf]
      %v409 = vld [vmem:[%s253 + $0x24] sm:$0xf]
      %v410 = vld [vmem:[%s253 + $0x28] sm:$0xf]
      %v411 = vld [vmem:[%s253 + $0x2c] sm:$0xf]
      %v412 = vld [vmem:[%s253 + $0x30] sm:$0xf]
      %v413 = vld [vmem:[%s253 + $0x34] sm:$0xf]
      %v414 = vld [vmem:[%s253 + $0x38] sm:$0xf]
      %v415 = vld [vmem:[%s253 + $0x3c] sm:$0xf]
      %v416 = vld [vmem:[%s253 + $0x40] sm:$0xf]
      %v417 = vld [vmem:[%s253 + $0x44] sm:$0xf]
      %v418 = vld [vmem:[%s253 + $0x48] sm:$0xf]
      %v419 = vld [vmem:[%s253 + $0x4c] sm:$0xf]
      %v420 = vld [vmem:[%s253 + $0x50] sm:$0xf]
      %v421 = vld [vmem:[%s253 + $0x54] sm:$0xf]
      %v422 = vld [vmem:[%s253 + $0x58] sm:$0xf]
      %v423 = vld [vmem:[%s253 + $0x5c] sm:$0xf]
      %v424 = vld [vmem:[%s253 + $0x60] sm:$0xf]
      %v425 = vld [vmem:[%s253 + $0x64] sm:$0xf]
      %v426 = vld [vmem:[%s253 + $0x68] sm:$0xf]
      %v427 = vld [vmem:[%s253 + $0x6c] sm:$0xf]
      %v428 = vld [vmem:[%s253 + $0x70] sm:$0xf]
      %v429 = vld [vmem:[%s253 + $0x74] sm:$0xf]
      %v430 = vld [vmem:[%s253 + $0x78] sm:$0xf]
      %v431 = vld [vmem:[%s253 + $0x7c] sm:$0xf]
      %v432 = vld [vmem:[%s253 + $0x80] sm:$0xf]
      %v433 = vld [vmem:[%s253 + $0x84] sm:$0xf]
      %v434 = vld [vmem:[%s253 + $0x88] sm:$0xf]
      %v435 = vld [vmem:[%s253 + $0x8c] sm:$0xf]
      %v436 = vld [vmem:[%s253 + $0x90] sm:$0xf]
      %v437 = vld [vmem:[%s253 + $0x94] sm:$0xf]
      %v438 = vld [vmem:[%s253 + $0x98] sm:$0xf]
      %v439 = vld [vmem:[%s253 + $0x9c] sm:$0xf]
      %v440 = vld [vmem:[%s253 + $0xa0] sm:$0xf]
      %v441 = vld [vmem:[%s253 + $0xa4] sm:$0xf]
      %v442 = vld [vmem:[%s253 + $0xa8] sm:$0xf]
      %v443 = vld [vmem:[%s253 + $0xac] sm:$0xf]
      %v444 = vld [vmem:[%s253 + $0xb0] sm:$0xf]
      %v445 = vld [vmem:[%s253 + $0xb4] sm:$0xf]
      %v446 = vld [vmem:[%s253 + $0xb8] sm:$0xf]
      %v447 = vld [vmem:[%s253 + $0xbc] sm:$0xf]
      %v512 = vunpack.c.l.b16 %v336
      %v513 = vunpack.c.h.b16 %v336
      %v514 = vunpack.c.l.b16 %v337
      %v515 = vunpack.c.l.b16 %v338
      %v516 = vunpack.c.h.b16 %v338
      %v517 = vunpack.c.l.b16 %v339
      %v518 = vunpack.c.l.b16 %v340
      %v519 = vunpack.c.h.b16 %v340
      %v520 = vunpack.c.l.b16 %v341
      %v521 = vunpack.c.l.b16 %v342
      %v522 = vunpack.c.h.b16 %v342
      %v523 = vunpack.c.l.b16 %v343
      %v524 = vunpack.c.l.b16 %v344
      %v525 = vunpack.c.h.b16 %v344
      %v526 = vunpack.c.l.b16 %v345
      %v527 = vunpack.c.l.b16 %v346
      %v528 = vunpack.c.h.b16 %v346
      %v529 = vunpack.c.l.b16 %v347
      %v530 = vunpack.c.l.b16 %v348
      %v531 = vunpack.c.h.b16 %v348
      %v532 = vunpack.c.l.b16 %v349
      %v533 = vunpack.c.l.b16 %v350
      %v534 = vunpack.c.h.b16 %v350
      %v535 = vunpack.c.l.b16 %v351
      %v536 = vunpack.c.l.b16 %v352
      %v537 = vunpack.c.h.b16 %v352
      %v538 = vunpack.c.l.b16 %v353
      %v539 = vunpack.c.l.b16 %v354
      %v540 = vunpack.c.h.b16 %v354
      %v541 = vunpack.c.l.b16 %v355
      %v542 = vunpack.c.l.b16 %v356
      %v543 = vunpack.c.h.b16 %v356
      %v544 = vunpack.c.l.b16 %v357
      %v545 = vunpack.c.l.b16 %v358
      %v546 = vunpack.c.h.b16 %v358
      %v547 = vunpack.c.l.b16 %v359
      %v548 = vunpack.c.l.b16 %v360
      %v549 = vunpack.c.h.b16 %v360
      %v550 = vunpack.c.l.b16 %v361
      %v551 = vunpack.c.l.b16 %v362
      %v552 = vunpack.c.h.b16 %v362
      %v553 = vunpack.c.l.b16 %v363
      %v554 = vunpack.c.l.b16 %v364
      %v555 = vunpack.c.h.b16 %v364
      %v556 = vunpack.c.l.b16 %v365
      %v557 = vunpack.c.l.b16 %v366
      %v558 = vunpack.c.h.b16 %v366
      %v559 = vunpack.c.l.b16 %v367
      %v560 = vunpack.c.l.b16 %v368
      %v561 = vunpack.c.h.b16 %v368
      %v562 = vunpack.c.l.b16 %v369
      %v563 = vunpack.c.l.b16 %v370
      %v564 = vunpack.c.h.b16 %v370
      %v565 = vunpack.c.l.b16 %v371
      %v566 = vunpack.c.l.b16 %v372
      %v567 = vunpack.c.h.b16 %v372
      %v568 = vunpack.c.l.b16 %v373
      %v569 = vunpack.c.l.b16 %v374
      %v570 = vunpack.c.h.b16 %v374
      %v571 = vunpack.c.l.b16 %v375
      %v572 = vunpack.c.l.b16 %v376
      %v573 = vunpack.c.h.b16 %v376
      %v574 = vunpack.c.l.b16 %v377
      %v575 = vunpack.c.l.b16 %v378
      %v576 = vunpack.c.h.b16 %v378
      %v577 = vunpack.c.l.b16 %v379
      %v578 = vunpack.c.l.b16 %v380
      %v579 = vunpack.c.h.b16 %v380
      %v580 = vunpack.c.l.b16 %v381
      %v581 = vunpack.c.l.b16 %v382
      %v582 = vunpack.c.h.b16 %v382
      %v583 = vunpack.c.l.b16 %v383
      %v584 = vunpack.c.l.b16 %v384
      %v585 = vunpack.c.h.b16 %v384
      %v586 = vunpack.c.l.b16 %v385
      %v587 = vunpack.c.l.b16 %v386
      %v588 = vunpack.c.h.b16 %v386
      %v589 = vunpack.c.l.b16 %v387
      %v590 = vunpack.c.l.b16 %v388
      %v591 = vunpack.c.h.b16 %v388
      %v592 = vunpack.c.l.b16 %v389
      %v593 = vunpack.c.l.b16 %v390
      %v594 = vunpack.c.h.b16 %v390
      %v595 = vunpack.c.l.b16 %v391
      %v596 = vunpack.c.l.b16 %v392
      %v597 = vunpack.c.h.b16 %v392
      %v598 = vunpack.c.l.b16 %v393
      %v599 = vunpack.c.l.b16 %v394
      %v600 = vunpack.c.h.b16 %v394
      %v601 = vunpack.c.l.b16 %v395
      %v602 = vunpack.c.l.b16 %v396
      %v603 = vunpack.c.h.b16 %v396
      %v604 = vunpack.c.l.b16 %v397
      %v605 = vunpack.c.l.b16 %v398
      %v606 = vunpack.c.h.b16 %v398
      %v607 = vunpack.c.l.b16 %v399
      %v608 = vpack.c.b16 %v515, %v512
      %v609 = vpack.c.b16 %v516, %v513
      %v610 = vpack.c.b16 %v517, %v514
      %v611 = vpack.c.b16 %v521, %v518
      %v612 = vpack.c.b16 %v522, %v519
      %v613 = vpack.c.b16 %v523, %v520
      %v614 = vpack.c.b16 %v527, %v524
      %v615 = vpack.c.b16 %v528, %v525
      %v616 = vpack.c.b16 %v529, %v526
      %v617 = vpack.c.b16 %v533, %v530
      %v618 = vpack.c.b16 %v534, %v531
      %v619 = vpack.c.b16 %v535, %v532
      %v620 = vpack.c.b16 %v539, %v536
      %v621 = vpack.c.b16 %v540, %v537
      %v622 = vpack.c.b16 %v541, %v538
      %v623 = vpack.c.b16 %v545, %v542
      %v624 = vpack.c.b16 %v546, %v543
      %v625 = vpack.c.b16 %v547, %v544
      %v626 = vpack.c.b16 %v551, %v548
      %v627 = vpack.c.b16 %v552, %v549
      %v628 = vpack.c.b16 %v553, %v550
      %v629 = vpack.c.b16 %v557, %v554
      %v630 = vpack.c.b16 %v558, %v555
      %v631 = vpack.c.b16 %v559, %v556
      %v632 = vpack.c.b16 %v563, %v560
      %v633 = vpack.c.b16 %v564, %v561
      %v634 = vpack.c.b16 %v565, %v562
      %v635 = vpack.c.b16 %v569, %v566
      %v636 = vpack.c.b16 %v570, %v567
      %v637 = vpack.c.b16 %v571, %v568
      %v638 = vpack.c.b16 %v575, %v572
      %v639 = vpack.c.b16 %v576, %v573
      %v640 = vpack.c.b16 %v577, %v574
      %v641 = vpack.c.b16 %v581, %v578
      %v642 = vpack.c.b16 %v582, %v579
      %v643 = vpack.c.b16 %v583, %v580
      %v644 = vpack.c.b16 %v587, %v584
      %v645 = vpack.c.b16 %v588, %v585
      %v646 = vpack.c.b16 %v589, %v586
      %v647 = vpack.c.b16 %v593, %v590
      %v648 = vpack.c.b16 %v594, %v591
      %v649 = vpack.c.b16 %v595, %v592
      %v650 = vpack.c.b16 %v599, %v596
      %v651 = vpack.c.b16 %v600, %v597
      %v652 = vpack.c.b16 %v601, %v598
      %v653 = vpack.c.b16 %v605, %v602
      %v654 = vpack.c.b16 %v606, %v603
      %v655 = vpack.c.b16 %v607, %v604
      %v752 = vunpack.c.l.b16 %v400
      %v753 = vunpack.c.l.b16 %v401
      %v754 = vunpack.c.l.b16 %v402
      %v755 = vunpack.c.l.b16 %v403
      %v756 = vunpack.c.l.b16 %v404
      %v757 = vunpack.c.l.b16 %v405
      %v758 = vunpack.c.l.b16 %v406
      %v759 = vunpack.c.l.b16 %v407
      %v760 = vunpack.c.l.b16 %v408
      %v761 = vunpack.c.l.b16 %v409
      %v762 = vunpack.c.l.b16 %v410
      %v763 = vunpack.c.l.b16 %v411
      %v764 = vunpack.c.l.b16 %v412
      %v765 = vunpack.c.l.b16 %v413
      %v766 = vunpack.c.l.b16 %v414
      %v767 = vunpack.c.l.b16 %v415
      %v768 = vunpack.c.l.b16 %v416
      %v769 = vunpack.c.l.b16 %v417
      %v770 = vunpack.c.l.b16 %v418
      %v771 = vunpack.c.l.b16 %v419
      %v772 = vunpack.c.l.b16 %v420
      %v773 = vunpack.c.l.b16 %v421
      %v774 = vunpack.c.l.b16 %v422
      %v775 = vunpack.c.l.b16 %v423
      %v776 = vunpack.c.l.b16 %v424
      %v777 = vunpack.c.l.b16 %v425
      %v778 = vunpack.c.l.b16 %v426
      %v779 = vunpack.c.l.b16 %v427
      %v780 = vunpack.c.l.b16 %v428
      %v781 = vunpack.c.l.b16 %v429
      %v782 = vunpack.c.l.b16 %v430
      %v783 = vunpack.c.l.b16 %v431
      %v784 = vunpack.c.l.b16 %v432
      %v785 = vunpack.c.l.b16 %v433
      %v786 = vunpack.c.l.b16 %v434
      %v787 = vunpack.c.l.b16 %v435
      %v788 = vunpack.c.l.b16 %v436
      %v789 = vunpack.c.l.b16 %v437
      %v790 = vunpack.c.l.b16 %v438
      %v791 = vunpack.c.l.b16 %v439
      %v792 = vunpack.c.l.b16 %v440
      %v793 = vunpack.c.l.b16 %v441
      %v794 = vunpack.c.l.b16 %v442
      %v795 = vunpack.c.l.b16 %v443
      %v796 = vunpack.c.l.b16 %v444
      %v797 = vunpack.c.l.b16 %v445
      %v798 = vunpack.c.l.b16 %v446
      %v799 = vunpack.c.l.b16 %v447
      %v800 = vpack.c.b16 %v753, %v752
      %v801 = vpack.c.b16 %v755, %v754
      %v802 = vpack.c.b16 %v757, %v756
      %v803 = vpack.c.b16 %v759, %v758
      %v804 = vpack.c.b16 %v761, %v760
      %v805 = vpack.c.b16 %v763, %v762
      %v806 = vpack.c.b16 %v765, %v764
      %v807 = vpack.c.b16 %v767, %v766
      %v808 = vpack.c.b16 %v769, %v768
      %v809 = vpack.c.b16 %v771, %v770
      %v810 = vpack.c.b16 %v773, %v772
      %v811 = vpack.c.b16 %v775, %v774
      %v812 = vpack.c.b16 %v777, %v776
      %v813 = vpack.c.b16 %v779, %v778
      %v814 = vpack.c.b16 %v781, %v780
      %v815 = vpack.c.b16 %v783, %v782
      %v816 = vpack.c.b16 %v785, %v784
      %v817 = vpack.c.b16 %v787, %v786
      %v818 = vpack.c.b16 %v789, %v788
      %v819 = vpack.c.b16 %v791, %v790
      %v820 = vpack.c.b16 %v793, %v792
      %v821 = vpack.c.b16 %v795, %v794
      %v822 = vpack.c.b16 %v797, %v796
      %v823 = vpack.c.b16 %v799, %v798
      %848 = vmatprep.subr.bf16.mxu0 0
      %849 = vmatpush1.bf16.msra.mxu0 %v800
      %850 = vmatprep.subr.bf16.mxu0 0
      %851 = vmatpush1.bf16.msra.mxu0 %v801
      %852 = vmatprep.subr.bf16.mxu0 0
      %853 = vmatpush1.bf16.msra.mxu0 %v802
      %854 = vmatprep.subr.bf16.mxu0 0
      %855 = vmatpush1.bf16.msra.mxu0 %v803
      %856 = vmatprep.subr.bf16.mxu0 0
      %857 = vmatpush1.bf16.msra.mxu0 %v804
      %858 = vmatprep.subr.bf16.mxu0 0
      %859 = vmatpush1.bf16.msra.mxu0 %v805
      %860 = vmatprep.subr.bf16.mxu0 0
      %861 = vmatpush1.bf16.msra.mxu0 %v806
      %862 = vmatprep.subr.bf16.mxu0 0
      %863 = vmatpush1.bf16.msra.mxu0 %v807
      %864 = vmatprep.subr.bf16.mxu0 0
      %865 = vmatpush1.bf16.msra.mxu0 %v808
      %866 = vmatprep.subr.bf16.mxu0 0
      %867 = vmatpush1.bf16.msra.mxu0 %v809
      %868 = vmatprep.subr.bf16.mxu0 0
      %869 = vmatpush1.bf16.msra.mxu0 %v810
      %870 = vmatprep.subr.bf16.mxu0 0
      %871 = vmatpush1.bf16.msra.mxu0 %v811
      %872 = vmatprep.subr.bf16.mxu0 0
      %873 = vmatpush1.bf16.msra.mxu0 %v812
      %874 = vmatprep.subr.bf16.mxu0 0
      %875 = vmatpush1.bf16.msra.mxu0 %v813
      %876 = vmatprep.subr.bf16.mxu0 0
      %877 = vmatpush1.bf16.msra.mxu0 %v814
      %878 = vmatprep.subr.bf16.mxu0 0
      %879 = vmatpush1.bf16.msra.mxu0 %v815
      %880 = vmatprep.mubr.bf16.mxu0 %v609
      %881 = vmatmul.mubr.bf16.gmra.mrb[0].mxu0 %v608
      %v882 = vpop.f32.mrb[0].mxu0
      %v883 = vadd.f32 0.0, %v882
      %v884 = vpop.f32.mrb[0].mxu0
      %v885 = vpop.f32.mrb[0].mxu0
      %v886 = vadd.f32 0.0, %v885
      %v887 = vpop.f32.mrb[0].mxu0
      %888 = vmatprep.mubr.bf16.mxu0 %v612
      %889 = vmatmul.mubr.bf16.gmra.mrb[0].mxu0 %v611
      %v890 = vpop.f32.mrb[0].mxu0
      %v891 = vadd.f32 0.0, %v890
      %v892 = vpop.f32.mrb[0].mxu0
      %v893 = vpop.f32.mrb[0].mxu0
      %v894 = vadd.f32 0.0, %v893
      %v895 = vpop.f32.mrb[0].mxu0
      %896 = vmatprep.mubr.bf16.mxu0 %v615
      %897 = vmatmul.mubr.bf16.gmra.mrb[0].mxu0 %v614
      %v898 = vpop.f32.mrb[0].mxu0
      %v899 = vadd.f32 0.0, %v898
      %v900 = vpop.f32.mrb[0].mxu0
      %v901 = vpop.f32.mrb[0].mxu0
      %v902 = vadd.f32 0.0, %v901
      %v903 = vpop.f32.mrb[0].mxu0
      %904 = vmatprep.mubr.bf16.mxu0 %v618
      %905 = vmatmul.mubr.bf16.gmra.mrb[0].mxu0 %v617
      %v906 = vpop.f32.mrb[0].mxu0
      %v907 = vadd.f32 0.0, %v906
      %v908 = vpop.f32.mrb[0].mxu0
      %v909 = vpop.f32.mrb[0].mxu0
      %v910 = vadd.f32 0.0, %v909
      %v911 = vpop.f32.mrb[0].mxu0
      %912 = vmatprep.mubr.bf16.mxu0 %v621
      %913 = vmatmul.mubr.bf16.gmra.mrb[0].mxu0 %v620
      %v914 = vpop.f32.mrb[0].mxu0
      %v915 = vadd.f32 0.0, %v914
      %v916 = vpop.f32.mrb[0].mxu0
      %v917 = vpop.f32.mrb[0].mxu0
      %v918 = vadd.f32 0.0, %v917
      %v919 = vpop.f32.mrb[0].mxu0
      %920 = vmatprep.mubr.bf16.mxu0 %v624
      %921 = vmatmul.mubr.bf16.gmra.mrb[0].mxu0 %v623
      %v922 = vpop.f32.mrb[0].mxu0
      %v923 = vadd.f32 0.0, %v922
      %v924 = vpop.f32.mrb[0].mxu0
      %v925 = vpop.f32.mrb[0].mxu0
      %v926 = vadd.f32 0.0, %v925
      %v927 = vpop.f32.mrb[0].mxu0
      %928 = vmatprep.mubr.bf16.mxu0 %v627
      %929 = vmatmul.mubr.bf16.gmra.mrb[0].mxu0 %v626
      %v930 = vpop.f32.mrb[0].mxu0
      %v931 = vadd.f32 0.0, %v930
      %v932 = vpop.f32.mrb[0].mxu0
      %v933 = vpop.f32.mrb[0].mxu0
      %v934 = vadd.f32 0.0, %v933
      %v935 = vpop.f32.mrb[0].mxu0
      %936 = vmatprep.mubr.bf16.mxu0 %v630
      %937 = vmatmul.mubr.bf16.gmra.mrb[0].mxu0 %v629
      %v938 = vpop.f32.mrb[0].mxu0
      %v939 = vadd.f32 0.0, %v938
      %v940 = vpop.f32.mrb[0].mxu0
      %v941 = vpop.f32.mrb[0].mxu0
      %v942 = vadd.f32 0.0, %v941
      %v943 = vpop.f32.mrb[0].mxu0
      %944 = vmatprep.mubr.bf16.mxu0 %v633
      %945 = vmatmul.mubr.bf16.gmra.mrb[0].mxu0 %v632
      %v946 = vpop.f32.mrb[0].mxu0
      %v947 = vadd.f32 0.0, %v946
      %v948 = vpop.f32.mrb[0].mxu0
      %v949 = vpop.f32.mrb[0].mxu0
      %v950 = vadd.f32 0.0, %v949
      %v951 = vpop.f32.mrb[0].mxu0
      %952 = vmatprep.mubr.bf16.mxu0 %v636
      %953 = vmatmul.mubr.bf16.gmra.mrb[0].mxu0 %v635
      %v954 = vpop.f32.mrb[0].mxu0
      %v955 = vadd.f32 0.0, %v954
      %v956 = vpop.f32.mrb[0].mxu0
      %v957 = vpop.f32.mrb[0].mxu0
      %v958 = vadd.f32 0.0, %v957
      %v959 = vpop.f32.mrb[0].mxu0
      %960 = vmatprep.mubr.bf16.mxu0 %v639
      %961 = vmatmul.mubr.bf16.gmra.mrb[0].mxu0 %v638
      %v962 = vpop.f32.mrb[0].mxu0
      %v963 = vadd.f32 0.0, %v962
      %v964 = vpop.f32.mrb[0].mxu0
      %v965 = vpop.f32.mrb[0].mxu0
      %v966 = vadd.f32 0.0, %v965
      %v967 = vpop.f32.mrb[0].mxu0
      %968 = vmatprep.mubr.bf16.mxu0 %v642
      %969 = vmatmul.mubr.bf16.gmra.mrb[0].mxu0 %v641
      %v970 = vpop.f32.mrb[0].mxu0
      %v971 = vadd.f32 0.0, %v970
      %v972 = vpop.f32.mrb[0].mxu0
      %v973 = vpop.f32.mrb[0].mxu0
      %v974 = vadd.f32 0.0, %v973
      %v975 = vpop.f32.mrb[0].mxu0
      %976 = vmatprep.mubr.bf16.mxu0 %v645
      %977 = vmatmul.mubr.bf16.gmra.mrb[0].mxu0 %v644
      %v978 = vpop.f32.mrb[0].mxu0
      %v979 = vadd.f32 0.0, %v978
      %v980 = vpop.f32.mrb[0].mxu0
      %v981 = vpop.f32.mrb[0].mxu0
      %v982 = vadd.f32 0.0, %v981
      %v983 = vpop.f32.mrb[0].mxu0
      %984 = vmatprep.mubr.bf16.mxu0 %v648
      %985 = vmatmul.mubr.bf16.gmra.mrb[0].mxu0 %v647
      %v986 = vpop.f32.mrb[0].mxu0
      %v987 = vadd.f32 0.0, %v986
      %v988 = vpop.f32.mrb[0].mxu0
      %v989 = vpop.f32.mrb[0].mxu0
      %v990 = vadd.f32 0.0, %v989
      %v991 = vpop.f32.mrb[0].mxu0
      %992 = vmatprep.mubr.bf16.mxu0 %v651
      %993 = vmatmul.mubr.bf16.gmra.mrb[0].mxu0 %v650
      %v994 = vpop.f32.mrb[0].mxu0
      %v995 = vadd.f32 0.0, %v994
      %v996 = vpop.f32.mrb[0].mxu0
      %v997 = vpop.f32.mrb[0].mxu0
      %v998 = vadd.f32 0.0, %v997
      %v999 = vpop.f32.mrb[0].mxu0
      %1000 = vmatprep.mubr.bf16.mxu0 %v654
      %1001 = vmatmul.mubr.bf16.gmra.mrb[0].mxu0 %v653
      %v1002 = vpop.f32.mrb[0].mxu0
      %v1003 = vadd.f32 0.0, %v1002
      %v1004 = vpop.f32.mrb[0].mxu0
      %v1005 = vpop.f32.mrb[0].mxu0
      %v1006 = vadd.f32 0.0, %v1005
      %v1007 = vpop.f32.mrb[0].mxu0
      %1008 = vdwg.mxu0
      %1009 = vmatprep.subr.bf16.mxu0 0
      %1010 = vmatpush1.bf16.msra.mxu0 %v816
      %1011 = vmatprep.subr.bf16.mxu0 0
      %1012 = vmatpush1.bf16.msra.mxu0 %v817
      %1013 = vmatprep.subr.bf16.mxu0 0
      %1014 = vmatpush1.bf16.msra.mxu0 %v818
      %1015 = vmatprep.subr.bf16.mxu0 0
      %1016 = vmatpush1.bf16.msra.mxu0 %v819
      %1017 = vmatprep.subr.bf16.mxu0 0
      %1018 = vmatpush1.bf16.msra.mxu0 %v820
      %1019 = vmatprep.subr.bf16.mxu0 0
      %1020 = vmatpush1.bf16.msra.mxu0 %v821
      %1021 = vmatprep.subr.bf16.mxu0 0
      %1022 = vmatpush1.bf16.msra.mxu0 %v822
      %1023 = vmatprep.subr.bf16.mxu0 0
      %1024 = vmatpush1.bf16.msra.mxu0 %v823
      %1025 = vmatprep.subr.bf16.mxu0 0
      %1026 = vmatpush1.bf16.msra.mxu0 0
      %1027 = vmatprep.subr.bf16.mxu0 0
      %1028 = vmatpush1.bf16.msra.mxu0 0
      %1029 = vmatprep.subr.bf16.mxu0 0
      %1030 = vmatpush1.bf16.msra.mxu0 0
      %1031 = vmatprep.subr.bf16.mxu0 0
      %1032 = vmatpush1.bf16.msra.mxu0 0
      %1033 = vmatprep.subr.bf16.mxu0 0
      %1034 = vmatpush1.bf16.msra.mxu0 0
      %1035 = vmatprep.subr.bf16.mxu0 0
      %1036 = vmatpush1.bf16.msra.mxu0 0
      %1037 = vmatprep.subr.bf16.mxu0 0
      %1038 = vmatpush1.bf16.msra.mxu0 0
      %1039 = vmatprep.subr.bf16.mxu0 0
      %1040 = vmatpush1.bf16.msra.mxu0 0
      %1041 = vmatprep.mubr.bf16.mxu0 0
      %1042 = vmatmul.mubr.bf16.gmra.mrb[0].mxu0 %v610
      %v1043 = vpop.f32.mrb[0].mxu0
      %v1044 = vadd.f32 %v883, %v1043
      %v1045 = vpop.f32.mrb[0].mxu0
      %v1046 = vpop.f32.mrb[0].mxu0
      %v1047 = vadd.f32 %v886, %v1046
      %v1048 = vpop.f32.mrb[0].mxu0
      %1049 = vmatprep.mubr.bf16.mxu0 0
      %1050 = vmatmul.mubr.bf16.gmra.mrb[0].mxu0 %v613
      %v1051 = vpop.f32.mrb[0].mxu0
      %v1052 = vadd.f32 %v891, %v1051
      %v1053 = vpop.f32.mrb[0].mxu0
      %v1054 = vpop.f32.mrb[0].mxu0
      %v1055 = vadd.f32 %v894, %v1054
      %v1056 = vpop.f32.mrb[0].mxu0
      %1057 = vmatprep.mubr.bf16.mxu0 0
      %1058 = vmatmul.mubr.bf16.gmra.mrb[0].mxu0 %v616
      %v1059 = vpop.f32.mrb[0].mxu0
      %v1060 = vadd.f32 %v899, %v1059
      %v1061 = vpop.f32.mrb[0].mxu0
      %v1062 = vpop.f32.mrb[0].mxu0
      %v1063 = vadd.f32 %v902, %v1062
      %v1064 = vpop.f32.mrb[0].mxu0
      %1065 = vmatprep.mubr.bf16.mxu0 0
      %1066 = vmatmul.mubr.bf16.gmra.mrb[0].mxu0 %v619
      %v1067 = vpop.f32.mrb[0].mxu0
      %v1068 = vadd.f32 %v907, %v1067
      %v1069 = vpop.f32.mrb[0].mxu0
      %v1070 = vpop.f32.mrb[0].mxu0
      %v1071 = vadd.f32 %v910, %v1070
      %v1072 = vpop.f32.mrb[0].mxu0
      %1073 = vmatprep.mubr.bf16.mxu0 0
      %1074 = vmatmul.mubr.bf16.gmra.mrb[0].mxu0 %v622
      %v1075 = vpop.f32.mrb[0].mxu0
      %v1076 = vadd.f32 %v915, %v1075
      %v1077 = vpop.f32.mrb[0].mxu0
      %v1078 = vpop.f32.mrb[0].mxu0
      %v1079 = vadd.f32 %v918, %v1078
      %v1080 = vpop.f32.mrb[0].mxu0
      %1081 = vmatprep.mubr.bf16.mxu0 0
      %1082 = vmatmul.mubr.bf16.gmra.mrb[0].mxu0 %v625
      %v1083 = vpop.f32.mrb[0].mxu0
      %v1084 = vadd.f32 %v923, %v1083
      %v1085 = vpop.f32.mrb[0].mxu0
      %v1086 = vpop.f32.mrb[0].mxu0
      %v1087 = vadd.f32 %v926, %v1086
      %v1088 = vpop.f32.mrb[0].mxu0
      %1089 = vmatprep.mubr.bf16.mxu0 0
      %1090 = vmatmul.mubr.bf16.gmra.mrb[0].mxu0 %v628
      %v1091 = vpop.f32.mrb[0].mxu0
      %v1092 = vadd.f32 %v931, %v1091
      %v1093 = vpop.f32.mrb[0].mxu0
      %v1094 = vpop.f32.mrb[0].mxu0
      %v1095 = vadd.f32 %v934, %v1094
      %v1096 = vpop.f32.mrb[0].mxu0
      %1097 = vmatprep.mubr.bf16.mxu0 0
      %1098 = vmatmul.mubr.bf16.gmra.mrb[0].mxu0 %v631
      %v1099 = vpop.f32.mrb[0].mxu0
      %v1100 = vadd.f32 %v939, %v1099
      %v1101 = vpop.f32.mrb[0].mxu0
      %v1102 = vpop.f32.mrb[0].mxu0
      %v1103 = vadd.f32 %v942, %v1102
      %v1104 = vpop.f32.mrb[0].mxu0
      %1105 = vmatprep.mubr.bf16.mxu0 0
      %1106 = vmatmul.mubr.bf16.gmra.mrb[0].mxu0 %v634
      %v1107 = vpop.f32.mrb[0].mxu0
      %v1108 = vadd.f32 %v947, %v1107
      %v1109 = vpop.f32.mrb[0].mxu0
      %v1110 = vpop.f32.mrb[0].mxu0
      %v1111 = vadd.f32 %v950, %v1110
      %v1112 = vpop.f32.mrb[0].mxu0
      %1113 = vmatprep.mubr.bf16.mxu0 0
      %1114 = vmatmul.mubr.bf16.gmra.mrb[0].mxu0 %v637
      %v1115 = vpop.f32.mrb[0].mxu0
      %v1116 = vadd.f32 %v955, %v1115
      %v1117 = vpop.f32.mrb[0].mxu0
      %v1118 = vpop.f32.mrb[0].mxu0
      %v1119 = vadd.f32 %v958, %v1118
      %v1120 = vpop.f32.mrb[0].mxu0
      %1121 = vmatprep.mubr.bf16.mxu0 0
      %1122 = vmatmul.mubr.bf16.gmra.mrb[0].mxu0 %v640
      %v1123 = vpop.f32.mrb[0].mxu0
      %v1124 = vadd.f32 %v963, %v1123
      %v1125 = vpop.f32.mrb[0].mxu0
      %v1126 = vpop.f32.mrb[0].mxu0
      %v1127 = vadd.f32 %v966, %v1126
      %v1128 = vpop.f32.mrb[0].mxu0
      %1129 = vmatprep.mubr.bf16.mxu0 0
      %1130 = vmatmul.mubr.bf16.gmra.mrb[0].mxu0 %v643
      %v1131 = vpop.f32.mrb[0].mxu0
      %v1132 = vadd.f32 %v971, %v1131
      %v1133 = vpop.f32.mrb[0].mxu0
      %v1134 = vpop.f32.mrb[0].mxu0
      %v1135 = vadd.f32 %v974, %v1134
      %v1136 = vpop.f32.mrb[0].mxu0
      %1137 = vmatprep.mubr.bf16.mxu0 0
      %1138 = vmatmul.mubr.bf16.gmra.mrb[0].mxu0 %v646
      %v1139 = vpop.f32.mrb[0].mxu0
      %v1140 = vadd.f32 %v979, %v1139
      %v1141 = vpop.f32.mrb[0].mxu0
      %v1142 = vpop.f32.mrb[0].mxu0
      %v1143 = vadd.f32 %v982, %v1142
      %v1144 = vpop.f32.mrb[0].mxu0
      %1145 = vmatprep.mubr.bf16.mxu0 0
      %1146 = vmatmul.mubr.bf16.gmra.mrb[0].mxu0 %v649
      %v1147 = vpop.f32.mrb[0].mxu0
      %v1148 = vadd.f32 %v987, %v1147
      %v1149 = vpop.f32.mrb[0].mxu0
      %v1150 = vpop.f32.mrb[0].mxu0
      %v1151 = vadd.f32 %v990, %v1150
      %v1152 = vpop.f32.mrb[0].mxu0
      %1153 = vmatprep.mubr.bf16.mxu0 0
      %1154 = vmatmul.mubr.bf16.gmra.mrb[0].mxu0 %v652
      %v1155 = vpop.f32.mrb[0].mxu0
      %v1156 = vadd.f32 %v995, %v1155
      %v1157 = vpop.f32.mrb[0].mxu0
      %v1158 = vpop.f32.mrb[0].mxu0
      %v1159 = vadd.f32 %v998, %v1158
      %v1160 = vpop.f32.mrb[0].mxu0
      %1161 = vmatprep.mubr.bf16.mxu0 0
      %1162 = vmatmul.mubr.bf16.gmra.mrb[0].mxu0 %v655
      %v1163 = vpop.f32.mrb[0].mxu0
      %v1164 = vadd.f32 %v1003, %v1163
      %v1165 = vpop.f32.mrb[0].mxu0
      %v1166 = vpop.f32.mrb[0].mxu0
      %v1167 = vadd.f32 %v1006, %v1166
      %v1168 = vpop.f32.mrb[0].mxu0
      %1169 = vdwg.mxu0
      %v1170 = vadd.f32 %v304, %v1044
      %v1171 = vadd.f32 %v305, %v1047
      %v1172 = vadd.f32 %v306, %v1052
      %v1173 = vadd.f32 %v307, %v1055
      %v1174 = vadd.f32 %v308, %v1060
      %v1175 = vadd.f32 %v309, %v1063
      %v1176 = vadd.f32 %v310, %v1068
      %v1177 = vadd.f32 %v311, %v1071
      %v1178 = vadd.f32 %v312, %v1076
      %v1179 = vadd.f32 %v313, %v1079
      %v1180 = vadd.f32 %v314, %v1084
      %v1181 = vadd.f32 %v315, %v1087
      %v1182 = vadd.f32 %v316, %v1092
      %v1183 = vadd.f32 %v317, %v1095
      %v1184 = vadd.f32 %v318, %v1100
      %v1185 = vadd.f32 %v319, %v1103
      %v1186 = vadd.f32 %v320, %v1108
      %v1187 = vadd.f32 %v321, %v1111
      %v1188 = vadd.f32 %v322, %v1116
      %v1189 = vadd.f32 %v323, %v1119
      %v1190 = vadd.f32 %v324, %v1124
      %v1191 = vadd.f32 %v325, %v1127
      %v1192 = vadd.f32 %v326, %v1132
      %v1193 = vadd.f32 %v327, %v1135
      %v1194 = vadd.f32 %v328, %v1140
      %v1195 = vadd.f32 %v329, %v1143
      %v1196 = vadd.f32 %v330, %v1148
      %v1197 = vadd.f32 %v331, %v1151
      %v1198 = vadd.f32 %v332, %v1156
      %v1199 = vadd.f32 %v333, %v1159
      %v1200 = vadd.f32 %v334, %v1164
      %v1201 = vadd.f32 %v335, %v1167
      %1202 = vst [vmem:[%s265] sm:$0xff] %v1170
      %1203 = vst [vmem:[%s265 + $0x8] sm:$0xff] %v1171
      %1204 = vst [vmem:[%s265 + $0x10] sm:$0xff] %v1172
      %1205 = vst [vmem:[%s265 + $0x18] sm:$0xff] %v1173
      %1206 = vst [vmem:[%s265 + $0x20] sm:$0xff] %v1174
      %1207 = vst [vmem:[%s265 + $0x28] sm:$0xff] %v1175
      %1208 = vst [vmem:[%s265 + $0x30] sm:$0xff] %v1176
      %1209 = vst [vmem:[%s265 + $0x38] sm:$0xff] %v1177
      %1210 = vst [vmem:[%s265 + $0x40] sm:$0xff] %v1178
      %1211 = vst [vmem:[%s265 + $0x48] sm:$0xff] %v1179
      %1212 = vst [vmem:[%s265 + $0x50] sm:$0xff] %v1180
      %1213 = vst [vmem:[%s265 + $0x58] sm:$0xff] %v1181
      %1214 = vst [vmem:[%s265 + $0x60] sm:$0xff] %v1182
      %1215 = vst [vmem:[%s265 + $0x68] sm:$0xff] %v1183
      %1216 = vst [vmem:[%s265 + $0x70] sm:$0xff] %v1184
      %1217 = vst [vmem:[%s265 + $0x78] sm:$0xff] %v1185
      %1218 = vst [vmem:[%s265 + $0x80] sm:$0xff] %v1186
      %1219 = vst [vmem:[%s265 + $0x88] sm:$0xff] %v1187
      %1220 = vst [vmem:[%s265 + $0x90] sm:$0xff] %v1188
      %1221 = vst [vmem:[%s265 + $0x98] sm:$0xff] %v1189
      %1222 = vst [vmem:[%s265 + $0xa0] sm:$0xff] %v1190
      %1223 = vst [vmem:[%s265 + $0xa8] sm:$0xff] %v1191
      %1224 = vst [vmem:[%s265 + $0xb0] sm:$0xff] %v1192
      %1225 = vst [vmem:[%s265 + $0xb8] sm:$0xff] %v1193
      %1226 = vst [vmem:[%s265 + $0xc0] sm:$0xff] %v1194
      %1227 = vst [vmem:[%s265 + $0xc8] sm:$0xff] %v1195
      %1228 = vst [vmem:[%s265 + $0xd0] sm:$0xff] %v1196
      %1229 = vst [vmem:[%s265 + $0xd8] sm:$0xff] %v1197
      %1230 = vst [vmem:[%s265 + $0xe0] sm:$0xff] %v1198
      %1231 = vst [vmem:[%s265 + $0xe8] sm:$0xff] %v1199
      %1232 = vst [vmem:[%s265 + $0xf0] sm:$0xff] %v1200
      %1233 = vst [vmem:[%s265 + $0xf8] sm:$0xff] %v1201
      // Predicated region
      $region37: #{stem_res1_forward.8} parent=31 // pred_check
        %p1234 = pneg %p268
      $region38: #{stem_res1_forward.8} parent=31 // pred_check_branch
        %1236 = sbr.rel (%p1234) target = $region40
      $region39: #{stem_res1_forward.8} parent=31 // pred_region
        %v1237 = vld [vmem:[%s265] sm:$0xff]
        %v1238 = vld [vmem:[%s265 + $0x8] sm:$0xff]
        %v1239 = vld [vmem:[%s265 + $0x10] sm:$0xff]
        %v1240 = vld [vmem:[%s265 + $0x18] sm:$0xff]
        %v1241 = vld [vmem:[%s265 + $0x20] sm:$0xff]
        %v1242 = vld [vmem:[%s265 + $0x28] sm:$0xff]
        %v1243 = vld [vmem:[%s265 + $0x30] sm:$0xff]
        %v1244 = vld [vmem:[%s265 + $0x38] sm:$0xff]
        %v1245 = vld [vmem:[%s265 + $0x40] sm:$0xff]
        %v1246 = vld [vmem:[%s265 + $0x48] sm:$0xff]
        %v1247 = vld [vmem:[%s265 + $0x50] sm:$0xff]
        %v1248 = vld [vmem:[%s265 + $0x58] sm:$0xff]
        %v1249 = vld [vmem:[%s265 + $0x60] sm:$0xff]
        %v1250 = vld [vmem:[%s265 + $0x68] sm:$0xff]
        %v1251 = vld [vmem:[%s265 + $0x70] sm:$0xff]
        %v1252 = vld [vmem:[%s265 + $0x78] sm:$0xff]
        %v1253 = vld [vmem:[%s265 + $0x80] sm:$0xff]
        %v1254 = vld [vmem:[%s265 + $0x88] sm:$0xff]
        %v1255 = vld [vmem:[%s265 + $0x90] sm:$0xff]
        %v1256 = vld [vmem:[%s265 + $0x98] sm:$0xff]
        %v1257 = vld [vmem:[%s265 + $0xa0] sm:$0xff]
        %v1258 = vld [vmem:[%s265 + $0xa8] sm:$0xff]
        %v1259 = vld [vmem:[%s265 + $0xb0] sm:$0xff]
        %v1260 = vld [vmem:[%s265 + $0xb8] sm:$0xff]
        %v1261 = vld [vmem:[%s265 + $0xc0] sm:$0xff]
        %v1262 = vld [vmem:[%s265 + $0xc8] sm:$0xff]
        %v1263 = vld [vmem:[%s265 + $0xd0] sm:$0xff]
        %v1264 = vld [vmem:[%s265 + $0xd8] sm:$0xff]
        %v1265 = vld [vmem:[%s265 + $0xe0] sm:$0xff]
        %v1266 = vld [vmem:[%s265 + $0xe8] sm:$0xff]
        %v1267 = vld [vmem:[%s265 + $0xf0] sm:$0xff]
        %v1268 = vld [vmem:[%s265 + $0xf8] sm:$0xff]
        %v1269 = vld [vmem:[%s257] sm:$0x1]
        %v1271 = vlaneseq
        %v1272 = vshrl.u32 %v1271, 7
        %v1273 = vsub.s32 0, %v1272
        %v1274 = vrot.slane %v1269, %v1273
        %v1276 = vadd.f32 %v1237, %v1274
        %v1277 = vadd.f32 %v1238, %v1274
        %v1278 = vadd.f32 %v1239, %v1274
        %v1279 = vadd.f32 %v1240, %v1274
        %v1280 = vadd.f32 %v1241, %v1274
        %v1281 = vadd.f32 %v1242, %v1274
        %v1282 = vadd.f32 %v1243, %v1274
        %v1283 = vadd.f32 %v1244, %v1274
        %v1284 = vadd.f32 %v1245, %v1274
        %v1285 = vadd.f32 %v1246, %v1274
        %v1286 = vadd.f32 %v1247, %v1274
        %v1287 = vadd.f32 %v1248, %v1274
        %v1288 = vadd.f32 %v1249, %v1274
        %v1289 = vadd.f32 %v1250, %v1274
        %v1290 = vadd.f32 %v1251, %v1274
        %v1291 = vadd.f32 %v1252, %v1274
        %v1292 = vadd.f32 %v1253, %v1274
        %v1293 = vadd.f32 %v1254, %v1274
        %v1294 = vadd.f32 %v1255, %v1274
        %v1295 = vadd.f32 %v1256, %v1274
        %v1296 = vadd.f32 %v1257, %v1274
        %v1297 = vadd.f32 %v1258, %v1274
        %v1298 = vadd.f32 %v1259, %v1274
        %v1299 = vadd.f32 %v1260, %v1274
        %v1300 = vadd.f32 %v1261, %v1274
        %v1301 = vadd.f32 %v1262, %v1274
        %v1302 = vadd.f32 %v1263, %v1274
        %v1303 = vadd.f32 %v1264, %v1274
        %v1304 = vadd.f32 %v1265, %v1274
        %v1305 = vadd.f32 %v1266, %v1274
        %v1306 = vadd.f32 %v1267, %v1274
        %v1307 = vadd.f32 %v1268, %v1274
        %v1308 = vmax.f32 %v1276, 0.0
        %v1309 = vmax.f32 %v1277, 0.0
        %v1310 = vmax.f32 %v1278, 0.0
        %v1311 = vmax.f32 %v1279, 0.0
        %v1312 = vmax.f32 %v1280, 0.0
        %v1313 = vmax.f32 %v1281, 0.0
        %v1314 = vmax.f32 %v1282, 0.0
        %v1315 = vmax.f32 %v1283, 0.0
        %v1316 = vmax.f32 %v1284, 0.0
        %v1317 = vmax.f32 %v1285, 0.0
        %v1318 = vmax.f32 %v1286, 0.0
        %v1319 = vmax.f32 %v1287, 0.0
        %v1320 = vmax.f32 %v1288, 0.0
        %v1321 = vmax.f32 %v1289, 0.0
        %v1322 = vmax.f32 %v1290, 0.0
        %v1323 = vmax.f32 %v1291, 0.0
        %v1324 = vmax.f32 %v1292, 0.0
        %v1325 = vmax.f32 %v1293, 0.0
        %v1326 = vmax.f32 %v1294, 0.0
        %v1327 = vmax.f32 %v1295, 0.0
        %v1328 = vmax.f32 %v1296, 0.0
        %v1329 = vmax.f32 %v1297, 0.0
        %v1330 = vmax.f32 %v1298, 0.0
        %v1331 = vmax.f32 %v1299, 0.0
        %v1332 = vmax.f32 %v1300, 0.0
        %v1333 = vmax.f32 %v1301, 0.0
        %v1334 = vmax.f32 %v1302, 0.0
        %v1335 = vmax.f32 %v1303, 0.0
        %v1336 = vmax.f32 %v1304, 0.0
        %v1337 = vmax.f32 %v1305, 0.0
        %v1338 = vmax.f32 %v1306, 0.0
        %v1339 = vmax.f32 %v1307, 0.0
        %1340 = vst [vmem:[%s265] sm:$0xff] %v1308
        %1341 = vst [vmem:[%s265 + $0x8] sm:$0xff] %v1309
        %1342 = vst [vmem:[%s265 + $0x10] sm:$0xff] %v1310
        %1343 = vst [vmem:[%s265 + $0x18] sm:$0xff] %v1311
        %1344 = vst [vmem:[%s265 + $0x20] sm:$0xff] %v1312
        %1345 = vst [vmem:[%s265 + $0x28] sm:$0xff] %v1313
        %1346 = vst [vmem:[%s265 + $0x30] sm:$0xff] %v1314
        %1347 = vst [vmem:[%s265 + $0x38] sm:$0xff] %v1315
        %1348 = vst [vmem:[%s265 + $0x40] sm:$0xff] %v1316
        %1349 = vst [vmem:[%s265 + $0x48] sm:$0xff] %v1317
        %1350 = vst [vmem:[%s265 + $0x50] sm:$0xff] %v1318
        %1351 = vst [vmem:[%s265 + $0x58] sm:$0xff] %v1319
        %1352 = vst [vmem:[%s265 + $0x60] sm:$0xff] %v1320
        %1353 = vst [vmem:[%s265 + $0x68] sm:$0xff] %v1321
        %1354 = vst [vmem:[%s265 + $0x70] sm:$0xff] %v1322
        %1355 = vst [vmem:[%s265 + $0x78] sm:$0xff] %v1323
        %1356 = vst [vmem:[%s265 + $0x80] sm:$0xff] %v1324
        %1357 = vst [vmem:[%s265 + $0x88] sm:$0xff] %v1325
        %1358 = vst [vmem:[%s265 + $0x90] sm:$0xff] %v1326
        %1359 = vst [vmem:[%s265 + $0x98] sm:$0xff] %v1327
        %1360 = vst [vmem:[%s265 + $0xa0] sm:$0xff] %v1328
        %1361 = vst [vmem:[%s265 + $0xa8] sm:$0xff] %v1329
        %1362 = vst [vmem:[%s265 + $0xb0] sm:$0xff] %v1330
        %1363 = vst [vmem:[%s265 + $0xb8] sm:$0xff] %v1331
        %1364 = vst [vmem:[%s265 + $0xc0] sm:$0xff] %v1332
        %1365 = vst [vmem:[%s265 + $0xc8] sm:$0xff] %v1333
        %1366 = vst [vmem:[%s265 + $0xd0] sm:$0xff] %v1334
        %1367 = vst [vmem:[%s265 + $0xd8] sm:$0xff] %v1335
        %1368 = vst [vmem:[%s265 + $0xe0] sm:$0xff] %v1336
        %1369 = vst [vmem:[%s265 + $0xe8] sm:$0xff] %v1337
        %1370 = vst [vmem:[%s265 + $0xf0] sm:$0xff] %v1338
        %1371 = vst [vmem:[%s265 + $0xf8] sm:$0xff] %v1339
      $region40: #{stem_res1_forward.8} parent=31 // pred_fallthru
        _
      %s1372 = smul.u32 32, %s19
      %p1373 = scmp.lt.s32.totalorder %s1372, 63
      %s1374 = scalar_select %p1373, %s1372, 63
      %p1375 = scmp.lt.s32.totalorder %s20, 0
      %s1376 = scalar_select %p1375, %s20, 0
      %s1377 = sadd.s32 %s1376, %s1374
      %s1378 = smul.addr %s1377, 8
      %s1379 = scalar_lea.vmem %s3, %s1378
      // Predicated region
      $region41: #{stem_res1_forward.8} parent=31 // pred_check
        %p1380 = pneg %p135
      $region42: #{stem_res1_forward.8} parent=31 // pred_check_branch
        %1382 = sbr.rel (%p1380) target = $region44
      $region43: #{stem_res1_forward.8} parent=31 // pred_region
        %s1383 = smul.u32 32, %s19
      $region44: #{stem_res1_forward.8} parent=31 // pred_fallthru
        _
    $region32: #{stem_res1_forward.8} parent=5 // pred_fallthru
      _
    %p1384 = scmp.le.s32.totalorder 2, %s9
    // Predicated region
    $region45: #{stem_res1_forward.8} parent=5 // pred_check
      %p1385 = pneg %p1384
    $region46: #{stem_res1_forward.8} parent=5 // pred_check_branch
      %1387 = sbr.rel (%p1385) target = $region48
    $region47: #{stem_res1_forward.8} parent=5 // pred_region
      %s1388 = ssub.s32 %s9, 2
      // Predicated region
      $region49: #{stem_res1_forward.8} parent=47 // pred_check
        %p1389 = pneg %p141
      $region50: #{stem_res1_forward.8} parent=47 // pred_check_branch
        %1391 = sbr.rel (%p1389) target = $region52
      $region51: #{stem_res1_forward.8} parent=47 // pred_region
        %s1392 = smul.u32 32, %s22
        %p1393 = scmp.lt.s32.totalorder %s1392, 63
        %s1394 = scalar_select %p1393, %s1392, 63
        %p1395 = scmp.lt.s32.totalorder %s23, 0
        %s1396 = scalar_select %p1395, %s23, 0
        %s1397 = sadd.s32 %s1396, %s1394
        %s1398 = smul.addr %s1397, 8
        %s1399 = scalar_lea.vmem %s3, %s1398
      $region52: #{stem_res1_forward.8} parent=47 // pred_fallthru
        _
    $region48: #{stem_res1_forward.8} parent=5 // pred_fallthru
      _
  $region6: #{stem_res1_forward.8} parent=0 // loop_footer
    %s13 = sadd.s32 1, %s9
  $region7: #{stem_res1_forward.8} parent=0 // loop_footer_branch
    %8 = sbr.rel target = $region3
  $region8: #{stem_res1_forward.8} parent=0 // loop_exit
    _

// kernel: stem_res1_forward.10
$region0: #{stem_res1_forward.10}
  #allocation0 [shape = 'u32[]', space=smem, size = 0x4, offset = 0x4, fixed_abs, tag = 'smem constant byte address 0x4 - core index']
  #allocation1 [shape = 'u32[144,128]{1,0:T(1,128)}', space=vmem, size = 0x12000, scoped, tag = 'internal scratch']
  %s0 = inlined_call_operand.vmem [shape: f32[9,72,128], index: 0, kind: input, shape index: {}]
  %s1 = inlined_call_operand.vmem [shape: f32[72,128], index: 1, kind: output, shape index: {}]
  %s2 = sld [smem:[#allocation0]]
  $region14: #{stem_res1_forward.10} parent=0
    _
  %s4 = ssub.s32 1, %s2
  %s5 = scalar_select 0, %s4, %s2
  // Predicated region
  $region2: #{stem_res1_forward.10} parent=0 // pred_check
    _
  $region3: #{stem_res1_forward.10} parent=0 // pred_check_branch
    %7 = sbr.rel (0) target = $region5
  $region4: #{stem_res1_forward.10} parent=0 // pred_region
    _
  $region5: #{stem_res1_forward.10} parent=0 // pred_fallthru
    _
  %v8 = vld [vmem:[%s0] sm:$0xff]
  %v9 = vld [vmem:[%s0 + $0x8] sm:$0xff]
  %v10 = vld [vmem:[%s0 + $0x10] sm:$0xff]
  %v11 = vld [vmem:[%s0 + $0x18] sm:$0xff]
  %v12 = vld [vmem:[%s0 + $0x20] sm:$0xff]
  %v13 = vld [vmem:[%s0 + $0x28] sm:$0xff]
  %v14 = vld [vmem:[%s0 + $0x30] sm:$0xff]
  %v15 = vld [vmem:[%s0 + $0x38] sm:$0xff]
  %v16 = vld [vmem:[%s0 + $0x40] sm:$0xff]
  %s17 = scalar_lea.vmem %s0, 72
  %v18 = vld [vmem:[%s17] sm:$0xff]
  %v19 = vld [vmem:[%s17 + $0x8] sm:$0xff]
  %v20 = vld [vmem:[%s17 + $0x10] sm:$0xff]
  %v21 = vld [vmem:[%s17 + $0x18] sm:$0xff]
  %v22 = vld [vmem:[%s17 + $0x20] sm:$0xff]
  %v23 = vld [vmem:[%s17 + $0x28] sm:$0xff]
  %v24 = vld [vmem:[%s17 + $0x30] sm:$0xff]
  %v25 = vld [vmem:[%s17 + $0x38] sm:$0xff]
  %v26 = vld [vmem:[%s17 + $0x40] sm:$0xff]
  %v27 = vmax.f32 %v8, %v18
  %v28 = vmax.f32 %v9, %v19
  %v29 = vmax.f32 %v10, %v20
  %v30 = vmax.f32 %v11, %v21
  %v31 = vmax.f32 %v12, %v22
  %v32 = vmax.f32 %v13, %v23
  %v33 = vmax.f32 %v14, %v24
  %v34 = vmax.f32 %v15, %v25
  %v35 = vmax.f32 %v16, %v26
  %s36 = scalar_lea.vmem %s0, 144
  %v37 = vld [vmem:[%s36] sm:$0xff]
  %v38 = vld [vmem:[%s36 + $0x8] sm:$0xff]
  %v39 = vld [vmem:[%s36 + $0x10] sm:$0xff]
  %v40 = vld [vmem:[%s36 + $0x18] sm:$0xff]
  %v41 = vld [vmem:[%s36 + $0x20] sm:$0xff]
  %v42 = vld [vmem:[%s36 + $0x28] sm:$0xff]
  %v43 = vld [vmem:[%s36 + $0x30] sm:$0xff]
  %v44 = vld [vmem:[%s36 + $0x38] sm:$0xff]
  %v45 = vld [vmem:[%s36 + $0x40] sm:$0xff]
  %v46 = vmax.f32 %v27, %v37
  %v47 = vmax.f32 %v28, %v38
  %v48 = vmax.f32 %v29, %v39
  %v49 = vmax.f32 %v30, %v40
  %v50 = vmax.f32 %v31, %v41
  %v51 = vmax.f32 %v32, %v42
  %v52 = vmax.f32 %v33, %v43
  %v53 = vmax.f32 %v34, %v44
  %v54 = vmax.f32 %v35, %v45
  %s55 = scalar_lea.vmem %s0, 216
  %v56 = vld [vmem:[%s55] sm:$0xff]
  %v57 = vld [vmem:[%s55 + $0x8] sm:$0xff]
  %v58 = vld [vmem:[%s55 + $0x10] sm:$0xff]
  %v59 = vld [vmem:[%s55 + $0x18] sm:$0xff]
  %v60 = vld [vmem:[%s55 + $0x20] sm:$0xff]
  %v61 = vld [vmem:[%s55 + $0x28] sm:$0xff]
  %v62 = vld [vmem:[%s55 + $0x30] sm:$0xff]
  %v63 = vld [vmem:[%s55 + $0x38] sm:$0xff]
  %v64 = vld [vmem:[%s55 + $0x40] sm:$0xff]
  %v65 = vmax.f32 %v46, %v56
  %v66 = vmax.f32 %v47, %v57
  %v67 = vmax.f32 %v48, %v58
  %v68 = vmax.f32 %v49, %v59
  %v69 = vmax.f32 %v50, %v60
  %v70 = vmax.f32 %v51, %v61
  %v71 = vmax.f32 %v52, %v62
  %v72 = vmax.f32 %v53, %v63
  %v73 = vmax.f32 %v54, %v64
  %s74 = scalar_lea.vmem %s0, 288
  %v75 = vld [vmem:[%s74] sm:$0xff]
  %v76 = vld [vmem:[%s74 + $0x8] sm:$0xff]
  %v77 = vld [vmem:[%s74 + $0x10] sm:$0xff]
  %v78 = vld [vmem:[%s74 + $0x18] sm:$0xff]
  %v79 = vld [vmem:[%s74 + $0x20] sm:$0xff]
  %v80 = vld [vmem:[%s74 + $0x28] sm:$0xff]
  %v81 = vld [vmem:[%s74 + $0x30] sm:$0xff]
  %v82 = vld [vmem:[%s74 + $0x38] sm:$0xff]
  %v83 = vld [vmem:[%s74 + $0x40] sm:$0xff]
  %v84 = vmax.f32 %v65, %v75
  %v85 = vmax.f32 %v66, %v76
  %v86 = vmax.f32 %v67, %v77
  %v87 = vmax.f32 %v68, %v78
  %v88 = vmax.f32 %v69, %v79
  %v89 = vmax.f32 %v70, %v80
  %v90 = vmax.f32 %v71, %v81
  %v91 = vmax.f32 %v72, %v82
  %v92 = vmax.f32 %v73, %v83
  %s93 = scalar_lea.vmem %s0, 360
  %v94 = vld [vmem:[%s93] sm:$0xff]
  %v95 = vld [vmem:[%s93 + $0x8] sm:$0xff]
  %v96 = vld [vmem:[%s93 + $0x10] sm:$0xff]
  %v97 = vld [vmem:[%s93 + $0x18] sm:$0xff]
  %v98 = vld [vmem:[%s93 + $0x20] sm:$0xff]
  %v99 = vld [vmem:[%s93 + $0x28] sm:$0xff]
  %v100 = vld [vmem:[%s93 + $0x30] sm:$0xff]
  %v101 = vld [vmem:[%s93 + $0x38] sm:$0xff]
  %v102 = vld [vmem:[%s93 + $0x40] sm:$0xff]
  %v103 = vmax.f32 %v84, %v94
  %v104 = vmax.f32 %v85, %v95
  %v105 = vmax.f32 %v86, %v96
  %v106 = vmax.f32 %v87, %v97
  %v107 = vmax.f32 %v88, %v98
  %v108 = vmax.f32 %v89, %v99
  %v109 = vmax.f32 %v90, %v100
  %v110 = vmax.f32 %v91, %v101
  %v111 = vmax.f32 %v92, %v102
  %s112 = scalar_lea.vmem %s0, 432
  %v113 = vld [vmem:[%s112] sm:$0xff]
  %v114 = vld [vmem:[%s112 + $0x8] sm:$0xff]
  %v115 = vld [vmem:[%s112 + $0x10] sm:$0xff]
  %v116 = vld [vmem:[%s112 + $0x18] sm:$0xff]
  %v117 = vld [vmem:[%s112 + $0x20] sm:$0xff]
  %v118 = vld [vmem:[%s112 + $0x28] sm:$0xff]
  %v119 = vld [vmem:[%s112 + $0x30] sm:$0xff]
  %v120 = vld [vmem:[%s112 + $0x38] sm:$0xff]
  %v121 = vld [vmem:[%s112 + $0x40] sm:$0xff]
  %v122 = vmax.f32 %v103, %v113
  %v123 = vmax.f32 %v104, %v114
  %v124 = vmax.f32 %v105, %v115
  %v125 = vmax.f32 %v106, %v116
  %v126 = vmax.f32 %v107, %v117
  %v127 = vmax.f32 %v108, %v118
  %v128 = vmax.f32 %v109, %v119
  %v129 = vmax.f32 %v110, %v120
  %v130 = vmax.f32 %v111, %v121
  %s131 = scalar_lea.vmem %s0, 504
  %v132 = vld [vmem:[%s131] sm:$0xff]
  %v133 = vld [vmem:[%s131 + $0x8] sm:$0xff]
  %v134 = vld [vmem:[%s131 + $0x10] sm:$0xff]
  %v135 = vld [vmem:[%s131 + $0x18] sm:$0xff]
  %v136 = vld [vmem:[%s131 + $0x20] sm:$0xff]
  %v137 = vld [vmem:[%s131 + $0x28] sm:$0xff]
  %v138 = vld [vmem:[%s131 + $0x30] sm:$0xff]
  %v139 = vld [vmem:[%s131 + $0x38] sm:$0xff]
  %v140 = vld [vmem:[%s131 + $0x40] sm:$0xff]
  %v141 = vmax.f32 %v122, %v132
  %v142 = vmax.f32 %v123, %v133
  %v143 = vmax.f32 %v124, %v134
  %v144 = vmax.f32 %v125, %v135
  %v145 = vmax.f32 %v126, %v136
  %v146 = vmax.f32 %v127, %v137
  %v147 = vmax.f32 %v128, %v138
  %v148 = vmax.f32 %v129, %v139
  %v149 = vmax.f32 %v130, %v140
  %s150 = scalar_lea.vmem %s0, 576
  %v151 = vld [vmem:[%s150] sm:$0xff]
  %v152 = vld [vmem:[%s150 + $0x8] sm:$0xff]
  %v153 = vld [vmem:[%s150 + $0x10] sm:$0xff]
  %v154 = vld [vmem:[%s150 + $0x18] sm:$0xff]
  %v155 = vld [vmem:[%s150 + $0x20] sm:$0xff]
  %v156 = vld [vmem:[%s150 + $0x28] sm:$0xff]
  %v157 = vld [vmem:[%s150 + $0x30] sm:$0xff]
  %v158 = vld [vmem:[%s150 + $0x38] sm:$0xff]
  %v159 = vld [vmem:[%s150 + $0x40] sm:$0xff]
  %v160 = vmax.f32 %v141, %v151
  %v161 = vmax.f32 %v142, %v152
  %v162 = vmax.f32 %v143, %v153
  %v163 = vmax.f32 %v144, %v154
  %v164 = vmax.f32 %v145, %v155
  %v165 = vmax.f32 %v146, %v156
  %v166 = vmax.f32 %v147, %v157
  %v167 = vmax.f32 %v148, %v158
  %v168 = vmax.f32 %v149, %v159
  %169 = vst [vmem:[%s1] sm:$0xff] %v160
  %170 = vst [vmem:[%s1 + $0x8] sm:$0xff] %v161
  %171 = vst [vmem:[%s1 + $0x10] sm:$0xff] %v162
  %172 = vst [vmem:[%s1 + $0x18] sm:$0xff] %v163
  %173 = vst [vmem:[%s1 + $0x20] sm:$0xff] %v164
  %174 = vst [vmem:[%s1 + $0x28] sm:$0xff] %v165
  %175 = vst [vmem:[%s1 + $0x30] sm:$0xff] %v166
  %176 = vst [vmem:[%s1 + $0x38] sm:$0xff] %v167
  %177 = vst [vmem:[%s1 + $0x40] sm:$0xff] %v168
  // Predicated region
  $region6: #{stem_res1_forward.10} parent=0 // pred_check
    _
  $region7: #{stem_res1_forward.10} parent=0 // pred_check_branch
    %179 = sbr.rel (0) target = $region9
  $region8: #{stem_res1_forward.10} parent=0 // pred_region
    _
  $region9: #{stem_res1_forward.10} parent=0 // pred_fallthru
    _
  // Predicated region
  $region10: #{stem_res1_forward.10} parent=0 // pred_check
    _
  $region11: #{stem_res1_forward.10} parent=0 // pred_check_branch
    %181 = sbr.rel (0) target = $region13
  $region12: #{stem_res1_forward.10} parent=0 // pred_region
    _
  $region13: #{stem_res1_forward.10} parent=0 // pred_fallthru
    _

// kernel: stem_res1_forward.11
$region0: #{stem_res1_forward.11}
  #allocation0 [shape = 'u32[]', space=smem, size = 0x4, offset = 0x4, fixed_abs, tag = 'smem constant byte address 0x4 - core index']
  #allocation1 [shape = 'u32[144,128]{1,0:T(1,128)}', space=vmem, size = 0x12000, scoped, tag = 'internal scratch']
  %s0 = inlined_call_operand.vmem [shape: bf16[80,128], index: 0, kind: input, shape index: {}]
  %s1 = inlined_call_operand.vmem [shape: bf16[128,128], index: 1, kind: input, shape index: {}]
  %s2 = inlined_call_operand.vmem [shape: f32[1,128], index: 2, kind: input, shape index: {}]
  %s3 = inlined_call_operand.vmem [shape: f32[80,128], index: 3, kind: output, shape index: {}]
  %s4 = sld [smem:[#allocation0]]
  $region30: #{stem_res1_forward.11} parent=0
    _
  %s6 = ssub.s32 1, %s4
  %s7 = scalar_select 0, %s6, %s4
  // Predicated region
  $region2: #{stem_res1_forward.11} parent=0 // pred_check
    _
  $region3: #{stem_res1_forward.11} parent=0 // pred_check_branch
    %9 = sbr.rel (0) target = $region5
  $region4: #{stem_res1_forward.11} parent=0 // pred_region
    _
  $region5: #{stem_res1_forward.11} parent=0 // pred_fallthru
    _
  // Predicated region
  $region6: #{stem_res1_forward.11} parent=0 // pred_check
    _
  $region7: #{stem_res1_forward.11} parent=0 // pred_check_branch
    %11 = sbr.rel (0) target = $region9
  $region8: #{stem_res1_forward.11} parent=0 // pred_region
    _
  $region9: #{stem_res1_forward.11} parent=0 // pred_fallthru
    _
  // Predicated region
  $region10: #{stem_res1_forward.11} parent=0 // pred_check
    _
  $region11: #{stem_res1_forward.11} parent=0 // pred_check_branch
    %13 = sbr.rel (0) target = $region13
  $region12: #{stem_res1_forward.11} parent=0 // pred_region
    _
  $region13: #{stem_res1_forward.11} parent=0 // pred_fallthru
    _
  %p15 = scmp.eq.s32.totalorder 0, 0
  // Predicated region
  $region14: #{stem_res1_forward.11} parent=0 // pred_check
    %p16 = pneg %p15
  $region15: #{stem_res1_forward.11} parent=0 // pred_check_branch
    %18 = sbr.rel (%p16) target = $region17
  $region16: #{stem_res1_forward.11} parent=0 // pred_region
    %19 = vst [vmem:[%s3] sm:$0xff] 0.0
    %20 = vst [vmem:[%s3 + $0x8] sm:$0xff] 0.0
    %21 = vst [vmem:[%s3 + $0x10] sm:$0xff] 0.0
    %22 = vst [vmem:[%s3 + $0x18] sm:$0xff] 0.0
    %23 = vst [vmem:[%s3 + $0x20] sm:$0xff] 0.0
    %24 = vst [vmem:[%s3 + $0x28] sm:$0xff] 0.0
    %25 = vst [vmem:[%s3 + $0x30] sm:$0xff] 0.0
    %26 = vst [vmem:[%s3 + $0x38] sm:$0xff] 0.0
    %27 = vst [vmem:[%s3 + $0x40] sm:$0xff] 0.0
    %28 = vst [vmem:[%s3 + $0x48] sm:$0xff] 0.0
  $region17: #{stem_res1_forward.11} parent=0 // pred_fallthru
    _
  %v29 = vld [vmem:[%s3] sm:$0xff]
  %v30 = vld [vmem:[%s3 + $0x8] sm:$0xff]
  %v31 = vld [vmem:[%s3 + $0x10] sm:$0xff]
  %v32 = vld [vmem:[%s3 + $0x18] sm:$0xff]
  %v33 = vld [vmem:[%s3 + $0x20] sm:$0xff]
  %v34 = vld [vmem:[%s3 + $0x28] sm:$0xff]
  %v35 = vld [vmem:[%s3 + $0x30] sm:$0xff]
  %v36 = vld [vmem:[%s3 + $0x38] sm:$0xff]
  %v37 = vld [vmem:[%s3 + $0x40] sm:$0xff]
  %v38 = vld [vmem:[%s3 + $0x48] sm:$0xff]
  %v39 = vld [vmem:[%s0] sm:$0xf]
  %v40 = vld [vmem:[%s0 + $0x4] sm:$0xf]
  %v41 = vld [vmem:[%s0 + $0x8] sm:$0xf]
  %v42 = vld [vmem:[%s0 + $0xc] sm:$0xf]
  %v43 = vld [vmem:[%s0 + $0x10] sm:$0xf]
  %v44 = vld [vmem:[%s0 + $0x14] sm:$0xf]
  %v45 = vld [vmem:[%s0 + $0x18] sm:$0xf]
  %v46 = vld [vmem:[%s0 + $0x1c] sm:$0xf]
  %v47 = vld [vmem:[%s0 + $0x20] sm:$0xf]
  %v48 = vld [vmem:[%s0 + $0x24] sm:$0xf]
  %v49 = vld [vmem:[%s1] sm:$0xf]
  %v50 = vld [vmem:[%s1 + $0x4] sm:$0xf]
  %v51 = vld [vmem:[%s1 + $0x8] sm:$0xf]
  %v52 = vld [vmem:[%s1 + $0xc] sm:$0xf]
  %v53 = vld [vmem:[%s1 + $0x10] sm:$0xf]
  %v54 = vld [vmem:[%s1 + $0x14] sm:$0xf]
  %v55 = vld [vmem:[%s1 + $0x18] sm:$0xf]
  %v56 = vld [vmem:[%s1 + $0x1c] sm:$0xf]
  %v57 = vld [vmem:[%s1 + $0x20] sm:$0xf]
  %v58 = vld [vmem:[%s1 + $0x24] sm:$0xf]
  %v59 = vld [vmem:[%s1 + $0x28] sm:$0xf]
  %v60 = vld [vmem:[%s1 + $0x2c] sm:$0xf]
  %v61 = vld [vmem:[%s1 + $0x30] sm:$0xf]
  %v62 = vld [vmem:[%s1 + $0x34] sm:$0xf]
  %v63 = vld [vmem:[%s1 + $0x38] sm:$0xf]
  %v64 = vld [vmem:[%s1 + $0x3c] sm:$0xf]
  %v75 = vunpack.c.l.b16 %v39
  %v76 = vunpack.c.l.b16 %v40
  %v77 = vunpack.c.l.b16 %v41
  %v78 = vunpack.c.l.b16 %v42
  %v79 = vunpack.c.l.b16 %v43
  %v80 = vunpack.c.l.b16 %v44
  %v81 = vunpack.c.l.b16 %v45
  %v82 = vunpack.c.l.b16 %v46
  %v83 = vunpack.c.l.b16 %v47
  %v84 = vunpack.c.l.b16 %v48
  %v85 = vpack.c.b16 %v76, %v75
  %v86 = vpack.c.b16 %v78, %v77
  %v87 = vpack.c.b16 %v80, %v79
  %v88 = vpack.c.b16 %v82, %v81
  %v89 = vpack.c.b16 %v84, %v83
  %v111 = vunpack.c.l.b16 %v49
  %v112 = vunpack.c.l.b16 %v50
  %v113 = vunpack.c.l.b16 %v51
  %v114 = vunpack.c.l.b16 %v52
  %v115 = vunpack.c.l.b16 %v53
  %v116 = vunpack.c.l.b16 %v54
  %v117 = vunpack.c.l.b16 %v55
  %v118 = vunpack.c.l.b16 %v56
  %v119 = vunpack.c.l.b16 %v57
  %v120 = vunpack.c.l.b16 %v58
  %v121 = vunpack.c.l.b16 %v59
  %v122 = vunpack.c.l.b16 %v60
  %v123 = vunpack.c.l.b16 %v61
  %v124 = vunpack.c.l.b16 %v62
  %v125 = vunpack.c.l.b16 %v63
  %v126 = vunpack.c.l.b16 %v64
  %v127 = vpack.c.b16 %v112, %v111
  %v128 = vpack.c.b16 %v114, %v113
  %v129 = vpack.c.b16 %v116, %v115
  %v130 = vpack.c.b16 %v118, %v117
  %v131 = vpack.c.b16 %v120, %v119
  %v132 = vpack.c.b16 %v122, %v121
  %v133 = vpack.c.b16 %v124, %v123
  %v134 = vpack.c.b16 %v126, %v125
  %143 = vmatprep.subr.bf16.mxu0 0
  %144 = vmatpush1.bf16.msra.mxu0 %v127
  %145 = vmatprep.subr.bf16.mxu0 0
  %146 = vmatpush1.bf16.msra.mxu0 %v128
  %147 = vmatprep.subr.bf16.mxu0 0
  %148 = vmatpush1.bf16.msra.mxu0 %v129
  %149 = vmatprep.subr.bf16.mxu0 0
  %150 = vmatpush1.bf16.msra.mxu0 %v130
  %151 = vmatprep.subr.bf16.mxu0 0
  %152 = vmatpush1.bf16.msra.mxu0 %v131
  %153 = vmatprep.subr.bf16.mxu0 0
  %154 = vmatpush1.bf16.msra.mxu0 %v132
  %155 = vmatprep.subr.bf16.mxu0 0
  %156 = vmatpush1.bf16.msra.mxu0 %v133
  %157 = vmatprep.subr.bf16.mxu0 0
  %158 = vmatpush1.bf16.msra.mxu0 %v134
  %159 = vmatprep.subr.bf16.mxu0 0
  %160 = vmatpush1.bf16.msra.mxu0 0
  %161 = vmatprep.subr.bf16.mxu0 0
  %162 = vmatpush1.bf16.msra.mxu0 0
  %163 = vmatprep.subr.bf16.mxu0 0
  %164 = vmatpush1.bf16.msra.mxu0 0
  %165 = vmatprep.subr.bf16.mxu0 0
  %166 = vmatpush1.bf16.msra.mxu0 0
  %167 = vmatprep.subr.bf16.mxu0 0
  %168 = vmatpush1.bf16.msra.mxu0 0
  %169 = vmatprep.subr.bf16.mxu0 0
  %170 = vmatpush1.bf16.msra.mxu0 0
  %171 = vmatprep.subr.bf16.mxu0 0
  %172 = vmatpush1.bf16.msra.mxu0 0
  %173 = vmatprep.subr.bf16.mxu0 0
  %174 = vmatpush1.bf16.msra.mxu0 0
  %175 = vmatprep.mubr.bf16.mxu0 0
  %176 = vmatmul.mubr.bf16.gmra.mrb[0].mxu0 %v85
  %v177 = vpop.f32.mrb[0].mxu0
  %v178 = vadd.f32 0.0, %v177
  %v179 = vpop.f32.mrb[0].mxu0
  %v180 = vpop.f32.mrb[0].mxu0
  %v181 = vadd.f32 0.0, %v180
  %v182 = vpop.f32.mrb[0].mxu0
  %183 = vmatprep.mubr.bf16.mxu0 0
  %184 = vmatmul.mubr.bf16.gmra.mrb[0].mxu0 %v86
  %v185 = vpop.f32.mrb[0].mxu0
  %v186 = vadd.f32 0.0, %v185
  %v187 = vpop.f32.mrb[0].mxu0
  %v188 = vpop.f32.mrb[0].mxu0
  %v189 = vadd.f32 0.0, %v188
  %v190 = vpop.f32.mrb[0].mxu0
  %191 = vmatprep.mubr.bf16.mxu0 0
  %192 = vmatmul.mubr.bf16.gmra.mrb[0].mxu0 %v87
  %v193 = vpop.f32.mrb[0].mxu0
  %v194 = vadd.f32 0.0, %v193
  %v195 = vpop.f32.mrb[0].mxu0
  %v196 = vpop.f32.mrb[0].mxu0
  %v197 = vadd.f32 0.0, %v196
  %v198 = vpop.f32.mrb[0].mxu0
  %199 = vmatprep.mubr.bf16.mxu0 0
  %200 = vmatmul.mubr.bf16.gmra.mrb[0].mxu0 %v88
  %v201 = vpop.f32.mrb[0].mxu0
  %v202 = vadd.f32 0.0, %v201
  %v203 = vpop.f32.mrb[0].mxu0
  %v204 = vpop.f32.mrb[0].mxu0
  %v205 = vadd.f32 0.0, %v204
  %v206 = vpop.f32.mrb[0].mxu0
  %207 = vmatprep.mubr.bf16.mxu0 0
  %208 = vmatmul.mubr.bf16.gmra.mrb[0].mxu0 %v89
  %v209 = vpop.f32.mrb[0].mxu0
  %v210 = vadd.f32 0.0, %v209
  %v211 = vpop.f32.mrb[0].mxu0
  %v212 = vpop.f32.mrb[0].mxu0
  %v213 = vadd.f32 0.0, %v212
  %v214 = vpop.f32.mrb[0].mxu0
  %215 = vdwg.mxu0
  %v216 = vadd.f32 %v29, %v178
  %v217 = vadd.f32 %v30, %v181
  %v218 = vadd.f32 %v31, %v186
  %v219 = vadd.f32 %v32, %v189
  %v220 = vadd.f32 %v33, %v194
  %v221 = vadd.f32 %v34, %v197
  %v222 = vadd.f32 %v35, %v202
  %v223 = vadd.f32 %v36, %v205
  %v224 = vadd.f32 %v37, %v210
  %v225 = vadd.f32 %v38, %v213
  %226 = vst [vmem:[%s3] sm:$0xff] %v216
  %227 = vst [vmem:[%s3 + $0x8] sm:$0xff] %v217
  %228 = vst [vmem:[%s3 + $0x10] sm:$0xff] %v218
  %229 = vst [vmem:[%s3 + $0x18] sm:$0xff] %v219
  %230 = vst [vmem:[%s3 + $0x20] sm:$0xff] %v220
  %231 = vst [vmem:[%s3 + $0x28] sm:$0xff] %v221
  %232 = vst [vmem:[%s3 + $0x30] sm:$0xff] %v222
  %233 = vst [vmem:[%s3 + $0x38] sm:$0xff] %v223
  %234 = vst [vmem:[%s3 + $0x40] sm:$0xff] %v224
  %235 = vst [vmem:[%s3 + $0x48] sm:$0xff] %v225
  // Predicated region
  $region18: #{stem_res1_forward.11} parent=0 // pred_check
    %p236 = pneg %p15
  $region19: #{stem_res1_forward.11} parent=0 // pred_check_branch
    %238 = sbr.rel (%p236) target = $region21
  $region20: #{stem_res1_forward.11} parent=0 // pred_region
    %v239 = vld [vmem:[%s3] sm:$0xff]
    %v240 = vld [vmem:[%s3 + $0x8] sm:$0xff]
    %v241 = vld [vmem:[%s3 + $0x10] sm:$0xff]
    %v242 = vld [vmem:[%s3 + $0x18] sm:$0xff]
    %v243 = vld [vmem:[%s3 + $0x20] sm:$0xff]
    %v244 = vld [vmem:[%s3 + $0x28] sm:$0xff]
    %v245 = vld [vmem:[%s3 + $0x30] sm:$0xff]
    %v246 = vld [vmem:[%s3 + $0x38] sm:$0xff]
    %v247 = vld [vmem:[%s3 + $0x40] sm:$0xff]
    %v248 = vld [vmem:[%s3 + $0x48] sm:$0xff]
    %v249 = vld [vmem:[%s2] sm:$0x1]
    %v251 = vlaneseq
    %v252 = vshrl.u32 %v251, 7
    %v253 = vsub.s32 0, %v252
    %v254 = vrot.slane %v249, %v253
    %v256 = vadd.f32 %v239, %v254
    %v257 = vadd.f32 %v240, %v254
    %v258 = vadd.f32 %v241, %v254
    %v259 = vadd.f32 %v242, %v254
    %v260 = vadd.f32 %v243, %v254
    %v261 = vadd.f32 %v244, %v254
    %v262 = vadd.f32 %v245, %v254
    %v263 = vadd.f32 %v246, %v254
    %v264 = vadd.f32 %v247, %v254
    %v265 = vadd.f32 %v248, %v254
    %v266 = vmax.f32 %v256, 0.0
    %v267 = vmax.f32 %v257, 0.0
    %v268 = vmax.f32 %v258, 0.0
    %v269 = vmax.f32 %v259, 0.0
    %v270 = vmax.f32 %v260, 0.0
    %v271 = vmax.f32 %v261, 0.0
    %v272 = vmax.f32 %v262, 0.0
    %v273 = vmax.f32 %v263, 0.0
    %v274 = vmax.f32 %v264, 0.0
    %v275 = vmax.f32 %v265, 0.0
    %276 = vst [vmem:[%s3] sm:$0xff] %v266
    %277 = vst [vmem:[%s3 + $0x8] sm:$0xff] %v267
    %278 = vst [vmem:[%s3 + $0x10] sm:$0xff] %v268
    %279 = vst [vmem:[%s3 + $0x18] sm:$0xff] %v269
    %280 = vst [vmem:[%s3 + $0x20] sm:$0xff] %v270
    %281 = vst [vmem:[%s3 + $0x28] sm:$0xff] %v271
    %282 = vst [vmem:[%s3 + $0x30] sm:$0xff] %v272
    %283 = vst [vmem:[%s3 + $0x38] sm:$0xff] %v273
    %284 = vst [vmem:[%s3 + $0x40] sm:$0xff] %v274
    %285 = vst [vmem:[%s3 + $0x48] sm:$0xff] %v275
  $region21: #{stem_res1_forward.11} parent=0 // pred_fallthru
    _
  // Predicated region
  $region22: #{stem_res1_forward.11} parent=0 // pred_check
    _
  $region23: #{stem_res1_forward.11} parent=0 // pred_check_branch
    %287 = sbr.rel (0) target = $region25
  $region24: #{stem_res1_forward.11} parent=0 // pred_region
    _
  $region25: #{stem_res1_forward.11} parent=0 // pred_fallthru
    _
  // Predicated region
  $region26: #{stem_res1_forward.11} parent=0 // pred_check
    _
  $region27: #{stem_res1_forward.11} parent=0 // pred_check_branch
    %289 = sbr.rel (0) target = $region29
  $region28: #{stem_res1_forward.11} parent=0 // pred_region
    _
  $region29: #{stem_res1_forward.11} parent=0 // pred_fallthru
    _

// kernel: stem_res1_forward.12
$region0: #{stem_res1_forward.12}
  #allocation0 [shape = 'u32[]', space=smem, size = 0x4, offset = 0x4, fixed_abs, tag = 'smem constant byte address 0x4 - core index']
  #allocation1 [shape = 'u32[144,128]{1,0:T(1,128)}', space=vmem, size = 0x12000, scoped, tag = 'internal scratch']
  %s0 = inlined_call_operand.vmem [shape: bf16[32,768], index: 0, kind: input, shape index: {}]
  %s1 = inlined_call_operand.vmem [shape: bf16[768,256], index: 1, kind: input, shape index: {}]
  %s2 = inlined_call_operand.vmem [shape: f32[1,256], index: 2, kind: input, shape index: {}]
  %s3 = inlined_call_operand.vmem [shape: f32[32,256], index: 3, kind: output, shape index: {}]
  %s4 = sld [smem:[#allocation0]]
  $region30: #{stem_res1_forward.12} parent=0
    _
  %s6 = ssub.s32 1, %s4
  %s7 = scalar_select 0, %s6, %s4
  // Predicated region
  $region2: #{stem_res1_forward.12} parent=0 // pred_check
    _
  $region3: #{stem_res1_forward.12} parent=0 // pred_check_branch
    %9 = sbr.rel (0) target = $region5
  $region4: #{stem_res1_forward.12} parent=0 // pred_region
    _
  $region5: #{stem_res1_forward.12} parent=0 // pred_fallthru
    _
  // Predicated region
  $region6: #{stem_res1_forward.12} parent=0 // pred_check
    _
  $region7: #{stem_res1_forward.12} parent=0 // pred_check_branch
    %11 = sbr.rel (0) target = $region9
  $region8: #{stem_res1_forward.12} parent=0 // pred_region
    _
  $region9: #{stem_res1_forward.12} parent=0 // pred_fallthru
    _
  // Predicated region
  $region10: #{stem_res1_forward.12} parent=0 // pred_check
    _
  $region11: #{stem_res1_forward.12} parent=0 // pred_check_branch
    %13 = sbr.rel (0) target = $region13
  $region12: #{stem_res1_forward.12} parent=0 // pred_region
    _
  $region13: #{stem_res1_forward.12} parent=0 // pred_fallthru
    _
  %p14 = scmp.eq.s32.totalorder 0, 0
  // Predicated region
  $region14: #{stem_res1_forward.12} parent=0 // pred_check
    %p15 = pneg %p14
  $region15: #{stem_res1_forward.12} parent=0 // pred_check_branch
    %17 = sbr.rel (%p15) target = $region17
  $region16: #{stem_res1_forward.12} parent=0 // pred_region
    %18 = vst [vmem:[%s3] sm:$0xff] 0.0
    %19 = vst [vmem:[%s3 + $0x8] sm:$0xff] 0.0
    %20 = vst [vmem:[%s3 + $0x10] sm:$0xff] 0.0
    %21 = vst [vmem:[%s3 + $0x18] sm:$0xff] 0.0
    %22 = vst [vmem:[%s3 + $0x20] sm:$0xff] 0.0
    %23 = vst [vmem:[%s3 + $0x28] sm:$0xff] 0.0
    %24 = vst [vmem:[%s3 + $0x30] sm:$0xff] 0.0
    %25 = vst [vmem:[%s3 + $0x38] sm:$0xff] 0.0
  $region17: #{stem_res1_forward.12} parent=0 // pred_fallthru
    _
  %v26 = vld [vmem:[%s3] sm:$0xff]
  %v27 = vld [vmem:[%s3 + $0x8] sm:$0xff]
  %v28 = vld [vmem:[%s3 + $0x10] sm:$0xff]
  %v29 = vld [vmem:[%s3 + $0x18] sm:$0xff]
  %v30 = vld [vmem:[%s3 + $0x20] sm:$0xff]
  %v31 = vld [vmem:[%s3 + $0x28] sm:$0xff]
  %v32 = vld [vmem:[%s3 + $0x30] sm:$0xff]
  %v33 = vld [vmem:[%s3 + $0x38] sm:$0xff]
  %v34 = vld [vmem:[%s0] sm:$0xff]
  %v35 = vld [vmem:[%s0 + $0x8] sm:$0xff]
  %v36 = vld [vmem:[%s0 + $0x10] sm:$0xff]
  %v37 = vld [vmem:[%s0 + $0x18] sm:$0xff]
  %v38 = vld [vmem:[%s0 + $0x20] sm:$0xff]
  %v39 = vld [vmem:[%s0 + $0x28] sm:$0xff]
  %v40 = vld [vmem:[%s0 + $0x30] sm:$0xff]
  %v41 = vld [vmem:[%s0 + $0x38] sm:$0xff]
  %v42 = vld [vmem:[%s0 + $0x40] sm:$0xff]
  %v43 = vld [vmem:[%s0 + $0x48] sm:$0xff]
  %v44 = vld [vmem:[%s0 + $0x50] sm:$0xff]
  %v45 = vld [vmem:[%s0 + $0x58] sm:$0xff]
  %v46 = vld [vmem:[%s1] sm:$0xff]
  %v47 = vld [vmem:[%s1 + $0x8] sm:$0xff]
  %v48 = vld [vmem:[%s1 + $0x10] sm:$0xff]
  %v49 = vld [vmem:[%s1 + $0x18] sm:$0xff]
  %v50 = vld [vmem:[%s1 + $0x20] sm:$0xff]
  %v51 = vld [vmem:[%s1 + $0x28] sm:$0xff]
  %v52 = vld [vmem:[%s1 + $0x30] sm:$0xff]
  %v53 = vld [vmem:[%s1 + $0x38] sm:$0xff]
  %v54 = vld [vmem:[%s1 + $0x40] sm:$0xff]
  %v55 = vld [vmem:[%s1 + $0x48] sm:$0xff]
  %v56 = vld [vmem:[%s1 + $0x50] sm:$0xff]
  %v57 = vld [vmem:[%s1 + $0x58] sm:$0xff]
  %v58 = vld [vmem:[%s1 + $0x60] sm:$0xff]
  %v59 = vld [vmem:[%s1 + $0x68] sm:$0xff]
  %v60 = vld [vmem:[%s1 + $0x70] sm:$0xff]
  %v61 = vld [vmem:[%s1 + $0x78] sm:$0xff]
  %v62 = vld [vmem:[%s1 + $0x80] sm:$0xff]
  %v63 = vld [vmem:[%s1 + $0x88] sm:$0xff]
  %v64 = vld [vmem:[%s1 + $0x90] sm:$0xff]
  %v65 = vld [vmem:[%s1 + $0x98] sm:$0xff]
  %v66 = vld [vmem:[%s1 + $0xa0] sm:$0xff]
  %v67 = vld [vmem:[%s1 + $0xa8] sm:$0xff]
  %v68 = vld [vmem:[%s1 + $0xb0] sm:$0xff]
  %v69 = vld [vmem:[%s1 + $0xb8] sm:$0xff]
  %v70 = vld [vmem:[%s1 + $0xc0] sm:$0xff]
  %v71 = vld [vmem:[%s1 + $0xc8] sm:$0xff]
  %v72 = vld [vmem:[%s1 + $0xd0] sm:$0xff]
  %v73 = vld [vmem:[%s1 + $0xd8] sm:$0xff]
  %v74 = vld [vmem:[%s1 + $0xe0] sm:$0xff]
  %v75 = vld [vmem:[%s1 + $0xe8] sm:$0xff]
  %v76 = vld [vmem:[%s1 + $0xf0] sm:$0xff]
  %v77 = vld [vmem:[%s1 + $0xf8] sm:$0xff]
  %v78 = vld [vmem:[%s1 + $0x100] sm:$0xff]
  %v79 = vld [vmem:[%s1 + $0x108] sm:$0xff]
  %v80 = vld [vmem:[%s1 + $0x110] sm:$0xff]
  %v81 = vld [vmem:[%s1 + $0x118] sm:$0xff]
  %v82 = vld [vmem:[%s1 + $0x120] sm:$0xff]
  %v83 = vld [vmem:[%s1 + $0x128] sm:$0xff]
  %v84 = vld [vmem:[%s1 + $0x130] sm:$0xff]
  %v85 = vld [vmem:[%s1 + $0x138] sm:$0xff]
  %v86 = vld [vmem:[%s1 + $0x140] sm:$0xff]
  %v87 = vld [vmem:[%s1 + $0x148] sm:$0xff]
  %v88 = vld [vmem:[%s1 + $0x150] sm:$0xff]
  %v89 = vld [vmem:[%s1 + $0x158] sm:$0xff]
  %v90 = vld [vmem:[%s1 + $0x160] sm:$0xff]
  %v91 = vld [vmem:[%s1 + $0x168] sm:$0xff]
  %v92 = vld [vmem:[%s1 + $0x170] sm:$0xff]
  %v93 = vld [vmem:[%s1 + $0x178] sm:$0xff]
  %v94 = vld [vmem:[%s1 + $0x180] sm:$0xff]
  %v95 = vld [vmem:[%s1 + $0x188] sm:$0xff]
  %v96 = vld [vmem:[%s1 + $0x190] sm:$0xff]
  %v97 = vld [vmem:[%s1 + $0x198] sm:$0xff]
  %v98 = vld [vmem:[%s1 + $0x1a0] sm:$0xff]
  %v99 = vld [vmem:[%s1 + $0x1a8] sm:$0xff]
  %v100 = vld [vmem:[%s1 + $0x1b0] sm:$0xff]
  %v101 = vld [vmem:[%s1 + $0x1b8] sm:$0xff]
  %v102 = vld [vmem:[%s1 + $0x1c0] sm:$0xff]
  %v103 = vld [vmem:[%s1 + $0x1c8] sm:$0xff]
  %v104 = vld [vmem:[%s1 + $0x1d0] sm:$0xff]
  %v105 = vld [vmem:[%s1 + $0x1d8] sm:$0xff]
  %v106 = vld [vmem:[%s1 + $0x1e0] sm:$0xff]
  %v107 = vld [vmem:[%s1 + $0x1e8] sm:$0xff]
  %v108 = vld [vmem:[%s1 + $0x1f0] sm:$0xff]
  %v109 = vld [vmem:[%s1 + $0x1f8] sm:$0xff]
  %v110 = vld [vmem:[%s1 + $0x200] sm:$0xff]
  %v111 = vld [vmem:[%s1 + $0x208] sm:$0xff]
  %v112 = vld [vmem:[%s1 + $0x210] sm:$0xff]
  %v113 = vld [vmem:[%s1 + $0x218] sm:$0xff]
  %v114 = vld [vmem:[%s1 + $0x220] sm:$0xff]
  %v115 = vld [vmem:[%s1 + $0x228] sm:$0xff]
  %v116 = vld [vmem:[%s1 + $0x230] sm:$0xff]
  %v117 = vld [vmem:[%s1 + $0x238] sm:$0xff]
  %v118 = vld [vmem:[%s1 + $0x240] sm:$0xff]
  %v119 = vld [vmem:[%s1 + $0x248] sm:$0xff]
  %v120 = vld [vmem:[%s1 + $0x250] sm:$0xff]
  %v121 = vld [vmem:[%s1 + $0x258] sm:$0xff]
  %v122 = vld [vmem:[%s1 + $0x260] sm:$0xff]
  %v123 = vld [vmem:[%s1 + $0x268] sm:$0xff]
  %v124 = vld [vmem:[%s1 + $0x270] sm:$0xff]
  %v125 = vld [vmem:[%s1 + $0x278] sm:$0xff]
  %v126 = vld [vmem:[%s1 + $0x280] sm:$0xff]
  %v127 = vld [vmem:[%s1 + $0x288] sm:$0xff]
  %v128 = vld [vmem:[%s1 + $0x290] sm:$0xff]
  %v129 = vld [vmem:[%s1 + $0x298] sm:$0xff]
  %v130 = vld [vmem:[%s1 + $0x2a0] sm:$0xff]
  %v131 = vld [vmem:[%s1 + $0x2a8] sm:$0xff]
  %v132 = vld [vmem:[%s1 + $0x2b0] sm:$0xff]
  %v133 = vld [vmem:[%s1 + $0x2b8] sm:$0xff]
  %v134 = vld [vmem:[%s1 + $0x2c0] sm:$0xff]
  %v135 = vld [vmem:[%s1 + $0x2c8] sm:$0xff]
  %v136 = vld [vmem:[%s1 + $0x2d0] sm:$0xff]
  %v137 = vld [vmem:[%s1 + $0x2d8] sm:$0xff]
  %v138 = vld [vmem:[%s1 + $0x2e0] sm:$0xff]
  %v139 = vld [vmem:[%s1 + $0x2e8] sm:$0xff]
  %v140 = vld [vmem:[%s1 + $0x2f0] sm:$0xff]
  %v141 = vld [vmem:[%s1 + $0x2f8] sm:$0xff]
  %v154 = vunpack.c.l.b16 %v34
  %v155 = vunpack.c.h.b16 %v34
  %v156 = vunpack.c.l.b16 %v35
  %v157 = vunpack.c.h.b16 %v35
  %v158 = vunpack.c.l.b16 %v36
  %v159 = vunpack.c.h.b16 %v36
  %v160 = vunpack.c.l.b16 %v37
  %v161 = vunpack.c.h.b16 %v37
  %v162 = vunpack.c.l.b16 %v38
  %v163 = vunpack.c.h.b16 %v38
  %v164 = vunpack.c.l.b16 %v39
  %v165 = vunpack.c.h.b16 %v39
  %v166 = vunpack.c.l.b16 %v40
  %v167 = vunpack.c.h.b16 %v40
  %v168 = vunpack.c.l.b16 %v41
  %v169 = vunpack.c.h.b16 %v41
  %v170 = vunpack.c.l.b16 %v42
  %v171 = vunpack.c.h.b16 %v42
  %v172 = vunpack.c.l.b16 %v43
  %v173 = vunpack.c.h.b16 %v43
  %v174 = vunpack.c.l.b16 %v44
  %v175 = vunpack.c.h.b16 %v44
  %v176 = vunpack.c.l.b16 %v45
  %v177 = vunpack.c.h.b16 %v45
  %v178 = vpack.c.b16 %v160, %v154
  %v179 = vpack.c.b16 %v161, %v155
  %v180 = vpack.c.b16 %v162, %v156
  %v181 = vpack.c.b16 %v163, %v157
  %v182 = vpack.c.b16 %v164, %v158
  %v183 = vpack.c.b16 %v165, %v159
  %v184 = vpack.c.b16 %v172, %v166
  %v185 = vpack.c.b16 %v173, %v167
  %v186 = vpack.c.b16 %v174, %v168
  %v187 = vpack.c.b16 %v175, %v169
  %v188 = vpack.c.b16 %v176, %v170
  %v189 = vpack.c.b16 %v177, %v171
  %v298 = vunpack.c.l.b16 %v46
  %v299 = vunpack.c.h.b16 %v46
  %v300 = vunpack.c.l.b16 %v47
  %v301 = vunpack.c.h.b16 %v47
  %v302 = vunpack.c.l.b16 %v48
  %v303 = vunpack.c.h.b16 %v48
  %v304 = vunpack.c.l.b16 %v49
  %v305 = vunpack.c.h.b16 %v49
  %v306 = vunpack.c.l.b16 %v50
  %v307 = vunpack.c.h.b16 %v50
  %v308 = vunpack.c.l.b16 %v51
  %v309 = vunpack.c.h.b16 %v51
  %v310 = vunpack.c.l.b16 %v52
  %v311 = vunpack.c.h.b16 %v52
  %v312 = vunpack.c.l.b16 %v53
  %v313 = vunpack.c.h.b16 %v53
  %v314 = vunpack.c.l.b16 %v54
  %v315 = vunpack.c.h.b16 %v54
  %v316 = vunpack.c.l.b16 %v55
  %v317 = vunpack.c.h.b16 %v55
  %v318 = vunpack.c.l.b16 %v56
  %v319 = vunpack.c.h.b16 %v56
  %v320 = vunpack.c.l.b16 %v57
  %v321 = vunpack.c.h.b16 %v57
  %v322 = vunpack.c.l.b16 %v58
  %v323 = vunpack.c.h.b16 %v58
  %v324 = vunpack.c.l.b16 %v59
  %v325 = vunpack.c.h.b16 %v59
  %v326 = vunpack.c.l.b16 %v60
  %v327 = vunpack.c.h.b16 %v60
  %v328 = vunpack.c.l.b16 %v61
  %v329 = vunpack.c.h.b16 %v61
  %v330 = vunpack.c.l.b16 %v62
  %v331 = vunpack.c.h.b16 %v62
  %v332 = vunpack.c.l.b16 %v63
  %v333 = vunpack.c.h.b16 %v63
  %v334 = vunpack.c.l.b16 %v64
  %v335 = vunpack.c.h.b16 %v64
  %v336 = vunpack.c.l.b16 %v65
  %v337 = vunpack.c.h.b16 %v65
  %v338 = vunpack.c.l.b16 %v66
  %v339 = vunpack.c.h.b16 %v66
  %v340 = vunpack.c.l.b16 %v67
  %v341 = vunpack.c.h.b16 %v67
  %v342 = vunpack.c.l.b16 %v68
  %v343 = vunpack.c.h.b16 %v68
  %v344 = vunpack.c.l.b16 %v69
  %v345 = vunpack.c.h.b16 %v69
  %v346 = vunpack.c.l.b16 %v70
  %v347 = vunpack.c.h.b16 %v70
  %v348 = vunpack.c.l.b16 %v71
  %v349 = vunpack.c.h.b16 %v71
  %v350 = vunpack.c.l.b16 %v72
  %v351 = vunpack.c.h.b16 %v72
  %v352 = vunpack.c.l.b16 %v73
  %v353 = vunpack.c.h.b16 %v73
  %v354 = vunpack.c.l.b16 %v74
  %v355 = vunpack.c.h.b16 %v74
  %v356 = vunpack.c.l.b16 %v75
  %v357 = vunpack.c.h.b16 %v75
  %v358 = vunpack.c.l.b16 %v76
  %v359 = vunpack.c.h.b16 %v76
  %v360 = vunpack.c.l.b16 %v77
  %v361 = vunpack.c.h.b16 %v77
  %v362 = vunpack.c.l.b16 %v78
  %v363 = vunpack.c.h.b16 %v78
  %v364 = vunpack.c.l.b16 %v79
  %v365 = vunpack.c.h.b16 %v79
  %v366 = vunpack.c.l.b16 %v80
  %v367 = vunpack.c.h.b16 %v80
  %v368 = vunpack.c.l.b16 %v81
  %v369 = vunpack.c.h.b16 %v81
  %v370 = vunpack.c.l.b16 %v82
  %v371 = vunpack.c.h.b16 %v82
  %v372 = vunpack.c.l.b16 %v83
  %v373 = vunpack.c.h.b16 %v83
  %v374 = vunpack.c.l.b16 %v84
  %v375 = vunpack.c.h.b16 %v84
  %v376 = vunpack.c.l.b16 %v85
  %v377 = vunpack.c.h.b16 %v85
  %v378 = vunpack.c.l.b16 %v86
  %v379 = vunpack.c.h.b16 %v86
  %v380 = vunpack.c.l.b16 %v87
  %v381 = vunpack.c.h.b16 %v87
  %v382 = vunpack.c.l.b16 %v88
  %v383 = vunpack.c.h.b16 %v88
  %v384 = vunpack.c.l.b16 %v89
  %v385 = vunpack.c.h.b16 %v89
  %v386 = vunpack.c.l.b16 %v90
  %v387 = vunpack.c.h.b16 %v90
  %v388 = vunpack.c.l.b16 %v91
  %v389 = vunpack.c.h.b16 %v91
  %v390 = vunpack.c.l.b16 %v92
  %v391 = vunpack.c.h.b16 %v92
  %v392 = vunpack.c.l.b16 %v93
  %v393 = vunpack.c.h.b16 %v93
  %v394 = vunpack.c.l.b16 %v94
  %v395 = vunpack.c.h.b16 %v94
  %v396 = vunpack.c.l.b16 %v95
  %v397 = vunpack.c.h.b16 %v95
  %v398 = vunpack.c.l.b16 %v96
  %v399 = vunpack.c.h.b16 %v96
  %v400 = vunpack.c.l.b16 %v97
  %v401 = vunpack.c.h.b16 %v97
  %v402 = vunpack.c.l.b16 %v98
  %v403 = vunpack.c.h.b16 %v98
  %v404 = vunpack.c.l.b16 %v99
  %v405 = vunpack.c.h.b16 %v99
  %v406 = vunpack.c.l.b16 %v100
  %v407 = vunpack.c.h.b16 %v100
  %v408 = vunpack.c.l.b16 %v101
  %v409 = vunpack.c.h.b16 %v101
  %v410 = vunpack.c.l.b16 %v102
  %v411 = vunpack.c.h.b16 %v102
  %v412 = vunpack.c.l.b16 %v103
  %v413 = vunpack.c.h.b16 %v103
  %v414 = vunpack.c.l.b16 %v104
  %v415 = vunpack.c.h.b16 %v104
  %v416 = vunpack.c.l.b16 %v105
  %v417 = vunpack.c.h.b16 %v105
  %v418 = vunpack.c.l.b16 %v106
  %v419 = vunpack.c.h.b16 %v106
  %v420 = vunpack.c.l.b16 %v107
  %v421 = vunpack.c.h.b16 %v107
  %v422 = vunpack.c.l.b16 %v108
  %v423 = vunpack.c.h.b16 %v108
  %v424 = vunpack.c.l.b16 %v109
  %v425 = vunpack.c.h.b16 %v109
  %v426 = vunpack.c.l.b16 %v110
  %v427 = vunpack.c.h.b16 %v110
  %v428 = vunpack.c.l.b16 %v111
  %v429 = vunpack.c.h.b16 %v111
  %v430 = vunpack.c.l.b16 %v112
  %v431 = vunpack.c.h.b16 %v112
  %v432 = vunpack.c.l.b16 %v113
  %v433 = vunpack.c.h.b16 %v113
  %v434 = vunpack.c.l.b16 %v114
  %v435 = vunpack.c.h.b16 %v114
  %v436 = vunpack.c.l.b16 %v115
  %v437 = vunpack.c.h.b16 %v115
  %v438 = vunpack.c.l.b16 %v116
  %v439 = vunpack.c.h.b16 %v116
  %v440 = vunpack.c.l.b16 %v117
  %v441 = vunpack.c.h.b16 %v117
  %v442 = vunpack.c.l.b16 %v118
  %v443 = vunpack.c.h.b16 %v118
  %v444 = vunpack.c.l.b16 %v119
  %v445 = vunpack.c.h.b16 %v119
  %v446 = vunpack.c.l.b16 %v120
  %v447 = vunpack.c.h.b16 %v120
  %v448 = vunpack.c.l.b16 %v121
  %v449 = vunpack.c.h.b16 %v121
  %v450 = vunpack.c.l.b16 %v122
  %v451 = vunpack.c.h.b16 %v122
  %v452 = vunpack.c.l.b16 %v123
  %v453 = vunpack.c.h.b16 %v123
  %v454 = vunpack.c.l.b16 %v124
  %v455 = vunpack.c.h.b16 %v124
  %v456 = vunpack.c.l.b16 %v125
  %v457 = vunpack.c.h.b16 %v125
  %v458 = vunpack.c.l.b16 %v126
  %v459 = vunpack.c.h.b16 %v126
  %v460 = vunpack.c.l.b16 %v127
  %v461 = vunpack.c.h.b16 %v127
  %v462 = vunpack.c.l.b16 %v128
  %v463 = vunpack.c.h.b16 %v128
  %v464 = vunpack.c.l.b16 %v129
  %v465 = vunpack.c.h.b16 %v129
  %v466 = vunpack.c.l.b16 %v130
  %v467 = vunpack.c.h.b16 %v130
  %v468 = vunpack.c.l.b16 %v131
  %v469 = vunpack.c.h.b16 %v131
  %v470 = vunpack.c.l.b16 %v132
  %v471 = vunpack.c.h.b16 %v132
  %v472 = vunpack.c.l.b16 %v133
  %v473 = vunpack.c.h.b16 %v133
  %v474 = vunpack.c.l.b16 %v134
  %v475 = vunpack.c.h.b16 %v134
  %v476 = vunpack.c.l.b16 %v135
  %v477 = vunpack.c.h.b16 %v135
  %v478 = vunpack.c.l.b16 %v136
  %v479 = vunpack.c.h.b16 %v136
  %v480 = vunpack.c.l.b16 %v137
  %v481 = vunpack.c.h.b16 %v137
  %v482 = vunpack.c.l.b16 %v138
  %v483 = vunpack.c.h.b16 %v138
  %v484 = vunpack.c.l.b16 %v139
  %v485 = vunpack.c.h.b16 %v139
  %v486 = vunpack.c.l.b16 %v140
  %v487 = vunpack.c.h.b16 %v140
  %v488 = vunpack.c.l.b16 %v141
  %v489 = vunpack.c.h.b16 %v141
  %v490 = vpack.c.b16 %v300, %v298
  %v491 = vpack.c.b16 %v301, %v299
  %v492 = vpack.c.b16 %v304, %v302
  %v493 = vpack.c.b16 %v305, %v303
  %v494 = vpack.c.b16 %v308, %v306
  %v495 = vpack.c.b16 %v309, %v307
  %v496 = vpack.c.b16 %v312, %v310
  %v497 = vpack.c.b16 %v313, %v311
  %v498 = vpack.c.b16 %v316, %v314
  %v499 = vpack.c.b16 %v317, %v315
  %v500 = vpack.c.b16 %v320, %v318
  %v501 = vpack.c.b16 %v321, %v319
  %v502 = vpack.c.b16 %v324, %v322
  %v503 = vpack.c.b16 %v325, %v323
  %v504 = vpack.c.b16 %v328, %v326
  %v505 = vpack.c.b16 %v329, %v327
  %v506 = vpack.c.b16 %v332, %v330
  %v507 = vpack.c.b16 %v333, %v331
  %v508 = vpack.c.b16 %v336, %v334
  %v509 = vpack.c.b16 %v337, %v335
  %v510 = vpack.c.b16 %v340, %v338
  %v511 = vpack.c.b16 %v341, %v339
  %v512 = vpack.c.b16 %v344, %v342
  %v513 = vpack.c.b16 %v345, %v343
  %v514 = vpack.c.b16 %v348, %v346
  %v515 = vpack.c.b16 %v349, %v347
  %v516 = vpack.c.b16 %v352, %v350
  %v517 = vpack.c.b16 %v353, %v351
  %v518 = vpack.c.b16 %v356, %v354
  %v519 = vpack.c.b16 %v357, %v355
  %v520 = vpack.c.b16 %v360, %v358
  %v521 = vpack.c.b16 %v361, %v359
  %v522 = vpack.c.b16 %v364, %v362
  %v523 = vpack.c.b16 %v365, %v363
  %v524 = vpack.c.b16 %v368, %v366
  %v525 = vpack.c.b16 %v369, %v367
  %v526 = vpack.c.b16 %v372, %v370
  %v527 = vpack.c.b16 %v373, %v371
  %v528 = vpack.c.b16 %v376, %v374
  %v529 = vpack.c.b16 %v377, %v375
  %v530 = vpack.c.b16 %v380, %v378
  %v531 = vpack.c.b16 %v381, %v379
  %v532 = vpack.c.b16 %v384, %v382
  %v533 = vpack.c.b16 %v385, %v383
  %v534 = vpack.c.b16 %v388, %v386
  %v535 = vpack.c.b16 %v389, %v387
  %v536 = vpack.c.b16 %v392, %v390
  %v537 = vpack.c.b16 %v393, %v391
  %v538 = vpack.c.b16 %v396, %v394
  %v539 = vpack.c.b16 %v397, %v395
  %v540 = vpack.c.b16 %v400, %v398
  %v541 = vpack.c.b16 %v401, %v399
  %v542 = vpack.c.b16 %v404, %v402
  %v543 = vpack.c.b16 %v405, %v403
  %v544 = vpack.c.b16 %v408, %v406
  %v545 = vpack.c.b16 %v409, %v407
  %v546 = vpack.c.b16 %v412, %v410
  %v547 = vpack.c.b16 %v413, %v411
  %v548 = vpack.c.b16 %v416, %v414
  %v549 = vpack.c.b16 %v417, %v415
  %v550 = vpack.c.b16 %v420, %v418
  %v551 = vpack.c.b16 %v421, %v419
  %v552 = vpack.c.b16 %v424, %v422
  %v553 = vpack.c.b16 %v425, %v423
  %v554 = vpack.c.b16 %v428, %v426
  %v555 = vpack.c.b16 %v429, %v427
  %v556 = vpack.c.b16 %v432, %v430
  %v557 = vpack.c.b16 %v433, %v431
  %v558 = vpack.c.b16 %v436, %v434
  %v559 = vpack.c.b16 %v437, %v435
  %v560 = vpack.c.b16 %v440, %v438
  %v561 = vpack.c.b16 %v441, %v439
  %v562 = vpack.c.b16 %v444, %v442
  %v563 = vpack.c.b16 %v445, %v443
  %v564 = vpack.c.b16 %v448, %v446
  %v565 = vpack.c.b16 %v449, %v447
  %v566 = vpack.c.b16 %v452, %v450
  %v567 = vpack.c.b16 %v453, %v451
  %v568 = vpack.c.b16 %v456, %v454
  %v569 = vpack.c.b16 %v457, %v455
  %v570 = vpack.c.b16 %v460, %v458
  %v571 = vpack.c.b16 %v461, %v459
  %v572 = vpack.c.b16 %v464, %v462
  %v573 = vpack.c.b16 %v465, %v463
  %v574 = vpack.c.b16 %v468, %v466
  %v575 = vpack.c.b16 %v469, %v467
  %v576 = vpack.c.b16 %v472, %v470
  %v577 = vpack.c.b16 %v473, %v471
  %v578 = vpack.c.b16 %v476, %v474
  %v579 = vpack.c.b16 %v477, %v475
  %v580 = vpack.c.b16 %v480, %v478
  %v581 = vpack.c.b16 %v481, %v479
  %v582 = vpack.c.b16 %v484, %v482
  %v583 = vpack.c.b16 %v485, %v483
  %v584 = vpack.c.b16 %v488, %v486
  %v585 = vpack.c.b16 %v489, %v487
  %682 = vmatprep.subr.bf16.mxu0 %v491
  %683 = vmatpush1.bf16.msra.mxu0 %v490
  %684 = vmatprep.subr.bf16.mxu0 %v493
  %685 = vmatpush1.bf16.msra.mxu0 %v492
  %686 = vmatprep.subr.bf16.mxu0 %v495
  %687 = vmatpush1.bf16.msra.mxu0 %v494
  %688 = vmatprep.subr.bf16.mxu0 %v497
  %689 = vmatpush1.bf16.msra.mxu0 %v496
  %690 = vmatprep.subr.bf16.mxu0 %v499
  %691 = vmatpush1.bf16.msra.mxu0 %v498
  %692 = vmatprep.subr.bf16.mxu0 %v501
  %693 = vmatpush1.bf16.msra.mxu0 %v500
  %694 = vmatprep.subr.bf16.mxu0 %v503
  %695 = vmatpush1.bf16.msra.mxu0 %v502
  %696 = vmatprep.subr.bf16.mxu0 %v505
  %697 = vmatpush1.bf16.msra.mxu0 %v504
  %698 = vmatprep.subr.bf16.mxu0 %v507
  %699 = vmatpush1.bf16.msra.mxu0 %v506
  %700 = vmatprep.subr.bf16.mxu0 %v509
  %701 = vmatpush1.bf16.msra.mxu0 %v508
  %702 = vmatprep.subr.bf16.mxu0 %v511
  %703 = vmatpush1.bf16.msra.mxu0 %v510
  %704 = vmatprep.subr.bf16.mxu0 %v513
  %705 = vmatpush1.bf16.msra.mxu0 %v512
  %706 = vmatprep.subr.bf16.mxu0 %v515
  %707 = vmatpush1.bf16.msra.mxu0 %v514
  %708 = vmatprep.subr.bf16.mxu0 %v517
  %709 = vmatpush1.bf16.msra.mxu0 %v516
  %710 = vmatprep.subr.bf16.mxu0 %v519
  %711 = vmatpush1.bf16.msra.mxu0 %v518
  %712 = vmatprep.subr.bf16.mxu0 %v521
  %713 = vmatpush1.bf16.msra.mxu0 %v520
  %714 = vmatprep.mubr.bf16.mxu0 %v179
  %715 = vmatmul.mubr.bf16.gmra.mrb[0].mxu0 %v178
  %v716 = vpop.f32.mrb[0].mxu0
  %v717 = vadd.f32 0.0, %v716
  %v718 = vpop.f32.mrb[0].mxu0
  %v719 = vadd.f32 0.0, %v718
  %v720 = vpop.f32.mrb[0].mxu0
  %v721 = vadd.f32 0.0, %v720
  %v722 = vpop.f32.mrb[0].mxu0
  %v723 = vadd.f32 0.0, %v722
  %724 = vmatprep.mubr.bf16.mxu0 %v185
  %725 = vmatmul.mubr.bf16.gmra.mrb[0].mxu0 %v184
  %v726 = vpop.f32.mrb[0].mxu0
  %v727 = vadd.f32 0.0, %v726
  %v728 = vpop.f32.mrb[0].mxu0
  %v729 = vadd.f32 0.0, %v728
  %v730 = vpop.f32.mrb[0].mxu0
  %v731 = vadd.f32 0.0, %v730
  %v732 = vpop.f32.mrb[0].mxu0
  %v733 = vadd.f32 0.0, %v732
  %734 = vdwg.mxu0
  %735 = vmatprep.subr.bf16.mxu0 %v523
  %736 = vmatpush1.bf16.msra.mxu0 %v522
  %737 = vmatprep.subr.bf16.mxu0 %v525
  %738 = vmatpush1.bf16.msra.mxu0 %v524
  %739 = vmatprep.subr.bf16.mxu0 %v527
  %740 = vmatpush1.bf16.msra.mxu0 %v526
  %741 = vmatprep.subr.bf16.mxu0 %v529
  %742 = vmatpush1.bf16.msra.mxu0 %v528
  %743 = vmatprep.subr.bf16.mxu0 %v531
  %744 = vmatpush1.bf16.msra.mxu0 %v530
  %745 = vmatprep.subr.bf16.mxu0 %v533
  %746 = vmatpush1.bf16.msra.mxu0 %v532
  %747 = vmatprep.subr.bf16.mxu0 %v535
  %748 = vmatpush1.bf16.msra.mxu0 %v534
  %749 = vmatprep.subr.bf16.mxu0 %v537
  %750 = vmatpush1.bf16.msra.mxu0 %v536
  %751 = vmatprep.subr.bf16.mxu0 %v539
  %752 = vmatpush1.bf16.msra.mxu0 %v538
  %753 = vmatprep.subr.bf16.mxu0 %v541
  %754 = vmatpush1.bf16.msra.mxu0 %v540
  %755 = vmatprep.subr.bf16.mxu0 %v543
  %756 = vmatpush1.bf16.msra.mxu0 %v542
  %757 = vmatprep.subr.bf16.mxu0 %v545
  %758 = vmatpush1.bf16.msra.mxu0 %v544
  %759 = vmatprep.subr.bf16.mxu0 %v547
  %760 = vmatpush1.bf16.msra.mxu0 %v546
  %761 = vmatprep.subr.bf16.mxu0 %v549
  %762 = vmatpush1.bf16.msra.mxu0 %v548
  %763 = vmatprep.subr.bf16.mxu0 %v551
  %764 = vmatpush1.bf16.msra.mxu0 %v550
  %765 = vmatprep.subr.bf16.mxu0 %v553
  %766 = vmatpush1.bf16.msra.mxu0 %v552
  %767 = vmatprep.mubr.bf16.mxu0 %v181
  %768 = vmatmul.mubr.bf16.gmra.mrb[0].mxu0 %v180
  %v769 = vpop.f32.mrb[0].mxu0
  %v770 = vadd.f32 %v717, %v769
  %v771 = vpop.f32.mrb[0].mxu0
  %v772 = vadd.f32 %v719, %v771
  %v773 = vpop.f32.mrb[0].mxu0
  %v774 = vadd.f32 %v721, %v773
  %v775 = vpop.f32.mrb[0].mxu0
  %v776 = vadd.f32 %v723, %v775
  %777 = vmatprep.mubr.bf16.mxu0 %v187
  %778 = vmatmul.mubr.bf16.gmra.mrb[0].mxu0 %v186
  %v779 = vpop.f32.mrb[0].mxu0
  %v780 = vadd.f32 %v727, %v779
  %v781 = vpop.f32.mrb[0].mxu0
  %v782 = vadd.f32 %v729, %v781
  %v783 = vpop.f32.mrb[0].mxu0
  %v784 = vadd.f32 %v731, %v783
  %v785 = vpop.f32.mrb[0].mxu0
  %v786 = vadd.f32 %v733, %v785
  %787 = vdwg.mxu0
  %788 = vmatprep.subr.bf16.mxu0 %v555
  %789 = vmatpush1.bf16.msra.mxu0 %v554
  %790 = vmatprep.subr.bf16.mxu0 %v557
  %791 = vmatpush1.bf16.msra.mxu0 %v556
  %792 = vmatprep.subr.bf16.mxu0 %v559
  %793 = vmatpush1.bf16.msra.mxu0 %v558
  %794 = vmatprep.subr.bf16.mxu0 %v561
  %795 = vmatpush1.bf16.msra.mxu0 %v560
  %796 = vmatprep.subr.bf16.mxu0 %v563
  %797 = vmatpush1.bf16.msra.mxu0 %v562
  %798 = vmatprep.subr.bf16.mxu0 %v565
  %799 = vmatpush1.bf16.msra.mxu0 %v564
  %800 = vmatprep.subr.bf16.mxu0 %v567
  %801 = vmatpush1.bf16.msra.mxu0 %v566
  %802 = vmatprep.subr.bf16.mxu0 %v569
  %803 = vmatpush1.bf16.msra.mxu0 %v568
  %804 = vmatprep.subr.bf16.mxu0 %v571
  %805 = vmatpush1.bf16.msra.mxu0 %v570
  %806 = vmatprep.subr.bf16.mxu0 %v573
  %807 = vmatpush1.bf16.msra.mxu0 %v572
  %808 = vmatprep.subr.bf16.mxu0 %v575
  %809 = vmatpush1.bf16.msra.mxu0 %v574
  %810 = vmatprep.subr.bf16.mxu0 %v577
  %811 = vmatpush1.bf16.msra.mxu0 %v576
  %812 = vmatprep.subr.bf16.mxu0 %v579
  %813 = vmatpush1.bf16.msra.mxu0 %v578
  %814 = vmatprep.subr.bf16.mxu0 %v581
  %815 = vmatpush1.bf16.msra.mxu0 %v580
  %816 = vmatprep.subr.bf16.mxu0 %v583
  %817 = vmatpush1.bf16.msra.mxu0 %v582
  %818 = vmatprep.subr.bf16.mxu0 %v585
  %819 = vmatpush1.bf16.msra.mxu0 %v584
  %820 = vmatprep.mubr.bf16.mxu0 %v183
  %821 = vmatmul.mubr.bf16.gmra.mrb[0].mxu0 %v182
  %v822 = vpop.f32.mrb[0].mxu0
  %v823 = vadd.f32 %v770, %v822
  %v824 = vpop.f32.mrb[0].mxu0
  %v825 = vadd.f32 %v772, %v824
  %v826 = vpop.f32.mrb[0].mxu0
  %v827 = vadd.f32 %v774, %v826
  %v828 = vpop.f32.mrb[0].mxu0
  %v829 = vadd.f32 %v776, %v828
  %830 = vmatprep.mubr.bf16.mxu0 %v189
  %831 = vmatmul.mubr.bf16.gmra.mrb[0].mxu0 %v188
  %v832 = vpop.f32.mrb[0].mxu0
  %v833 = vadd.f32 %v780, %v832
  %v834 = vpop.f32.mrb[0].mxu0
  %v835 = vadd.f32 %v782, %v834
  %v836 = vpop.f32.mrb[0].mxu0
  %v837 = vadd.f32 %v784, %v836
  %v838 = vpop.f32.mrb[0].mxu0
  %v839 = vadd.f32 %v786, %v838
  %840 = vdwg.mxu0
  %v841 = vadd.f32 %v26, %v823
  %v842 = vadd.f32 %v27, %v825
  %v843 = vadd.f32 %v28, %v827
  %v844 = vadd.f32 %v29, %v829
  %v845 = vadd.f32 %v30, %v833
  %v846 = vadd.f32 %v31, %v835
  %v847 = vadd.f32 %v32, %v837
  %v848 = vadd.f32 %v33, %v839
  %849 = vst [vmem:[%s3] sm:$0xff] %v841
  %850 = vst [vmem:[%s3 + $0x8] sm:$0xff] %v842
  %851 = vst [vmem:[%s3 + $0x10] sm:$0xff] %v843
  %852 = vst [vmem:[%s3 + $0x18] sm:$0xff] %v844
  %853 = vst [vmem:[%s3 + $0x20] sm:$0xff] %v845
  %854 = vst [vmem:[%s3 + $0x28] sm:$0xff] %v846
  %855 = vst [vmem:[%s3 + $0x30] sm:$0xff] %v847
  %856 = vst [vmem:[%s3 + $0x38] sm:$0xff] %v848
  // Predicated region
  $region18: #{stem_res1_forward.12} parent=0 // pred_check
    %p857 = pneg %p14
  $region19: #{stem_res1_forward.12} parent=0 // pred_check_branch
    %859 = sbr.rel (%p857) target = $region21
  $region20: #{stem_res1_forward.12} parent=0 // pred_region
    %v860 = vld [vmem:[%s3] sm:$0xff]
    %v861 = vld [vmem:[%s3 + $0x8] sm:$0xff]
    %v862 = vld [vmem:[%s3 + $0x10] sm:$0xff]
    %v863 = vld [vmem:[%s3 + $0x18] sm:$0xff]
    %v864 = vld [vmem:[%s3 + $0x20] sm:$0xff]
    %v865 = vld [vmem:[%s3 + $0x28] sm:$0xff]
    %v866 = vld [vmem:[%s3 + $0x30] sm:$0xff]
    %v867 = vld [vmem:[%s3 + $0x38] sm:$0xff]
    %v868 = vld [vmem:[%s2] sm:$0x3]
    %v870 = vlaneseq
    %v871 = vshrl.u32 %v870, 7
    %v872 = vsub.s32 0, %v871
    %v873 = vrot.slane %v868, %v872
    %v874 = vlaneseq
    %v875 = vshrl.u32 %v874, 7
    %v876 = vsub.s32 1, %v875
    %v877 = vrot.slane %v868, %v876
    %v880 = vadd.f32 %v860, %v873
    %v881 = vadd.f32 %v861, %v877
    %v882 = vadd.f32 %v862, %v873
    %v883 = vadd.f32 %v863, %v877
    %v884 = vadd.f32 %v864, %v873
    %v885 = vadd.f32 %v865, %v877
    %v886 = vadd.f32 %v866, %v873
    %v887 = vadd.f32 %v867, %v877
    %v888 = vmax.f32 %v880, 0.0
    %v889 = vmax.f32 %v881, 0.0
    %v890 = vmax.f32 %v882, 0.0
    %v891 = vmax.f32 %v883, 0.0
    %v892 = vmax.f32 %v884, 0.0
    %v893 = vmax.f32 %v885, 0.0
    %v894 = vmax.f32 %v886, 0.0
    %v895 = vmax.f32 %v887, 0.0
    %896 = vst [vmem:[%s3] sm:$0xff] %v888
    %897 = vst [vmem:[%s3 + $0x8] sm:$0xff] %v889
    %898 = vst [vmem:[%s3 + $0x10] sm:$0xff] %v890
    %899 = vst [vmem:[%s3 + $0x18] sm:$0xff] %v891
    %900 = vst [vmem:[%s3 + $0x20] sm:$0xff] %v892
    %901 = vst [vmem:[%s3 + $0x28] sm:$0xff] %v893
    %902 = vst [vmem:[%s3 + $0x30] sm:$0xff] %v894
    %903 = vst [vmem:[%s3 + $0x38] sm:$0xff] %v895
  $region21: #{stem_res1_forward.12} parent=0 // pred_fallthru
    _
  // Predicated region
  $region22: #{stem_res1_forward.12} parent=0 // pred_check
    _
  $region23: #{stem_res1_forward.12} parent=0 // pred_check_branch
    %905 = sbr.rel (0) target = $region25
  $region24: #{stem_res1_forward.12} parent=0 // pred_region
    _
  $region25: #{stem_res1_forward.12} parent=0 // pred_fallthru
    _
  // Predicated region
  $region26: #{stem_res1_forward.12} parent=0 // pred_check
    _
  $region27: #{stem_res1_forward.12} parent=0 // pred_check_branch
    %907 = sbr.rel (0) target = $region29
  $region28: #{stem_res1_forward.12} parent=0 // pred_region
    _
  $region29: #{stem_res1_forward.12} parent=0 // pred_fallthru
    _

// kernel: stem_res1_forward.13
$region0: #{stem_res1_forward.13}
  #allocation0 [shape = 'u32[]', space=smem, size = 0x4, offset = 0x4, fixed_abs, tag = 'smem constant byte address 0x4 - core index']
  #allocation1 [shape = 'u32[144,128]{1,0:T(1,128)}', space=vmem, size = 0x12000, scoped, tag = 'internal scratch']
  %s0 = inlined_call_operand.vmem [shape: bf16[16,2048], index: 0, kind: input, shape index: {}]
  %s1 = inlined_call_operand.vmem [shape: bf16[2048,256], index: 1, kind: input, shape index: {}]
  %s2 = inlined_call_operand.vmem [shape: f32[1,256], index: 2, kind: input, shape index: {}]
  %s3 = inlined_call_operand.vmem [shape: f32[16,256], index: 3, kind: output, shape index: {}]
  %s4 = sld [smem:[#allocation0]]
  $region76: #{stem_res1_forward.13} parent=0
    _
  %s6 = ssub.s32 1, %s4
  %s7 = scalar_select 0, %s6, %s4
  $region1: #{stem_res1_forward.13} parent=0
    #allocation2 [shape = 'u8[65536]{0}', space=vmem, size = 0x10000, scoped, tag = 'input window, operand 0']
    loop: start=0, step=1, limit=4
    $region2: #{stem_res1_forward.13} parent=1 // loop_pre_header
      _
    $region3: #{stem_res1_forward.13} parent=1 // loop_header
      %s9 = sphi 0, %s13
      %p10 = scmp.ge.s32.totalorder %s9, 4
      %s16 = sphi 0, %s35
      %s17 = sphi 0, %s31
      %s18 = sphi 0, %s27
      %s19 = sphi 0, %s16
      %s20 = sphi 0, %s17
      %s21 = sphi 0, %s18
      %s22 = sphi 0, %s19
      %s23 = sphi 0, %s20
      %s24 = sphi 0, %s21
      %s40 = sphi 0, %s42
      %s43 = sphi 0, %s40
      %s44 = sphi 0, %s43
      %s60 = sphi 0, %s44
      %s68 = sphi 0, %s70
      %s71 = sphi 0, %s68
      %s72 = sphi 0, %s71
      %s88 = sphi 0, %s72
      %s94 = sphi 0, %s96
      %s97 = sphi 0, %s94
      %s98 = sphi 0, %s97
      %s114 = sphi 0, %s98
      %s122 = sphi 0, %s124
      %s125 = sphi 0, %s122
      %s126 = sphi 0, %s125
      %s142 = sphi 0, %s126
    $region4: #{stem_res1_forward.13} parent=1 // loop_header_branch
      %12 = sbr.rel (%p10) target = $region8
    $region5: #{stem_res1_forward.13} parent=1 // loop_body
      %s14 = ssub.s32 %s9, 1
      %s15 = ssub.s32 %s9, 2
      %s25 = sadd.s32 1, %s18
      %p26 = scmp.ge.s32.totalorder %s25, 2
      %s27 = scalar_select %p26, 0, %s25
      %s28 = sadd.s32 1, %s17
      %s29 = scalar_select %p26, %s28, %s17
      %p30 = scmp.ge.s32.totalorder %s29, 1
      %s31 = scalar_select %p30, 0, %s29
      %s32 = sadd.s32 1, %s16
      %s33 = scalar_select %p30, %s32, %s16
      %p34 = scmp.ge.s32.totalorder %s33, 1
      %s35 = scalar_select %p34, 0, %s33
      %s36 = ssub.s32 %s16, %s35
      %s37 = ssub.s32 %s18, %s27
      %s38 = sor.u32 %s36, %s37
      %p39 = scmp.eq.s32.totalorder %s38, 0
      %s41 = sadd.s32 %s40, 1
      %s42 = scalar_select %p39, %s40, %s41
      %p45 = pneg %p39
      %p46 = scmp.eq.s32.totalorder %s9, 1
      %p47 = por %p45, %p46
      %p48 = scmp.ne.s32.totalorder %s40, %s43
      %p49 = scmp.eq.s32.totalorder %s9, 0
      %p50 = por %p48, %p49
      %p51 = scmp.ne.s32.totalorder %s40, %s43
      %p52 = scmp.eq.s32.totalorder %s14, 1
      %p53 = por %p51, %p52
      %p54 = scmp.ne.s32.totalorder %s43, %s44
      %p55 = scmp.eq.s32.totalorder %s14, 0
      %p56 = por %p54, %p55
      %p57 = scmp.ne.s32.totalorder %s43, %s44
      %p58 = scmp.eq.s32.totalorder %s15, 1
      %p59 = por %p57, %p58
      %p61 = scmp.ne.s32.totalorder %s44, %s60
      %p62 = scmp.eq.s32.totalorder %s15, 0
      %p63 = por %p61, %p62
      %s64 = ssub.s32 %s18, %s27
      %s65 = ssub.s32 %s17, %s31
      %s66 = sor.u32 %s64, %s65
      %p67 = scmp.eq.s32.totalorder %s66, 0
      %s69 = sadd.s32 %s68, 1
      %s70 = scalar_select %p67, %s68, %s69
      %p73 = pneg %p67
      %p74 = scmp.eq.s32.totalorder %s9, 1
      %p75 = por %p73, %p74
      %p76 = scmp.ne.s32.totalorder %s68, %s71
      %p77 = scmp.eq.s32.totalorder %s9, 0
      %p78 = por %p76, %p77
      %p79 = scmp.ne.s32.totalorder %s68, %s71
      %p80 = scmp.eq.s32.totalorder %s14, 1
      %p81 = por %p79, %p80
      %p82 = scmp.ne.s32.totalorder %s71, %s72
      %p83 = scmp.eq.s32.totalorder %s14, 0
      %p84 = por %p82, %p83
      %p85 = scmp.ne.s32.totalorder %s71, %s72
      %p86 = scmp.eq.s32.totalorder %s15, 1
      %p87 = por %p85, %p86
      %p89 = scmp.ne.s32.totalorder %s72, %s88
      %p90 = scmp.eq.s32.totalorder %s15, 0
      %p91 = por %p89, %p90
      %s92 = ssub.s32 %s17, %s31
      %p93 = scmp.eq.s32.totalorder %s92, 0
      %s95 = sadd.s32 %s94, 1
      %s96 = scalar_select %p93, %s94, %s95
      %p99 = pneg %p93
      %p100 = scmp.eq.s32.totalorder %s9, 1
      %p101 = por %p99, %p100
      %p102 = scmp.ne.s32.totalorder %s94, %s97
      %p103 = scmp.eq.s32.totalorder %s9, 0
      %p104 = por %p102, %p103
      %p105 = scmp.ne.s32.totalorder %s94, %s97
      %p106 = scmp.eq.s32.totalorder %s14, 1
      %p107 = por %p105, %p106
      %p108 = scmp.ne.s32.totalorder %s97, %s98
      %p109 = scmp.eq.s32.totalorder %s14, 0
      %p110 = por %p108, %p109
      %p111 = scmp.ne.s32.totalorder %s97, %s98
      %p112 = scmp.eq.s32.totalorder %s15, 1
      %p113 = por %p111, %p112
      %p115 = scmp.ne.s32.totalorder %s98, %s114
      %p116 = scmp.eq.s32.totalorder %s15, 0
      %p117 = por %p115, %p116
      %s118 = ssub.s32 %s16, %s35
      %s119 = ssub.s32 %s17, %s31
      %s120 = sor.u32 %s118, %s119
      %p121 = scmp.eq.s32.totalorder %s120, 0
      %s123 = sadd.s32 %s122, 1
      %s124 = scalar_select %p121, %s122, %s123
      %p127 = pneg %p121
      %p128 = scmp.eq.s32.totalorder %s9, 1
      %p129 = por %p127, %p128
      %p130 = scmp.ne.s32.totalorder %s122, %s125
      %p131 = scmp.eq.s32.totalorder %s9, 0
      %p132 = por %p130, %p131
      %p133 = scmp.ne.s32.totalorder %s122, %s125
      %p134 = scmp.eq.s32.totalorder %s14, 1
      %p135 = por %p133, %p134
      %p136 = scmp.ne.s32.totalorder %s125, %s126
      %p137 = scmp.eq.s32.totalorder %s14, 0
      %p138 = por %p136, %p137
      %p139 = scmp.ne.s32.totalorder %s125, %s126
      %p140 = scmp.eq.s32.totalorder %s15, 1
      %p141 = por %p139, %p140
      %p143 = scmp.ne.s32.totalorder %s126, %s142
      %p144 = scmp.eq.s32.totalorder %s15, 0
      %p145 = por %p143, %p144
      %p146 = scmp.le.s32.totalorder 1, %s9
      %p147 = scmp.lt.s32.totalorder %s9, 3
      %p148 = pnand %p146, %p147
      %p149 = pneg %p148
      // Predicated region
      $region9: #{stem_res1_forward.13} parent=5 // pred_check
        _
      $region10: #{stem_res1_forward.13} parent=5 // pred_check_branch
        %151 = sbr.rel (%p148) target = $region12
      $region11: #{stem_res1_forward.13} parent=5 // pred_region
        %s152 = ssub.s32 %s9, 1
        // Predicated region
        $region13: #{stem_res1_forward.13} parent=11 // pred_check
          %p153 = pneg %p110
        $region14: #{stem_res1_forward.13} parent=11 // pred_check_branch
          %155 = sbr.rel (%p153) target = $region16
        $region15: #{stem_res1_forward.13} parent=11 // pred_region
          %s156 = smul.u32 2, %s20
          %p157 = scmp.lt.s32.totalorder %s156, 1
          %s158 = scalar_select %p157, %s156, 1
          %s159 = scalar_lea.vmem %s2, %s158
          %s160 = smul.u32 2, %s20
        $region16: #{stem_res1_forward.13} parent=11 // pred_fallthru
          _
      $region12: #{stem_res1_forward.13} parent=5 // pred_fallthru
        _
      %p161 = scmp.lt.s32.totalorder %s9, 2
      // Predicated region
      $region17: #{stem_res1_forward.13} parent=5 // pred_check
        %p162 = pneg %p161
      $region18: #{stem_res1_forward.13} parent=5 // pred_check_branch
        %164 = sbr.rel (%p162) target = $region20
      $region19: #{stem_res1_forward.13} parent=5 // pred_region
        // Predicated region
        $region21: #{stem_res1_forward.13} parent=19 // pred_check
          %p165 = pneg %p50
        $region22: #{stem_res1_forward.13} parent=19 // pred_check_branch
          %167 = sbr.rel (%p165) target = $region24
        $region23: #{stem_res1_forward.13} parent=19 // pred_region
          %s168 = sand.u32 %s40, 1
          %s169 = sand.u32 %s40, 1
          %s170 = smul.addr %s169, 64
          %s171 = scalar_lea.vmem [#allocation2], %s170
          %s172 = smul.u32 2, %s16
          %s173 = smul.u32 8, %s18
          %s174 = smul.addr %s172, 16
          %s175 = sadd.s32 %s173, %s174
          %s176 = smul.addr %s175, 4
          %s177 = scalar_lea.vmem %s0, %s176
          // Predicated region
          $region25: #{stem_res1_forward.13} parent=23 // pred_check
            _
          $region26: #{stem_res1_forward.13} parent=23 // pred_check_branch
            %179 = sbr.rel (0) target = $region28
          $region27: #{stem_res1_forward.13} parent=23 // pred_region
            // Predicated region
            $region29: #{stem_res1_forward.13} parent=27 // pred_check
              _
            $region30: #{stem_res1_forward.13} parent=27 // pred_check_branch
              %181 = sbr.rel (0) target = $region32
            $region31: #{stem_res1_forward.13} parent=27 // pred_region
              loop: start=0, step=1, limit=1
              $region33: #{stem_res1_forward.13} parent=31 // loop_pre_header
                _
              $region34: #{stem_res1_forward.13} parent=31 // loop_header
                %s183 = sphi 0, %s187
                %p184 = scmp.ge.s32.totalorder %s183, 1
                %s188 = sphi %s177, %s177
                %s189 = sphi %s171, %s171
              $region35: #{stem_res1_forward.13} parent=31 // loop_header_branch
                %186 = sbr.rel (%p184) target = $region39
              $region36: #{stem_res1_forward.13} parent=31 // loop_body
                %v190 = vld [vmem:[%s188] sm:$0xff]
                %191 = vst [vmem:[%s189] sm:$0xff] %v190
                %v192 = vld [vmem:[%s188 + $0x8] sm:$0xff]
                %193 = vst [vmem:[%s189 + $0x8] sm:$0xff] %v192
                %v194 = vld [vmem:[%s188 + $0x10] sm:$0xff]
                %195 = vst [vmem:[%s189 + $0x10] sm:$0xff] %v194
                %v196 = vld [vmem:[%s188 + $0x18] sm:$0xff]
                %197 = vst [vmem:[%s189 + $0x18] sm:$0xff] %v196
                %v198 = vld [vmem:[%s188 + $0x40] sm:$0xff]
                %199 = vst [vmem:[%s189 + $0x20] sm:$0xff] %v198
                %v200 = vld [vmem:[%s188 + $0x48] sm:$0xff]
                %201 = vst [vmem:[%s189 + $0x28] sm:$0xff] %v200
                %v202 = vld [vmem:[%s188 + $0x50] sm:$0xff]
                %203 = vst [vmem:[%s189 + $0x30] sm:$0xff] %v202
                %v204 = vld [vmem:[%s188 + $0x58] sm:$0xff]
                %205 = vst [vmem:[%s189 + $0x38] sm:$0xff] %v204
              $region37: #{stem_res1_forward.13} parent=31 // loop_footer
                %s187 = sadd.s32 1, %s183
              $region38: #{stem_res1_forward.13} parent=31 // loop_footer_branch
                %182 = sbr.rel target = $region34
              $region39: #{stem_res1_forward.13} parent=31 // loop_exit
                _
            $region32: #{stem_res1_forward.13} parent=27 // pred_fallthru
              _
            // Predicated region
            $region40: #{stem_res1_forward.13} parent=27 // pred_check
              _
            $region41: #{stem_res1_forward.13} parent=27 // pred_check_branch
              %207 = sbr.rel target = $region43
            $region42: #{stem_res1_forward.13} parent=27 // pred_region
              _
            $region43: #{stem_res1_forward.13} parent=27 // pred_fallthru
              _
          $region28: #{stem_res1_forward.13} parent=23 // pred_fallthru
            _
          %208 = vnop
        $region24: #{stem_res1_forward.13} parent=19 // pred_fallthru
          _
        // Predicated region
        $region44: #{stem_res1_forward.13} parent=19 // pred_check
          %p209 = pneg %p78
        $region45: #{stem_res1_forward.13} parent=19 // pred_check_branch
          %211 = sbr.rel (%p209) target = $region47
        $region46: #{stem_res1_forward.13} parent=19 // pred_region
          %s212 = smul.u32 128, %s18
          %s213 = smul.u32 2, %s17
          %p214 = scmp.lt.s32.totalorder %s212, 255
          %s215 = scalar_select %p214, %s212, 255
          %p216 = scmp.lt.s32.totalorder %s213, 1
          %s217 = scalar_select %p216, %s213, 1
          %s218 = smul.addr %s215, 2
          %s219 = sadd.s32 %s217, %s218
          %s220 = smul.addr %s219, 4
          %s221 = scalar_lea.vmem %s1, %s220
          %s222 = smul.u32 128, %s18
          %s223 = smul.u32 2, %s17
        $region47: #{stem_res1_forward.13} parent=19 // pred_fallthru
          _
      $region20: #{stem_res1_forward.13} parent=5 // pred_fallthru
        _
      %p224 = scmp.le.s32.totalorder 1, %s9
      %p225 = scmp.lt.s32.totalorder %s9, 3
      %p226 = pnand %p224, %p225
      %p227 = pneg %p226
      // Predicated region
      $region48: #{stem_res1_forward.13} parent=5 // pred_check
        _
      $region49: #{stem_res1_forward.13} parent=5 // pred_check_branch
        %229 = sbr.rel (%p226) target = $region51
      $region50: #{stem_res1_forward.13} parent=5 // pred_region
        %s230 = ssub.s32 %s9, 1
        %s231 = sand.u32 %s43, 1
        %s232 = sand.u32 %s43, 1
        %s233 = smul.addr %s232, 64
        %s234 = scalar_lea.vmem [#allocation2], %s233
        // Predicated region
        $region52: #{stem_res1_forward.13} parent=50 // pred_check
          %p235 = pneg %p56
        $region53: #{stem_res1_forward.13} parent=50 // pred_check_branch
          %237 = sbr.rel (%p235) target = $region55
        $region54: #{stem_res1_forward.13} parent=50 // pred_region
          _
        $region55: #{stem_res1_forward.13} parent=50 // pred_fallthru
          _
        %s238 = sand.u32 %s43, 1
        %s239 = sand.u32 %s43, 1
        %s240 = smul.addr %s239, 64
        %s241 = scalar_lea.vmem [#allocation2], %s240
        %p242 = pneg %p56
        %p243 = pneg %p53
        %s244 = smul.u32 128, %s21
        %s245 = smul.u32 2, %s20
        %p246 = scmp.lt.s32.totalorder %s244, 255
        %s247 = scalar_select %p246, %s244, 255
        %p248 = scmp.lt.s32.totalorder %s245, 1
        %s249 = scalar_select %p248, %s245, 1
        %s250 = smul.addr %s247, 2
        %s251 = sadd.s32 %s249, %s250
        %s252 = smul.addr %s251, 4
        %s253 = scalar_lea.vmem %s1, %s252
        %p254 = pneg %p84
        %p255 = pneg %p81
        %s256 = smul.u32 2, %s20
        %p257 = scmp.lt.s32.totalorder %s256, 1
        %s258 = scalar_select %p257, %s256, 1
        %s259 = scalar_lea.vmem %s2, %s258
        %p260 = pneg %p110
        %p261 = pneg %p107
        %p262 = pneg %p138
        %p263 = pneg %p135
        %s264 = smul.u32 2, %s19
        %s265 = smul.u32 2, %s20
        %p266 = scmp.lt.s32.totalorder %s264, 1
        %s267 = scalar_select %p266, %s264, 1
        %p268 = scmp.lt.s32.totalorder %s265, 1
        %s269 = scalar_select %p268, %s265, 1
        %s270 = smul.addr %s267, 2
        %s271 = sadd.s32 %s269, %s270
        %s272 = smul.addr %s271, 8
        %s273 = scalar_lea.vmem %s3, %s272
        %s274 = smul.u32 2, %s19
        %s275 = smul.u32 8, %s21
        %s276 = smul.u32 128, %s21
        %s277 = smul.u32 2, %s20
        %p278 = scmp.lt.s32.totalorder %s276, 255
        %s279 = scalar_select %p278, %s276, 255
        %p280 = scmp.lt.s32.totalorder %s277, 1
        %s281 = scalar_select %p280, %s277, 1
        %s282 = smul.addr %s279, 2
        %s283 = sadd.s32 %s281, %s282
        %s284 = smul.addr %s283, 4
        %s285 = scalar_lea.vmem %s1, %s284
        %s286 = smul.u32 128, %s21
        %s287 = smul.u32 2, %s20
        %s288 = smul.u32 2, %s20
        %p289 = scmp.lt.s32.totalorder %s288, 1
        %s290 = scalar_select %p289, %s288, 1
        %s291 = scalar_lea.vmem %s2, %s290
        %s292 = smul.u32 2, %s20
        %s293 = smul.u32 2, %s19
        %s294 = smul.u32 2, %s20
        %p295 = scmp.lt.s32.totalorder %s293, 1
        %s296 = scalar_select %p295, %s293, 1
        %p297 = scmp.lt.s32.totalorder %s294, 1
        %s298 = scalar_select %p297, %s294, 1
        %s299 = smul.addr %s296, 2
        %s300 = sadd.s32 %s298, %s299
        %s301 = smul.addr %s300, 8
        %s302 = scalar_lea.vmem %s3, %s301
        %s303 = smul.u32 2, %s19
        %s304 = smul.u32 2, %s20
        %p305 = scmp.eq.s32.totalorder %s21, 0
        // Predicated region
        $region56: #{stem_res1_forward.13} parent=50 // pred_check
          %p306 = pneg %p305
        $region57: #{stem_res1_forward.13} parent=50 // pred_check_branch
          %308 = sbr.rel (%p306) target = $region59
        $region58: #{stem_res1_forward.13} parent=50 // pred_region
          %309 = vst [vmem:[%s302] sm:$0xff] 0.0
          %310 = vst [vmem:[%s302 + $0x8] sm:$0xff] 0.0
          %311 = vst [vmem:[%s302 + $0x10] sm:$0xff] 0.0
          %312 = vst [vmem:[%s302 + $0x18] sm:$0xff] 0.0
        $region59: #{stem_res1_forward.13} parent=50 // pred_fallthru
          _
        %v313 = vld [vmem:[%s302] sm:$0xff]
        %v314 = vld [vmem:[%s302 + $0x8] sm:$0xff]
        %v315 = vld [vmem:[%s302 + $0x10] sm:$0xff]
        %v316 = vld [vmem:[%s302 + $0x18] sm:$0xff]
        %v317 = vld [vmem:[%s234] sm:$0xff]
        %v318 = vld [vmem:[%s234 + $0x8] sm:$0xff]
        %v319 = vld [vmem:[%s234 + $0x10] sm:$0xff]
        %v320 = vld [vmem:[%s234 + $0x18] sm:$0xff]
        %v321 = vld [vmem:[%s234 + $0x20] sm:$0xff]
        %v322 = vld [vmem:[%s234 + $0x28] sm:$0xff]
        %v323 = vld [vmem:[%s234 + $0x30] sm:$0xff]
        %v324 = vld [vmem:[%s234 + $0x38] sm:$0xff]
        %v325 = vld [vmem:[%s285] sm:$0xff]
        %v326 = vld [vmem:[%s285 + $0x8] sm:$0xff]
        %v327 = vld [vmem:[%s285 + $0x10] sm:$0xff]
        %v328 = vld [vmem:[%s285 + $0x18] sm:$0xff]
        %v329 = vld [vmem:[%s285 + $0x20] sm:$0xff]
        %v330 = vld [vmem:[%s285 + $0x28] sm:$0xff]
        %v331 = vld [vmem:[%s285 + $0x30] sm:$0xff]
        %v332 = vld [vmem:[%s285 + $0x38] sm:$0xff]
        %v333 = vld [vmem:[%s285 + $0x40] sm:$0xff]
        %v334 = vld [vmem:[%s285 + $0x48] sm:$0xff]
        %v335 = vld [vmem:[%s285 + $0x50] sm:$0xff]
        %v336 = vld [vmem:[%s285 + $0x58] sm:$0xff]
        %v337 = vld [vmem:[%s285 + $0x60] sm:$0xff]
        %v338 = vld [vmem:[%s285 + $0x68] sm:$0xff]
        %v339 = vld [vmem:[%s285 + $0x70] sm:$0xff]
        %v340 = vld [vmem:[%s285 + $0x78] sm:$0xff]
        %v341 = vld [vmem:[%s285 + $0x80] sm:$0xff]
        %v342 = vld [vmem:[%s285 + $0x88] sm:$0xff]
        %v343 = vld [vmem:[%s285 + $0x90] sm:$0xff]
        %v344 = vld [vmem:[%s285 + $0x98] sm:$0xff]
        %v345 = vld [vmem:[%s285 + $0xa0] sm:$0xff]
        %v346 = vld [vmem:[%s285 + $0xa8] sm:$0xff]
        %v347 = vld [vmem:[%s285 + $0xb0] sm:$0xff]
        %v348 = vld [vmem:[%s285 + $0xb8] sm:$0xff]
        %v349 = vld [vmem:[%s285 + $0xc0] sm:$0xff]
        %v350 = vld [vmem:[%s285 + $0xc8] sm:$0xff]
        %v351 = vld [vmem:[%s285 + $0xd0] sm:$0xff]
        %v352 = vld [vmem:[%s285 + $0xd8] sm:$0xff]
        %v353 = vld [vmem:[%s285 + $0xe0] sm:$0xff]
        %v354 = vld [vmem:[%s285 + $0xe8] sm:$0xff]
        %v355 = vld [vmem:[%s285 + $0xf0] sm:$0xff]
        %v356 = vld [vmem:[%s285 + $0xf8] sm:$0xff]
        %v357 = vld [vmem:[%s285 + $0x100] sm:$0xff]
        %v358 = vld [vmem:[%s285 + $0x108] sm:$0xff]
        %v359 = vld [vmem:[%s285 + $0x110] sm:$0xff]
        %v360 = vld [vmem:[%s285 + $0x118] sm:$0xff]
        %v361 = vld [vmem:[%s285 + $0x120] sm:$0xff]
        %v362 = vld [vmem:[%s285 + $0x128] sm:$0xff]
        %v363 = vld [vmem:[%s285 + $0x130] sm:$0xff]
        %v364 = vld [vmem:[%s285 + $0x138] sm:$0xff]
        %v365 = vld [vmem:[%s285 + $0x140] sm:$0xff]
        %v366 = vld [vmem:[%s285 + $0x148] sm:$0xff]
        %v367 = vld [vmem:[%s285 + $0x150] sm:$0xff]
        %v368 = vld [vmem:[%s285 + $0x158] sm:$0xff]
        %v369 = vld [vmem:[%s285 + $0x160] sm:$0xff]
        %v370 = vld [vmem:[%s285 + $0x168] sm:$0xff]
        %v371 = vld [vmem:[%s285 + $0x170] sm:$0xff]
        %v372 = vld [vmem:[%s285 + $0x178] sm:$0xff]
        %v373 = vld [vmem:[%s285 + $0x180] sm:$0xff]
        %v374 = vld [vmem:[%s285 + $0x188] sm:$0xff]
        %v375 = vld [vmem:[%s285 + $0x190] sm:$0xff]
        %v376 = vld [vmem:[%s285 + $0x198] sm:$0xff]
        %v377 = vld [vmem:[%s285 + $0x1a0] sm:$0xff]
        %v378 = vld [vmem:[%s285 + $0x1a8] sm:$0xff]
        %v379 = vld [vmem:[%s285 + $0x1b0] sm:$0xff]
        %v380 = vld [vmem:[%s285 + $0x1b8] sm:$0xff]
        %v381 = vld [vmem:[%s285 + $0x1c0] sm:$0xff]
        %v382 = vld [vmem:[%s285 + $0x1c8] sm:$0xff]
        %v383 = vld [vmem:[%s285 + $0x1d0] sm:$0xff]
        %v384 = vld [vmem:[%s285 + $0x1d8] sm:$0xff]
        %v385 = vld [vmem:[%s285 + $0x1e0] sm:$0xff]
        %v386 = vld [vmem:[%s285 + $0x1e8] sm:$0xff]
        %v387 = vld [vmem:[%s285 + $0x1f0] sm:$0xff]
        %v388 = vld [vmem:[%s285 + $0x1f8] sm:$0xff]
        %v389 = vld [vmem:[%s285 + $0x200] sm:$0xff]
        %v390 = vld [vmem:[%s285 + $0x208] sm:$0xff]
        %v391 = vld [vmem:[%s285 + $0x210] sm:$0xff]
        %v392 = vld [vmem:[%s285 + $0x218] sm:$0xff]
        %v393 = vld [vmem:[%s285 + $0x220] sm:$0xff]
        %v394 = vld [vmem:[%s285 + $0x228] sm:$0xff]
        %v395 = vld [vmem:[%s285 + $0x230] sm:$0xff]
        %v396 = vld [vmem:[%s285 + $0x238] sm:$0xff]
        %v397 = vld [vmem:[%s285 + $0x240] sm:$0xff]
        %v398 = vld [vmem:[%s285 + $0x248] sm:$0xff]
        %v399 = vld [vmem:[%s285 + $0x250] sm:$0xff]
        %v400 = vld [vmem:[%s285 + $0x258] sm:$0xff]
        %v401 = vld [vmem:[%s285 + $0x260] sm:$0xff]
        %v402 = vld [vmem:[%s285 + $0x268] sm:$0xff]
        %v403 = vld [vmem:[%s285 + $0x270] sm:$0xff]
        %v404 = vld [vmem:[%s285 + $0x278] sm:$0xff]
        %v405 = vld [vmem:[%s285 + $0x280] sm:$0xff]
        %v406 = vld [vmem:[%s285 + $0x288] sm:$0xff]
        %v407 = vld [vmem:[%s285 + $0x290] sm:$0xff]
        %v408 = vld [vmem:[%s285 + $0x298] sm:$0xff]
        %v409 = vld [vmem:[%s285 + $0x2a0] sm:$0xff]
        %v410 = vld [vmem:[%s285 + $0x2a8] sm:$0xff]
        %v411 = vld [vmem:[%s285 + $0x2b0] sm:$0xff]
        %v412 = vld [vmem:[%s285 + $0x2b8] sm:$0xff]
        %v413 = vld [vmem:[%s285 + $0x2c0] sm:$0xff]
        %v414 = vld [vmem:[%s285 + $0x2c8] sm:$0xff]
        %v415 = vld [vmem:[%s285 + $0x2d0] sm:$0xff]
        %v416 = vld [vmem:[%s285 + $0x2d8] sm:$0xff]
        %v417 = vld [vmem:[%s285 + $0x2e0] sm:$0xff]
        %v418 = vld [vmem:[%s285 + $0x2e8] sm:$0xff]
        %v419 = vld [vmem:[%s285 + $0x2f0] sm:$0xff]
        %v420 = vld [vmem:[%s285 + $0x2f8] sm:$0xff]
        %v421 = vld [vmem:[%s285 + $0x300] sm:$0xff]
        %v422 = vld [vmem:[%s285 + $0x308] sm:$0xff]
        %v423 = vld [vmem:[%s285 + $0x310] sm:$0xff]
        %v424 = vld [vmem:[%s285 + $0x318] sm:$0xff]
        %v425 = vld [vmem:[%s285 + $0x320] sm:$0xff]
        %v426 = vld [vmem:[%s285 + $0x328] sm:$0xff]
        %v427 = vld [vmem:[%s285 + $0x330] sm:$0xff]
        %v428 = vld [vmem:[%s285 + $0x338] sm:$0xff]
        %v429 = vld [vmem:[%s285 + $0x340] sm:$0xff]
        %v430 = vld [vmem:[%s285 + $0x348] sm:$0xff]
        %v431 = vld [vmem:[%s285 + $0x350] sm:$0xff]
        %v432 = vld [vmem:[%s285 + $0x358] sm:$0xff]
        %v433 = vld [vmem:[%s285 + $0x360] sm:$0xff]
        %v434 = vld [vmem:[%s285 + $0x368] sm:$0xff]
        %v435 = vld [vmem:[%s285 + $0x370] sm:$0xff]
        %v436 = vld [vmem:[%s285 + $0x378] sm:$0xff]
        %v437 = vld [vmem:[%s285 + $0x380] sm:$0xff]
        %v438 = vld [vmem:[%s285 + $0x388] sm:$0xff]
        %v439 = vld [vmem:[%s285 + $0x390] sm:$0xff]
        %v440 = vld [vmem:[%s285 + $0x398] sm:$0xff]
        %v441 = vld [vmem:[%s285 + $0x3a0] sm:$0xff]
        %v442 = vld [vmem:[%s285 + $0x3a8] sm:$0xff]
        %v443 = vld [vmem:[%s285 + $0x3b0] sm:$0xff]
        %v444 = vld [vmem:[%s285 + $0x3b8] sm:$0xff]
        %v445 = vld [vmem:[%s285 + $0x3c0] sm:$0xff]
        %v446 = vld [vmem:[%s285 + $0x3c8] sm:$0xff]
        %v447 = vld [vmem:[%s285 + $0x3d0] sm:$0xff]
        %v448 = vld [vmem:[%s285 + $0x3d8] sm:$0xff]
        %v449 = vld [vmem:[%s285 + $0x3e0] sm:$0xff]
        %v450 = vld [vmem:[%s285 + $0x3e8] sm:$0xff]
        %v451 = vld [vmem:[%s285 + $0x3f0] sm:$0xff]
        %v452 = vld [vmem:[%s285 + $0x3f8] sm:$0xff]
        %v461 = vunpack.c.l.b16 %v317
        %v462 = vunpack.c.h.b16 %v317
        %v463 = vunpack.c.l.b16 %v318
        %v464 = vunpack.c.h.b16 %v318
        %v465 = vunpack.c.l.b16 %v319
        %v466 = vunpack.c.h.b16 %v319
        %v467 = vunpack.c.l.b16 %v320
        %v468 = vunpack.c.h.b16 %v320
        %v469 = vunpack.c.l.b16 %v321
        %v470 = vunpack.c.h.b16 %v321
        %v471 = vunpack.c.l.b16 %v322
        %v472 = vunpack.c.h.b16 %v322
        %v473 = vunpack.c.l.b16 %v323
        %v474 = vunpack.c.h.b16 %v323
        %v475 = vunpack.c.l.b16 %v324
        %v476 = vunpack.c.h.b16 %v324
        %v477 = vpack.c.b16 %v469, %v461
        %v478 = vpack.c.b16 %v470, %v462
        %v479 = vpack.c.b16 %v471, %v463
        %v480 = vpack.c.b16 %v472, %v464
        %v481 = vpack.c.b16 %v473, %v465
        %v482 = vpack.c.b16 %v474, %v466
        %v483 = vpack.c.b16 %v475, %v467
        %v484 = vpack.c.b16 %v476, %v468
        %v621 = vunpack.c.l.b16 %v325
        %v622 = vunpack.c.h.b16 %v325
        %v623 = vunpack.c.l.b16 %v326
        %v624 = vunpack.c.h.b16 %v326
        %v625 = vunpack.c.l.b16 %v327
        %v626 = vunpack.c.h.b16 %v327
        %v627 = vunpack.c.l.b16 %v328
        %v628 = vunpack.c.h.b16 %v328
        %v629 = vunpack.c.l.b16 %v329
        %v630 = vunpack.c.h.b16 %v329
        %v631 = vunpack.c.l.b16 %v330
        %v632 = vunpack.c.h.b16 %v330
        %v633 = vunpack.c.l.b16 %v331
        %v634 = vunpack.c.h.b16 %v331
        %v635 = vunpack.c.l.b16 %v332
        %v636 = vunpack.c.h.b16 %v332
        %v637 = vunpack.c.l.b16 %v333
        %v638 = vunpack.c.h.b16 %v333
        %v639 = vunpack.c.l.b16 %v334
        %v640 = vunpack.c.h.b16 %v334
        %v641 = vunpack.c.l.b16 %v335
        %v642 = vunpack.c.h.b16 %v335
        %v643 = vunpack.c.l.b16 %v336
        %v644 = vunpack.c.h.b16 %v336
        %v645 = vunpack.c.l.b16 %v337
        %v646 = vunpack.c.h.b16 %v337
        %v647 = vunpack.c.l.b16 %v338
        %v648 = vunpack.c.h.b16 %v338
        %v649 = vunpack.c.l.b16 %v339
        %v650 = vunpack.c.h.b16 %v339
        %v651 = vunpack.c.l.b16 %v340
        %v652 = vunpack.c.h.b16 %v340
        %v653 = vunpack.c.l.b16 %v341
        %v654 = vunpack.c.h.b16 %v341
        %v655 = vunpack.c.l.b16 %v342
        %v656 = vunpack.c.h.b16 %v342
        %v657 = vunpack.c.l.b16 %v343
        %v658 = vunpack.c.h.b16 %v343
        %v659 = vunpack.c.l.b16 %v344
        %v660 = vunpack.c.h.b16 %v344
        %v661 = vunpack.c.l.b16 %v345
        %v662 = vunpack.c.h.b16 %v345
        %v663 = vunpack.c.l.b16 %v346
        %v664 = vunpack.c.h.b16 %v346
        %v665 = vunpack.c.l.b16 %v347
        %v666 = vunpack.c.h.b16 %v347
        %v667 = vunpack.c.l.b16 %v348
        %v668 = vunpack.c.h.b16 %v348
        %v669 = vunpack.c.l.b16 %v349
        %v670 = vunpack.c.h.b16 %v349
        %v671 = vunpack.c.l.b16 %v350
        %v672 = vunpack.c.h.b16 %v350
        %v673 = vunpack.c.l.b16 %v351
        %v674 = vunpack.c.h.b16 %v351
        %v675 = vunpack.c.l.b16 %v352
        %v676 = vunpack.c.h.b16 %v352
        %v677 = vunpack.c.l.b16 %v353
        %v678 = vunpack.c.h.b16 %v353
        %v679 = vunpack.c.l.b16 %v354
        %v680 = vunpack.c.h.b16 %v354
        %v681 = vunpack.c.l.b16 %v355
        %v682 = vunpack.c.h.b16 %v355
        %v683 = vunpack.c.l.b16 %v356
        %v684 = vunpack.c.h.b16 %v356
        %v685 = vunpack.c.l.b16 %v357
        %v686 = vunpack.c.h.b16 %v357
        %v687 = vunpack.c.l.b16 %v358
        %v688 = vunpack.c.h.b16 %v358
        %v689 = vunpack.c.l.b16 %v359
        %v690 = vunpack.c.h.b16 %v359
        %v691 = vunpack.c.l.b16 %v360
        %v692 = vunpack.c.h.b16 %v360
        %v693 = vunpack.c.l.b16 %v361
        %v694 = vunpack.c.h.b16 %v361
        %v695 = vunpack.c.l.b16 %v362
        %v696 = vunpack.c.h.b16 %v362
        %v697 = vunpack.c.l.b16 %v363
        %v698 = vunpack.c.h.b16 %v363
        %v699 = vunpack.c.l.b16 %v364
        %v700 = vunpack.c.h.b16 %v364
        %v701 = vunpack.c.l.b16 %v365
        %v702 = vunpack.c.h.b16 %v365
        %v703 = vunpack.c.l.b16 %v366
        %v704 = vunpack.c.h.b16 %v366
        %v705 = vunpack.c.l.b16 %v367
        %v706 = vunpack.c.h.b16 %v367
        %v707 = vunpack.c.l.b16 %v368
        %v708 = vunpack.c.h.b16 %v368
        %v709 = vunpack.c.l.b16 %v369
        %v710 = vunpack.c.h.b16 %v369
        %v711 = vunpack.c.l.b16 %v370
        %v712 = vunpack.c.h.b16 %v370
        %v713 = vunpack.c.l.b16 %v371
        %v714 = vunpack.c.h.b16 %v371
        %v715 = vunpack.c.l.b16 %v372
        %v716 = vunpack.c.h.b16 %v372
        %v717 = vunpack.c.l.b16 %v373
        %v718 = vunpack.c.h.b16 %v373
        %v719 = vunpack.c.l.b16 %v374
        %v720 = vunpack.c.h.b16 %v374
        %v721 = vunpack.c.l.b16 %v375
        %v722 = vunpack.c.h.b16 %v375
        %v723 = vunpack.c.l.b16 %v376
        %v724 = vunpack.c.h.b16 %v376
        %v725 = vunpack.c.l.b16 %v377
        %v726 = vunpack.c.h.b16 %v377
        %v727 = vunpack.c.l.b16 %v378
        %v728 = vunpack.c.h.b16 %v378
        %v729 = vunpack.c.l.b16 %v379
        %v730 = vunpack.c.h.b16 %v379
        %v731 = vunpack.c.l.b16 %v380
        %v732 = vunpack.c.h.b16 %v380
        %v733 = vunpack.c.l.b16 %v381
        %v734 = vunpack.c.h.b16 %v381
        %v735 = vunpack.c.l.b16 %v382
        %v736 = vunpack.c.h.b16 %v382
        %v737 = vunpack.c.l.b16 %v383
        %v738 = vunpack.c.h.b16 %v383
        %v739 = vunpack.c.l.b16 %v384
        %v740 = vunpack.c.h.b16 %v384
        %v741 = vunpack.c.l.b16 %v385
        %v742 = vunpack.c.h.b16 %v385
        %v743 = vunpack.c.l.b16 %v386
        %v744 = vunpack.c.h.b16 %v386
        %v745 = vunpack.c.l.b16 %v387
        %v746 = vunpack.c.h.b16 %v387
        %v747 = vunpack.c.l.b16 %v388
        %v748 = vunpack.c.h.b16 %v388
        %v749 = vunpack.c.l.b16 %v389
        %v750 = vunpack.c.h.b16 %v389
        %v751 = vunpack.c.l.b16 %v390
        %v752 = vunpack.c.h.b16 %v390
        %v753 = vunpack.c.l.b16 %v391
        %v754 = vunpack.c.h.b16 %v391
        %v755 = vunpack.c.l.b16 %v392
        %v756 = vunpack.c.h.b16 %v392
        %v757 = vunpack.c.l.b16 %v393
        %v758 = vunpack.c.h.b16 %v393
        %v759 = vunpack.c.l.b16 %v394
        %v760 = vunpack.c.h.b16 %v394
        %v761 = vunpack.c.l.b16 %v395
        %v762 = vunpack.c.h.b16 %v395
        %v763 = vunpack.c.l.b16 %v396
        %v764 = vunpack.c.h.b16 %v396
        %v765 = vunpack.c.l.b16 %v397
        %v766 = vunpack.c.h.b16 %v397
        %v767 = vunpack.c.l.b16 %v398
        %v768 = vunpack.c.h.b16 %v398
        %v769 = vunpack.c.l.b16 %v399
        %v770 = vunpack.c.h.b16 %v399
        %v771 = vunpack.c.l.b16 %v400
        %v772 = vunpack.c.h.b16 %v400
        %v773 = vunpack.c.l.b16 %v401
        %v774 = vunpack.c.h.b16 %v401
        %v775 = vunpack.c.l.b16 %v402
        %v776 = vunpack.c.h.b16 %v402
        %v777 = vunpack.c.l.b16 %v403
        %v778 = vunpack.c.h.b16 %v403
        %v779 = vunpack.c.l.b16 %v404
        %v780 = vunpack.c.h.b16 %v404
        %v781 = vunpack.c.l.b16 %v405
        %v782 = vunpack.c.h.b16 %v405
        %v783 = vunpack.c.l.b16 %v406
        %v784 = vunpack.c.h.b16 %v406
        %v785 = vunpack.c.l.b16 %v407
        %v786 = vunpack.c.h.b16 %v407
        %v787 = vunpack.c.l.b16 %v408
        %v788 = vunpack.c.h.b16 %v408
        %v789 = vunpack.c.l.b16 %v409
        %v790 = vunpack.c.h.b16 %v409
        %v791 = vunpack.c.l.b16 %v410
        %v792 = vunpack.c.h.b16 %v410
        %v793 = vunpack.c.l.b16 %v411
        %v794 = vunpack.c.h.b16 %v411
        %v795 = vunpack.c.l.b16 %v412
        %v796 = vunpack.c.h.b16 %v412
        %v797 = vunpack.c.l.b16 %v413
        %v798 = vunpack.c.h.b16 %v413
        %v799 = vunpack.c.l.b16 %v414
        %v800 = vunpack.c.h.b16 %v414
        %v801 = vunpack.c.l.b16 %v415
        %v802 = vunpack.c.h.b16 %v415
        %v803 = vunpack.c.l.b16 %v416
        %v804 = vunpack.c.h.b16 %v416
        %v805 = vunpack.c.l.b16 %v417
        %v806 = vunpack.c.h.b16 %v417
        %v807 = vunpack.c.l.b16 %v418
        %v808 = vunpack.c.h.b16 %v418
        %v809 = vunpack.c.l.b16 %v419
        %v810 = vunpack.c.h.b16 %v419
        %v811 = vunpack.c.l.b16 %v420
        %v812 = vunpack.c.h.b16 %v420
        %v813 = vunpack.c.l.b16 %v421
        %v814 = vunpack.c.h.b16 %v421
        %v815 = vunpack.c.l.b16 %v422
        %v816 = vunpack.c.h.b16 %v422
        %v817 = vunpack.c.l.b16 %v423
        %v818 = vunpack.c.h.b16 %v423
        %v819 = vunpack.c.l.b16 %v424
        %v820 = vunpack.c.h.b16 %v424
        %v821 = vunpack.c.l.b16 %v425
        %v822 = vunpack.c.h.b16 %v425
        %v823 = vunpack.c.l.b16 %v426
        %v824 = vunpack.c.h.b16 %v426
        %v825 = vunpack.c.l.b16 %v427
        %v826 = vunpack.c.h.b16 %v427
        %v827 = vunpack.c.l.b16 %v428
        %v828 = vunpack.c.h.b16 %v428
        %v829 = vunpack.c.l.b16 %v429
        %v830 = vunpack.c.h.b16 %v429
        %v831 = vunpack.c.l.b16 %v430
        %v832 = vunpack.c.h.b16 %v430
        %v833 = vunpack.c.l.b16 %v431
        %v834 = vunpack.c.h.b16 %v431
        %v835 = vunpack.c.l.b16 %v432
        %v836 = vunpack.c.h.b16 %v432
        %v837 = vunpack.c.l.b16 %v433
        %v838 = vunpack.c.h.b16 %v433
        %v839 = vunpack.c.l.b16 %v434
        %v840 = vunpack.c.h.b16 %v434
        %v841 = vunpack.c.l.b16 %v435
        %v842 = vunpack.c.h.b16 %v435
        %v843 = vunpack.c.l.b16 %v436
        %v844 = vunpack.c.h.b16 %v436
        %v845 = vunpack.c.l.b16 %v437
        %v846 = vunpack.c.h.b16 %v437
        %v847 = vunpack.c.l.b16 %v438
        %v848 = vunpack.c.h.b16 %v438
        %v849 = vunpack.c.l.b16 %v439
        %v850 = vunpack.c.h.b16 %v439
        %v851 = vunpack.c.l.b16 %v440
        %v852 = vunpack.c.h.b16 %v440
        %v853 = vunpack.c.l.b16 %v441
        %v854 = vunpack.c.h.b16 %v441
        %v855 = vunpack.c.l.b16 %v442
        %v856 = vunpack.c.h.b16 %v442
        %v857 = vunpack.c.l.b16 %v443
        %v858 = vunpack.c.h.b16 %v443
        %v859 = vunpack.c.l.b16 %v444
        %v860 = vunpack.c.h.b16 %v444
        %v861 = vunpack.c.l.b16 %v445
        %v862 = vunpack.c.h.b16 %v445
        %v863 = vunpack.c.l.b16 %v446
        %v864 = vunpack.c.h.b16 %v446
        %v865 = vunpack.c.l.b16 %v447
        %v866 = vunpack.c.h.b16 %v447
        %v867 = vunpack.c.l.b16 %v448
        %v868 = vunpack.c.h.b16 %v448
        %v869 = vunpack.c.l.b16 %v449
        %v870 = vunpack.c.h.b16 %v449
        %v871 = vunpack.c.l.b16 %v450
        %v872 = vunpack.c.h.b16 %v450
        %v873 = vunpack.c.l.b16 %v451
        %v874 = vunpack.c.h.b16 %v451
        %v875 = vunpack.c.l.b16 %v452
        %v876 = vunpack.c.h.b16 %v452
        %v877 = vpack.c.b16 %v623, %v621
        %v878 = vpack.c.b16 %v624, %v622
        %v879 = vpack.c.b16 %v627, %v625
        %v880 = vpack.c.b16 %v628, %v626
        %v881 = vpack.c.b16 %v631, %v629
        %v882 = vpack.c.b16 %v632, %v630
        %v883 = vpack.c.b16 %v635, %v633
        %v884 = vpack.c.b16 %v636, %v634
        %v885 = vpack.c.b16 %v639, %v637
        %v886 = vpack.c.b16 %v640, %v638
        %v887 = vpack.c.b16 %v643, %v641
        %v888 = vpack.c.b16 %v644, %v642
        %v889 = vpack.c.b16 %v647, %v645
        %v890 = vpack.c.b16 %v648, %v646
        %v891 = vpack.c.b16 %v651, %v649
        %v892 = vpack.c.b16 %v652, %v650
        %v893 = vpack.c.b16 %v655, %v653
        %v894 = vpack.c.b16 %v656, %v654
        %v895 = vpack.c.b16 %v659, %v657
        %v896 = vpack.c.b16 %v660, %v658
        %v897 = vpack.c.b16 %v663, %v661
        %v898 = vpack.c.b16 %v664, %v662
        %v899 = vpack.c.b16 %v667, %v665
        %v900 = vpack.c.b16 %v668, %v666
        %v901 = vpack.c.b16 %v671, %v669
        %v902 = vpack.c.b16 %v672, %v670
        %v903 = vpack.c.b16 %v675, %v673
        %v904 = vpack.c.b16 %v676, %v674
        %v905 = vpack.c.b16 %v679, %v677
        %v906 = vpack.c.b16 %v680, %v678
        %v907 = vpack.c.b16 %v683, %v681
        %v908 = vpack.c.b16 %v684, %v682
        %v909 = vpack.c.b16 %v687, %v685
        %v910 = vpack.c.b16 %v688, %v686
        %v911 = vpack.c.b16 %v691, %v689
        %v912 = vpack.c.b16 %v692, %v690
        %v913 = vpack.c.b16 %v695, %v693
        %v914 = vpack.c.b16 %v696, %v694
        %v915 = vpack.c.b16 %v699, %v697
        %v916 = vpack.c.b16 %v700, %v698
        %v917 = vpack.c.b16 %v703, %v701
        %v918 = vpack.c.b16 %v704, %v702
        %v919 = vpack.c.b16 %v707, %v705
        %v920 = vpack.c.b16 %v708, %v706
        %v921 = vpack.c.b16 %v711, %v709
        %v922 = vpack.c.b16 %v712, %v710
        %v923 = vpack.c.b16 %v715, %v713
        %v924 = vpack.c.b16 %v716, %v714
        %v925 = vpack.c.b16 %v719, %v717
        %v926 = vpack.c.b16 %v720, %v718
        %v927 = vpack.c.b16 %v723, %v721
        %v928 = vpack.c.b16 %v724, %v722
        %v929 = vpack.c.b16 %v727, %v725
        %v930 = vpack.c.b16 %v728, %v726
        %v931 = vpack.c.b16 %v731, %v729
        %v932 = vpack.c.b16 %v732, %v730
        %v933 = vpack.c.b16 %v735, %v733
        %v934 = vpack.c.b16 %v736, %v734
        %v935 = vpack.c.b16 %v739, %v737
        %v936 = vpack.c.b16 %v740, %v738
        %v937 = vpack.c.b16 %v743, %v741
        %v938 = vpack.c.b16 %v744, %v742
        %v939 = vpack.c.b16 %v747, %v745
        %v940 = vpack.c.b16 %v748, %v746
        %v941 = vpack.c.b16 %v751, %v749
        %v942 = vpack.c.b16 %v752, %v750
        %v943 = vpack.c.b16 %v755, %v753
        %v944 = vpack.c.b16 %v756, %v754
        %v945 = vpack.c.b16 %v759, %v757
        %v946 = vpack.c.b16 %v760, %v758
        %v947 = vpack.c.b16 %v763, %v761
        %v948 = vpack.c.b16 %v764, %v762
        %v949 = vpack.c.b16 %v767, %v765
        %v950 = vpack.c.b16 %v768, %v766
        %v951 = vpack.c.b16 %v771, %v769
        %v952 = vpack.c.b16 %v772, %v770
        %v953 = vpack.c.b16 %v775, %v773
        %v954 = vpack.c.b16 %v776, %v774
        %v955 = vpack.c.b16 %v779, %v777
        %v956 = vpack.c.b16 %v780, %v778
        %v957 = vpack.c.b16 %v783, %v781
        %v958 = vpack.c.b16 %v784, %v782
        %v959 = vpack.c.b16 %v787, %v785
        %v960 = vpack.c.b16 %v788, %v786
        %v961 = vpack.c.b16 %v791, %v789
        %v962 = vpack.c.b16 %v792, %v790
        %v963 = vpack.c.b16 %v795, %v793
        %v964 = vpack.c.b16 %v796, %v794
        %v965 = vpack.c.b16 %v799, %v797
        %v966 = vpack.c.b16 %v800, %v798
        %v967 = vpack.c.b16 %v803, %v801
        %v968 = vpack.c.b16 %v804, %v802
        %v969 = vpack.c.b16 %v807, %v805
        %v970 = vpack.c.b16 %v808, %v806
        %v971 = vpack.c.b16 %v811, %v809
        %v972 = vpack.c.b16 %v812, %v810
        %v973 = vpack.c.b16 %v815, %v813
        %v974 = vpack.c.b16 %v816, %v814
        %v975 = vpack.c.b16 %v819, %v817
        %v976 = vpack.c.b16 %v820, %v818
        %v977 = vpack.c.b16 %v823, %v821
        %v978 = vpack.c.b16 %v824, %v822
        %v979 = vpack.c.b16 %v827, %v825
        %v980 = vpack.c.b16 %v828, %v826
        %v981 = vpack.c.b16 %v831, %v829
        %v982 = vpack.c.b16 %v832, %v830
        %v983 = vpack.c.b16 %v835, %v833
        %v984 = vpack.c.b16 %v836, %v834
        %v985 = vpack.c.b16 %v839, %v837
        %v986 = vpack.c.b16 %v840, %v838
        %v987 = vpack.c.b16 %v843, %v841
        %v988 = vpack.c.b16 %v844, %v842
        %v989 = vpack.c.b16 %v847, %v845
        %v990 = vpack.c.b16 %v848, %v846
        %v991 = vpack.c.b16 %v851, %v849
        %v992 = vpack.c.b16 %v852, %v850
        %v993 = vpack.c.b16 %v855, %v853
        %v994 = vpack.c.b16 %v856, %v854
        %v995 = vpack.c.b16 %v859, %v857
        %v996 = vpack.c.b16 %v860, %v858
        %v997 = vpack.c.b16 %v863, %v861
        %v998 = vpack.c.b16 %v864, %v862
        %v999 = vpack.c.b16 %v867, %v865
        %v1000 = vpack.c.b16 %v868, %v866
        %v1001 = vpack.c.b16 %v871, %v869
        %v1002 = vpack.c.b16 %v872, %v870
        %v1003 = vpack.c.b16 %v875, %v873
        %v1004 = vpack.c.b16 %v876, %v874
        %1133 = vmatprep.subr.bf16.mxu0 %v878
        %1134 = vmatpush1.bf16.msra.mxu0 %v877
        %1135 = vmatprep.subr.bf16.mxu0 %v880
        %1136 = vmatpush1.bf16.msra.mxu0 %v879
        %1137 = vmatprep.subr.bf16.mxu0 %v882
        %1138 = vmatpush1.bf16.msra.mxu0 %v881
        %1139 = vmatprep.subr.bf16.mxu0 %v884
        %1140 = vmatpush1.bf16.msra.mxu0 %v883
        %1141 = vmatprep.subr.bf16.mxu0 %v886
        %1142 = vmatpush1.bf16.msra.mxu0 %v885
        %1143 = vmatprep.subr.bf16.mxu0 %v888
        %1144 = vmatpush1.bf16.msra.mxu0 %v887
        %1145 = vmatprep.subr.bf16.mxu0 %v890
        %1146 = vmatpush1.bf16.msra.mxu0 %v889
        %1147 = vmatprep.subr.bf16.mxu0 %v892
        %1148 = vmatpush1.bf16.msra.mxu0 %v891
        %1149 = vmatprep.subr.bf16.mxu0 %v894
        %1150 = vmatpush1.bf16.msra.mxu0 %v893
        %1151 = vmatprep.subr.bf16.mxu0 %v896
        %1152 = vmatpush1.bf16.msra.mxu0 %v895
        %1153 = vmatprep.subr.bf16.mxu0 %v898
        %1154 = vmatpush1.bf16.msra.mxu0 %v897
        %1155 = vmatprep.subr.bf16.mxu0 %v900
        %1156 = vmatpush1.bf16.msra.mxu0 %v899
        %1157 = vmatprep.subr.bf16.mxu0 %v902
        %1158 = vmatpush1.bf16.msra.mxu0 %v901
        %1159 = vmatprep.subr.bf16.mxu0 %v904
        %1160 = vmatpush1.bf16.msra.mxu0 %v903
        %1161 = vmatprep.subr.bf16.mxu0 %v906
        %1162 = vmatpush1.bf16.msra.mxu0 %v905
        %1163 = vmatprep.subr.bf16.mxu0 %v908
        %1164 = vmatpush1.bf16.msra.mxu0 %v907
        %1165 = vmatprep.mubr.bf16.mxu0 %v478
        %1166 = vmatmul.mubr.bf16.gmra.mrb[0].mxu0 %v477
        %v1167 = vpop.f32.mrb[0].mxu0
        %v1168 = vadd.f32 0.0, %v1167
        %v1169 = vpop.f32.mrb[0].mxu0
        %v1170 = vadd.f32 0.0, %v1169
        %v1171 = vpop.f32.mrb[0].mxu0
        %v1172 = vadd.f32 0.0, %v1171
        %v1173 = vpop.f32.mrb[0].mxu0
        %v1174 = vadd.f32 0.0, %v1173
        %1175 = vdwg.mxu0
        %1176 = vmatprep.subr.bf16.mxu0 %v910
        %1177 = vmatpush1.bf16.msra.mxu0 %v909
        %1178 = vmatprep.subr.bf16.mxu0 %v912
        %1179 = vmatpush1.bf16.msra.mxu0 %v911
        %1180 = vmatprep.subr.bf16.mxu0 %v914
        %1181 = vmatpush1.bf16.msra.mxu0 %v913
        %1182 = vmatprep.subr.bf16.mxu0 %v916
        %1183 = vmatpush1.bf16.msra.mxu0 %v915
        %1184 = vmatprep.subr.bf16.mxu0 %v918
        %1185 = vmatpush1.bf16.msra.mxu0 %v917
        %1186 = vmatprep.subr.bf16.mxu0 %v920
        %1187 = vmatpush1.bf16.msra.mxu0 %v919
        %1188 = vmatprep.subr.bf16.mxu0 %v922
        %1189 = vmatpush1.bf16.msra.mxu0 %v921
        %1190 = vmatprep.subr.bf16.mxu0 %v924
        %1191 = vmatpush1.bf16.msra.mxu0 %v923
        %1192 = vmatprep.subr.bf16.mxu0 %v926
        %1193 = vmatpush1.bf16.msra.mxu0 %v925
        %1194 = vmatprep.subr.bf16.mxu0 %v928
        %1195 = vmatpush1.bf16.msra.mxu0 %v927
        %1196 = vmatprep.subr.bf16.mxu0 %v930
        %1197 = vmatpush1.bf16.msra.mxu0 %v929
        %1198 = vmatprep.subr.bf16.mxu0 %v932
        %1199 = vmatpush1.bf16.msra.mxu0 %v931
        %1200 = vmatprep.subr.bf16.mxu0 %v934
        %1201 = vmatpush1.bf16.msra.mxu0 %v933
        %1202 = vmatprep.subr.bf16.mxu0 %v936
        %1203 = vmatpush1.bf16.msra.mxu0 %v935
        %1204 = vmatprep.subr.bf16.mxu0 %v938
        %1205 = vmatpush1.bf16.msra.mxu0 %v937
        %1206 = vmatprep.subr.bf16.mxu0 %v940
        %1207 = vmatpush1.bf16.msra.mxu0 %v939
        %1208 = vmatprep.mubr.bf16.mxu0 %v480
        %1209 = vmatmul.mubr.bf16.gmra.mrb[0].mxu0 %v479
        %v1210 = vpop.f32.mrb[0].mxu0
        %v1211 = vadd.f32 %v1168, %v1210
        %v1212 = vpop.f32.mrb[0].mxu0
        %v1213 = vadd.f32 %v1170, %v1212
        %v1214 = vpop.f32.mrb[0].mxu0
        %v1215 = vadd.f32 %v1172, %v1214
        %v1216 = vpop.f32.mrb[0].mxu0
        %v1217 = vadd.f32 %v1174, %v1216
        %1218 = vdwg.mxu0
        %1219 = vmatprep.subr.bf16.mxu0 %v942
        %1220 = vmatpush1.bf16.msra.mxu0 %v941
        %1221 = vmatprep.subr.bf16.mxu0 %v944
        %1222 = vmatpush1.bf16.msra.mxu0 %v943
        %1223 = vmatprep.subr.bf16.mxu0 %v946
        %1224 = vmatpush1.bf16.msra.mxu0 %v945
        %1225 = vmatprep.subr.bf16.mxu0 %v948
        %1226 = vmatpush1.bf16.msra.mxu0 %v947
        %1227 = vmatprep.subr.bf16.mxu0 %v950
        %1228 = vmatpush1.bf16.msra.mxu0 %v949
        %1229 = vmatprep.subr.bf16.mxu0 %v952
        %1230 = vmatpush1.bf16.msra.mxu0 %v951
        %1231 = vmatprep.subr.bf16.mxu0 %v954
        %1232 = vmatpush1.bf16.msra.mxu0 %v953
        %1233 = vmatprep.subr.bf16.mxu0 %v956
        %1234 = vmatpush1.bf16.msra.mxu0 %v955
        %1235 = vmatprep.subr.bf16.mxu0 %v958
        %1236 = vmatpush1.bf16.msra.mxu0 %v957
        %1237 = vmatprep.subr.bf16.mxu0 %v960
        %1238 = vmatpush1.bf16.msra.mxu0 %v959
        %1239 = vmatprep.subr.bf16.mxu0 %v962
        %1240 = vmatpush1.bf16.msra.mxu0 %v961
        %1241 = vmatprep.subr.bf16.mxu0 %v964
        %1242 = vmatpush1.bf16.msra.mxu0 %v963
        %1243 = vmatprep.subr.bf16.mxu0 %v966
        %1244 = vmatpush1.bf16.msra.mxu0 %v965
        %1245 = vmatprep.subr.bf16.mxu0 %v968
        %1246 = vmatpush1.bf16.msra.mxu0 %v967
        %1247 = vmatprep.subr.bf16.mxu0 %v970
        %1248 = vmatpush1.bf16.msra.mxu0 %v969
        %1249 = vmatprep.subr.bf16.mxu0 %v972
        %1250 = vmatpush1.bf16.msra.mxu0 %v971
        %1251 = vmatprep.mubr.bf16.mxu0 %v482
        %1252 = vmatmul.mubr.bf16.gmra.mrb[0].mxu0 %v481
        %v1253 = vpop.f32.mrb[0].mxu0
        %v1254 = vadd.f32 %v1211, %v1253
        %v1255 = vpop.f32.mrb[0].mxu0
        %v1256 = vadd.f32 %v1213, %v1255
        %v1257 = vpop.f32.mrb[0].mxu0
        %v1258 = vadd.f32 %v1215, %v1257
        %v1259 = vpop.f32.mrb[0].mxu0
        %v1260 = vadd.f32 %v1217, %v1259
        %1261 = vdwg.mxu0
        %1262 = vmatprep.subr.bf16.mxu0 %v974
        %1263 = vmatpush1.bf16.msra.mxu0 %v973
        %1264 = vmatprep.subr.bf16.mxu0 %v976
        %1265 = vmatpush1.bf16.msra.mxu0 %v975
        %1266 = vmatprep.subr.bf16.mxu0 %v978
        %1267 = vmatpush1.bf16.msra.mxu0 %v977
        %1268 = vmatprep.subr.bf16.mxu0 %v980
        %1269 = vmatpush1.bf16.msra.mxu0 %v979
        %1270 = vmatprep.subr.bf16.mxu0 %v982
        %1271 = vmatpush1.bf16.msra.mxu0 %v981
        %1272 = vmatprep.subr.bf16.mxu0 %v984
        %1273 = vmatpush1.bf16.msra.mxu0 %v983
        %1274 = vmatprep.subr.bf16.mxu0 %v986
        %1275 = vmatpush1.bf16.msra.mxu0 %v985
        %1276 = vmatprep.subr.bf16.mxu0 %v988
        %1277 = vmatpush1.bf16.msra.mxu0 %v987
        %1278 = vmatprep.subr.bf16.mxu0 %v990
        %1279 = vmatpush1.bf16.msra.mxu0 %v989
        %1280 = vmatprep.subr.bf16.mxu0 %v992
        %1281 = vmatpush1.bf16.msra.mxu0 %v991
        %1282 = vmatprep.subr.bf16.mxu0 %v994
        %1283 = vmatpush1.bf16.msra.mxu0 %v993
        %1284 = vmatprep.subr.bf16.mxu0 %v996
        %1285 = vmatpush1.bf16.msra.mxu0 %v995
        %1286 = vmatprep.subr.bf16.mxu0 %v998
        %1287 = vmatpush1.bf16.msra.mxu0 %v997
        %1288 = vmatprep.subr.bf16.mxu0 %v1000
        %1289 = vmatpush1.bf16.msra.mxu0 %v999
        %1290 = vmatprep.subr.bf16.mxu0 %v1002
        %1291 = vmatpush1.bf16.msra.mxu0 %v1001
        %1292 = vmatprep.subr.bf16.mxu0 %v1004
        %1293 = vmatpush1.bf16.msra.mxu0 %v1003
        %1294 = vmatprep.mubr.bf16.mxu0 %v484
        %1295 = vmatmul.mubr.bf16.gmra.mrb[0].mxu0 %v483
        %v1296 = vpop.f32.mrb[0].mxu0
        %v1297 = vadd.f32 %v1254, %v1296
        %v1298 = vpop.f32.mrb[0].mxu0
        %v1299 = vadd.f32 %v1256, %v1298
        %v1300 = vpop.f32.mrb[0].mxu0
        %v1301 = vadd.f32 %v1258, %v1300
        %v1302 = vpop.f32.mrb[0].mxu0
        %v1303 = vadd.f32 %v1260, %v1302
        %1304 = vdwg.mxu0
        %v1305 = vadd.f32 %v313, %v1297
        %v1306 = vadd.f32 %v314, %v1299
        %v1307 = vadd.f32 %v315, %v1301
        %v1308 = vadd.f32 %v316, %v1303
        %1309 = vst [vmem:[%s302] sm:$0xff] %v1305
        %1310 = vst [vmem:[%s302 + $0x8] sm:$0xff] %v1306
        %1311 = vst [vmem:[%s302 + $0x10] sm:$0xff] %v1307
        %1312 = vst [vmem:[%s302 + $0x18] sm:$0xff] %v1308
        %p1313 = scmp.eq.s32.totalorder %s21, 1
        // Predicated region
        $region60: #{stem_res1_forward.13} parent=50 // pred_check
          %p1314 = pneg %p1313
        $region61: #{stem_res1_forward.13} parent=50 // pred_check_branch
          %1316 = sbr.rel (%p1314) target = $region63
        $region62: #{stem_res1_forward.13} parent=50 // pred_region
          %v1317 = vld [vmem:[%s302] sm:$0xff]
          %v1318 = vld [vmem:[%s302 + $0x8] sm:$0xff]
          %v1319 = vld [vmem:[%s302 + $0x10] sm:$0xff]
          %v1320 = vld [vmem:[%s302 + $0x18] sm:$0xff]
          %v1321 = vld [vmem:[%s291] sm:$0x3]
          %v1323 = vlaneseq
          %v1324 = vshrl.u32 %v1323, 7
          %v1325 = vsub.s32 0, %v1324
          %v1326 = vrot.slane %v1321, %v1325
          %v1327 = vlaneseq
          %v1328 = vshrl.u32 %v1327, 7
          %v1329 = vsub.s32 1, %v1328
          %v1330 = vrot.slane %v1321, %v1329
          %v1333 = vadd.f32 %v1317, %v1326
          %v1334 = vadd.f32 %v1318, %v1330
          %v1335 = vadd.f32 %v1319, %v1326
          %v1336 = vadd.f32 %v1320, %v1330
          %v1337 = vmax.f32 %v1333, 0.0
          %v1338 = vmax.f32 %v1334, 0.0
          %v1339 = vmax.f32 %v1335, 0.0
          %v1340 = vmax.f32 %v1336, 0.0
          %1341 = vst [vmem:[%s302] sm:$0xff] %v1337
          %1342 = vst [vmem:[%s302 + $0x8] sm:$0xff] %v1338
          %1343 = vst [vmem:[%s302 + $0x10] sm:$0xff] %v1339
          %1344 = vst [vmem:[%s302 + $0x18] sm:$0xff] %v1340
        $region63: #{stem_res1_forward.13} parent=50 // pred_fallthru
          _
        %s1345 = smul.u32 2, %s19
        %s1346 = smul.u32 2, %s20
        %p1347 = scmp.lt.s32.totalorder %s1345, 1
        %s1348 = scalar_select %p1347, %s1345, 1
        %p1349 = scmp.lt.s32.totalorder %s1346, 1
        %s1350 = scalar_select %p1349, %s1346, 1
        %s1351 = smul.addr %s1348, 2
        %s1352 = sadd.s32 %s1350, %s1351
        %s1353 = smul.addr %s1352, 8
        %s1354 = scalar_lea.vmem %s3, %s1353
        // Predicated region
        $region64: #{stem_res1_forward.13} parent=50 // pred_check
          %p1355 = pneg %p135
        $region65: #{stem_res1_forward.13} parent=50 // pred_check_branch
          %1357 = sbr.rel (%p1355) target = $region67
        $region66: #{stem_res1_forward.13} parent=50 // pred_region
          %s1358 = smul.u32 2, %s19
          %s1359 = smul.u32 2, %s20
        $region67: #{stem_res1_forward.13} parent=50 // pred_fallthru
          _
        // Predicated region
        $region68: #{stem_res1_forward.13} parent=50 // pred_check
          %p1360 = pneg %p135
        $region69: #{stem_res1_forward.13} parent=50 // pred_check_branch
          %1362 = sbr.rel (%p1360) target = $region71
        $region70: #{stem_res1_forward.13} parent=50 // pred_region
          %s1363 = smul.u32 2, %s19
          %s1364 = smul.u32 2, %s20
          %p1365 = scmp.lt.s32.totalorder %s1363, 1
          %s1366 = scalar_select %p1365, %s1363, 1
          %p1367 = scmp.lt.s32.totalorder %s1364, 1
          %s1368 = scalar_select %p1367, %s1364, 1
          %s1369 = smul.addr %s1366, 2
          %s1370 = sadd.s32 %s1368, %s1369
          %s1371 = smul.addr %s1370, 8
          %s1372 = scalar_lea.vmem %s3, %s1371
        $region71: #{stem_res1_forward.13} parent=50 // pred_fallthru
          _
      $region51: #{stem_res1_forward.13} parent=5 // pred_fallthru
        _
      %p1373 = scmp.le.s32.totalorder 2, %s9
      // Predicated region
      $region72: #{stem_res1_forward.13} parent=5 // pred_check
        %p1374 = pneg %p1373
      $region73: #{stem_res1_forward.13} parent=5 // pred_check_branch
        %1376 = sbr.rel (%p1374) target = $region75
      $region74: #{stem_res1_forward.13} parent=5 // pred_region
        %s1377 = ssub.s32 %s9, 2
      $region75: #{stem_res1_forward.13} parent=5 // pred_fallthru
        _
    $region6: #{stem_res1_forward.13} parent=1 // loop_footer
      %s13 = sadd.s32 1, %s9
    $region7: #{stem_res1_forward.13} parent=1 // loop_footer_branch
      %8 = sbr.rel target = $region3
    $region8: #{stem_res1_forward.13} parent=1 // loop_exit
      _

</llo_original>
